<compile_context>
chip_gen: v7x
topology: tpu7x:2x2x1
jax: 0.10.0
libtpu: 0.0.40
codegen_flags: <defaults>
</compile_context>

<pallas_src>
import jax
import jax.numpy as jnp
from jax import lax
from jax.experimental import pallas as pl
from jax.experimental.pallas import tpu as pltpu

_LANE = 128
_SUBLANE = 8


def _round_up(x, m):
    return (x + m - 1) // m * m


def rnn_vae_kernel(xe_ref, mask_ref, eps_ref,
                   wih_cat_ref, b_cat_ref,
                   whh_e_ref, whh_d_ref,
                   w_lat_ref, b_lat_ref,
                   w_inith_ref, b_inith_ref,
                   w_initc_ref, b_initc_ref,
                   w_out_ref, b_out_ref,
                   logits_ref, lmean_ref, llogvar_ref, l_ref,
                   pre_e_ref, pre_d_ref, hdec_ref):
    T, B, _ = mask_ref.shape          # time-major, padded batch
    H = whh_e_ref.shape[0]
    Lp = eps_ref.shape[1]
    f32 = jnp.float32
    bf16 = jnp.bfloat16

    # ---- hoisted input projections: one (T*B, Ep) x (Ep, 8H) bf16 MXU matmul --
    pre = jnp.dot(xe_ref[...], wih_cat_ref[...],
                  preferred_element_type=f32) + b_cat_ref[...]
    pre_e_ref[...] = pre[:, :4 * H].reshape(T, B, 4 * H)
    pre_d_ref[...] = pre[:, 4 * H:].reshape(T, B, 4 * H)

    whh_e = whh_e_ref[...]            # bf16 (H, 4H), gate order i,f,o,g
    whh_d = whh_d_ref[...]

    def cell(pre_t, h, c, whh):
        # pre_t already holds x @ W_ih + (b_ih + b_hh); gates ordered i,f,o | g.
        gates = pre_t + jnp.dot(h.astype(bf16), whh, preferred_element_type=f32)
        ifo = jax.nn.sigmoid(gates[:, :3 * H])     # one EUP push for i,f,o
        g = jnp.tanh(gates[:, 3 * H:4 * H])        # one EUP push for g
        i_g = ifo[:, 0 * H:1 * H]
        f_g = ifo[:, 1 * H:2 * H]
        o_g = ifo[:, 2 * H:3 * H]
        c_new = f_g * c + i_g * g
        h_new = o_g * jnp.tanh(c_new)
        return h_new, c_new

    unroll = T <= 16                  # full unroll only for short sequences

    # ---- encoder recurrence (packed: state frozen once t >= len_x[b]) --------
    def enc_body(t, carry):
        h, c = carry
        m = mask_ref[t] > 0.0                     # (B, 1) bool, lane-broadcast
        h_new, c_new = cell(pre_e_ref[t], h, c, whh_e)
        return jnp.where(m, h_new, h), jnp.where(m, c_new, c)

    zeros_bh = jnp.zeros((B, H), f32)
    h_enc, _ = lax.fori_loop(0, T, enc_body, (zeros_bh, zeros_bh), unroll=unroll)

    # ---- latent head + reparameterization (runs once; kept f32) ---------------
    lat = jnp.dot(h_enc, w_lat_ref[...], preferred_element_type=f32) + b_lat_ref[...]
    l_mean = lat[:, :Lp]
    l_log_var = lat[:, Lp:]
    l = l_mean + jnp.exp(l_log_var * 0.5) * eps_ref[...]
    lmean_ref[...] = l_mean
    llogvar_ref[...] = l_log_var
    l_ref[...] = l

    init_h = jnp.dot(l, w_inith_ref[...], preferred_element_type=f32) + b_inith_ref[...]
    init_c = jnp.dot(l, w_initc_ref[...], preferred_element_type=f32) + b_initc_ref[...]

    # ---- decoder recurrence: stash masked hidden states, project afterwards ---
    def dec_body(t, carry):
        h, c = carry
        m = mask_ref[t] > 0.0
        h_new, c_new = cell(pre_d_ref[t], h, c, whh_d)
        hdec_ref[t] = jnp.where(m, h_new, 0.0)    # pad_packed zero-pads past len
        return jnp.where(m, h_new, h), jnp.where(m, c_new, c)

    lax.fori_loop(0, T, dec_body, (init_h, init_c), unroll=unroll)

    # ---- deferred vocab projection: one lane-dense (T*B, H) x (H, Vp) matmul --
    h_all = hdec_ref[...].reshape(T * B, H).astype(bf16)
    logits_ref[...] = jnp.dot(h_all, w_out_ref[...],
                              preferred_element_type=f32) + b_out_ref[...]


def rnn_forward(params, x, len_x, eps):
    """x: (B, T) int32 tokens; len_x: (B,) int32 (sorted descending, max == T);
    eps: (B, latent) reparameterization noise."""
    B, T = x.shape
    E = params["emb"].shape[1]
    H = params["whh_e"].shape[0]
    L = params["w_inith"].shape[0]
    V = params["w_out"].shape[1]

    Ep = _round_up(E, _LANE)
    Vp = _round_up(V, _LANE)
    Lp = _round_up(L, _LANE)
    Bp = _round_up(B, _SUBLANE)
    f32 = jnp.float32
    bf16 = jnp.bfloat16

    # ---- gate reorder: PyTorch (i, f, g, o) -> (i, f, o | g) ------------------
    def reorder_gates(w):
        i, f, g, o = jnp.split(w.astype(f32), 4, axis=-1)
        return jnp.concatenate([i, f, o, g], axis=-1)

    # ---- pad/cast parameters (zero padding is exact; MXU operands -> bf16) ----
    emb_p = jnp.pad(params["emb"].astype(f32), ((0, 0), (0, Ep - E)))
    wih_cat = jnp.concatenate(
        [jnp.pad(reorder_gates(params["wih_e"]), ((0, Ep - E), (0, 0))),
         jnp.pad(reorder_gates(params["wih_d"]), ((0, Ep - E), (0, 0)))],
        axis=1).astype(bf16)                                          # (Ep, 8H)
    b_cat = jnp.concatenate(
        [reorder_gates(params["b_e"]), reorder_gates(params["b_d"])], axis=1)  # (1, 8H) f32
    whh_e = reorder_gates(params["whh_e"]).astype(bf16)               # (H, 4H)
    whh_d = reorder_gates(params["whh_d"]).astype(bf16)

    w_lat_p = jnp.zeros((H, 2 * Lp), f32)
    w_lat_p = w_lat_p.at[:, :L].set(params["w_lat"][:, :L].astype(f32))
    w_lat_p = w_lat_p.at[:, Lp:Lp + L].set(params["w_lat"][:, L:].astype(f32))
    b_lat_p = jnp.zeros((1, 2 * Lp), f32)
    b_lat_p = b_lat_p.at[:, :L].set(params["b_lat"][:, :L].astype(f32))
    b_lat_p = b_lat_p.at[:, Lp:Lp + L].set(params["b_lat"][:, L:].astype(f32))

    w_inith_p = jnp.pad(params["w_inith"].astype(f32), ((0, Lp - L), (0, 0)))
    w_initc_p = jnp.pad(params["w_initc"].astype(f32), ((0, Lp - L), (0, 0)))
    w_out_p = jnp.pad(params["w_out"].astype(f32), ((0, 0), (0, Vp - V))).astype(bf16)
    b_out_p = jnp.pad(params["b_out"].astype(f32), ((0, 0), (0, Vp - V)))

    # ---- glue: embedding lookup, batch pad, time-major flatten, tiny mask -----
    xe = jnp.take(emb_p, x, axis=0)                          # (B, T, Ep) f32
    xe = jnp.pad(xe, ((0, Bp - B), (0, 0), (0, 0)))
    xe_flat = jnp.transpose(xe, (1, 0, 2)).reshape(T * Bp, Ep).astype(bf16)

    # NOTE: packed-sequence semantics assume len_x is sorted descending with
    # max(len_x) == T (as pack_padded_sequence requires).
    len_pad = jnp.zeros((Bp,), jnp.int32).at[:B].set(len_x.astype(jnp.int32))
    mask = (jnp.arange(T, dtype=jnp.int32)[:, None]
            < len_pad[None, :]).astype(f32)[:, :, None]       # (T, Bp, 1)

    eps_p = jnp.zeros((Bp, Lp), f32).at[:B, :L].set(eps.astype(f32))

    vmem = pl.BlockSpec(memory_space=pltpu.MemorySpace.VMEM)
    out_shapes = (
        jax.ShapeDtypeStruct((T * Bp, Vp), f32),   # lane-dense logits slab
        jax.ShapeDtypeStruct((Bp, Lp), f32),       # l_mean
        jax.ShapeDtypeStruct((Bp, Lp), f32),       # l_log_var
        jax.ShapeDtypeStruct((Bp, Lp), f32),       # l
    )
    scratch = [
        pltpu.VMEM((T, Bp, 4 * H), f32),   # encoder input pre-activations
        pltpu.VMEM((T, Bp, 4 * H), f32),   # decoder input pre-activations
        pltpu.VMEM((T, Bp, H), f32),       # masked decoder hidden states
    ]

    logits_slab, l_mean_p, l_log_var_p, l_p = pl.pallas_call(
        rnn_vae_kernel,
        out_shape=out_shapes,
        in_specs=[vmem] * 15,
        out_specs=(vmem, vmem, vmem, vmem),
        scratch_shapes=scratch,
    )(xe_flat, mask, eps_p,
      wih_cat, b_cat,
      whh_e, whh_d,
      w_lat_p, b_lat_p,
      w_inith_p, params["b_inith"].astype(f32),
      w_initc_p, params["b_initc"].astype(f32),
      w_out_p, b_out_p)

    logits = jnp.transpose(logits_slab.reshape(T, Bp, Vp), (1, 0, 2))[:B, :, :V]
    logits = logits.reshape(B * T, V)
    return logits, (l_mean_p[:B, :L], l_log_var_p[:B, :L], l_p[:B, :L])


def init_params(key, vocab_size=10, emb_size=100, hidden_size=128, latent_size=10):
    ks = jax.random.split(key, 16)

    def u(k, shape, fan_in):
        b = 1.0 / jnp.sqrt(jnp.float32(fan_in))
        return jax.random.uniform(k, shape, jnp.float32, -b, b)

    H, E, L, V = hidden_size, emb_size, latent_size, vocab_size
    params = {
        # nn.Embedding: N(0, 1)
        "emb": jax.random.normal(ks[0], (V, E), jnp.float32),
        # encoder LSTM (weights stored pre-transposed for x @ W, gate order i,f,g,o)
        "wih_e": u(ks[1], (E, 4 * H), H),
        "whh_e": u(ks[2], (H, 4 * H), H),
        "b_e": u(ks[3], (1, 4 * H), H) + u(ks[4], (1, 4 * H), H),  # b_ih + b_hh
        # latent head
        "w_lat": u(ks[5], (H, 2 * L), H),
        "b_lat": u(ks[6], (1, 2 * L), H),
        # init_hid / init_c
        "w_inith": u(ks[7], (L, H), L),
        "b_inith": u(ks[8], (1, H), L),
        "w_initc": u(ks[9], (L, H), L),
        "b_initc": u(ks[10], (1, H), L),
        # decoder LSTM
        "wih_d": u(ks[11], (E, 4 * H), H),
        "whh_d": u(ks[12], (H, 4 * H), H),
        "b_d": u(ks[13], (1, 4 * H), H) + u(ks[14], (1, 4 * H), H),
        # output projection
        "w_out": u(ks[15], (H, V), H),
        "b_out": jnp.zeros((1, V), jnp.float32),
    }
    return params


if __name__ == "__main__":
    key = jax.random.PRNGKey(0)
    kp, kx, keps = jax.random.split(key, 3)

    B, T = 2, 8
    V, E, H, L = 10, 100, 128, 10

    params = init_params(kp, V, E, H, L)
    x = jax.random.randint(kx, (B, T), 0, V, dtype=jnp.int32)
    # pack_padded_sequence expects sorted-descending lengths with max == T
    len_x = jnp.array([T, 5], dtype=jnp.int32)
    eps = jax.random.normal(keps, (B, L), jnp.float32)  # reparameterization noise

    logits, (l_mean, l_log_var, l) = rnn_forward(params, x, len_x, eps)
    jax.block_until_ready((logits, l_mean, l_log_var, l))
    assert logits.shape == (B * T, V)
    assert l_mean.shape == (B, L) and l_log_var.shape == (B, L) and l.shape == (B, L)
    print("KERNEL_OK")
</pallas_src>

<mosaic_0001>
module attributes {stable_mosaic.version = 11 : i64} {
  func.func @rnn_vae_kernel(%arg0: memref<64x128xbf16, #tpu.memory_space<vmem>>, %arg1: memref<8x8x1xf32, #tpu.memory_space<vmem>>, %arg2: memref<8x128xf32, #tpu.memory_space<vmem>>, %arg3: memref<128x1024xbf16, #tpu.memory_space<vmem>>, %arg4: memref<1x1024xf32, #tpu.memory_space<vmem>>, %arg5: memref<128x512xbf16, #tpu.memory_space<vmem>>, %arg6: memref<128x512xbf16, #tpu.memory_space<vmem>>, %arg7: memref<128x256xf32, #tpu.memory_space<vmem>>, %arg8: memref<1x256xf32, #tpu.memory_space<vmem>>, %arg9: memref<128x128xf32, #tpu.memory_space<vmem>>, %arg10: memref<1x128xf32, #tpu.memory_space<vmem>>, %arg11: memref<128x128xf32, #tpu.memory_space<vmem>>, %arg12: memref<1x128xf32, #tpu.memory_space<vmem>>, %arg13: memref<128x128xbf16, #tpu.memory_space<vmem>>, %arg14: memref<1x128xf32, #tpu.memory_space<vmem>>, %arg15: memref<64x128xf32, #tpu.memory_space<vmem>>, %arg16: memref<8x128xf32, #tpu.memory_space<vmem>>, %arg17: memref<8x128xf32, #tpu.memory_space<vmem>>, %arg18: memref<8x128xf32, #tpu.memory_space<vmem>>, %arg19: memref<8x8x512xf32, #tpu.memory_space<vmem>>, %arg20: memref<8x8x512xf32, #tpu.memory_space<vmem>>, %arg21: memref<8x8x128xf32, #tpu.memory_space<vmem>>) attributes {dimension_semantics = [], scalar_prefetch = 0 : i64, scratch_operands = 3 : i64, tpu.core_type = #tpu.core_type<tc>} {
    %c0 = arith.constant 0 : index
    %c0_0 = arith.constant 0 : index
    %0 = vector.load %arg0[%c0, %c0_0] : memref<64x128xbf16, #tpu.memory_space<vmem>>, vector<64x128xbf16>
    %c0_1 = arith.constant 0 : index
    %c0_2 = arith.constant 0 : index
    %1 = vector.load %arg3[%c0_1, %c0_2] : memref<128x1024xbf16, #tpu.memory_space<vmem>>, vector<128x1024xbf16>
    %cst = arith.constant dense<0.000000e+00> : vector<64x1024xf32>
    %2 = tpu.matmul %0, %1, %cst {dimension_numbers = #tpu.dot_dimension_numbers<[1], [0], [0], [1], [0, 0, 1, 1], [], []>} : vector<64x128xbf16>, vector<128x1024xbf16>, vector<64x1024xf32> -> vector<64x1024xf32>
    %c0_3 = arith.constant 0 : index
    %c0_4 = arith.constant 0 : index
    %3 = vector.load %arg4[%c0_3, %c0_4] : memref<1x1024xf32, #tpu.memory_space<vmem>>, vector<1x1024xf32>
    %4 = vector.broadcast %3 : vector<1x1024xf32> to vector<64x1024xf32>
    %5 = arith.addf %2, %4 : vector<64x1024xf32>
    %6 = vector.extract_strided_slice %5 {offsets = [0, 0], sizes = [64, 512], strides = [1, 1]} : vector<64x1024xf32> to vector<64x512xf32>
    %7 = vector.shape_cast %6 : vector<64x512xf32> to vector<8x8x512xf32>
    %c0_5 = arith.constant 0 : index
    %c0_6 = arith.constant 0 : index
    %c0_7 = arith.constant 0 : index
    %8 = vector.load %arg19[%c0_5, %c0_6, %c0_7] : memref<8x8x512xf32, #tpu.memory_space<vmem>>, vector<8x8x512xf32>
    tpu.vector_store %arg19[%c0_5, %c0_6, %c0_7], %7 {strides = array<i32>} : memref<8x8x512xf32, #tpu.memory_space<vmem>>, vector<8x8x512xf32>,
    %9 = vector.extract_strided_slice %5 {offsets = [0, 512], sizes = [64, 512], strides = [1, 1]} : vector<64x1024xf32> to vector<64x512xf32>
    %10 = vector.shape_cast %9 : vector<64x512xf32> to vector<8x8x512xf32>
    %c0_8 = arith.constant 0 : index
    %c0_9 = arith.constant 0 : index
    %c0_10 = arith.constant 0 : index
    %11 = vector.load %arg20[%c0_8, %c0_9, %c0_10] : memref<8x8x512xf32, #tpu.memory_space<vmem>>, vector<8x8x512xf32>
    tpu.vector_store %arg20[%c0_8, %c0_9, %c0_10], %10 {strides = array<i32>} : memref<8x8x512xf32, #tpu.memory_space<vmem>>, vector<8x8x512xf32>,
    %c0_11 = arith.constant 0 : index
    %c0_12 = arith.constant 0 : index
    %12 = vector.load %arg5[%c0_11, %c0_12] : memref<128x512xbf16, #tpu.memory_space<vmem>>, vector<128x512xbf16>
    %c0_13 = arith.constant 0 : index
    %c0_14 = arith.constant 0 : index
    %13 = vector.load %arg6[%c0_13, %c0_14] : memref<128x512xbf16, #tpu.memory_space<vmem>>, vector<128x512xbf16>
    %cst_15 = arith.constant 0.000000e+00 : f32
    %14 = vector.broadcast %cst_15 : f32 to vector<8x128xf32>
    %c0_i32 = arith.constant 0 : i32
    %15 = arith.index_cast %c0_i32 : i32 to index
    %c0_16 = arith.constant 0 : index
    %c0_17 = arith.constant 0 : index
    %16 = vector.load %arg1[%15, %c0_16, %c0_17] : memref<8x8x1xf32, #tpu.memory_space<vmem>>, vector<1x8x1xf32>
    %17 = vector.shape_cast %16 : vector<1x8x1xf32> to vector<8x1xf32>
    %cst_18 = arith.constant 0.000000e+00 : f32
    %18 = vector.broadcast %cst_18 : f32 to vector<8x1xf32>
    %19 = arith.cmpf ogt, %17, %18 : vector<8x1xf32>
    %20 = arith.index_cast %c0_i32 : i32 to index
    %c0_19 = arith.constant 0 : index
    %c0_20 = arith.constant 0 : index
    %21 = vector.load %arg19[%20, %c0_19, %c0_20] : memref<8x8x512xf32, #tpu.memory_space<vmem>>, vector<1x8x512xf32>
    %22 = vector.shape_cast %21 : vector<1x8x512xf32> to vector<8x512xf32>
    %23 = arith.truncf %14 : vector<8x128xf32> to vector<8x128xbf16>
    %cst_21 = arith.constant dense<0.000000e+00> : vector<8x512xf32>
    %24 = tpu.matmul %23, %12, %cst_21 {dimension_numbers = #tpu.dot_dimension_numbers<[1], [0], [0], [1], [0, 0, 1, 1], [], []>} : vector<8x128xbf16>, vector<128x512xbf16>, vector<8x512xf32> -> vector<8x512xf32>
    %25 = arith.addf %22, %24 : vector<8x512xf32>
    %26 = vector.extract_strided_slice %25 {offsets = [0, 0], sizes = [8, 384], strides = [1, 1]} : vector<8x512xf32> to vector<8x384xf32>
    %27 = arith.negf %26 : vector<8x384xf32>
    %28 = math.exp %27 : vector<8x384xf32>
    %cst_22 = arith.constant 1.000000e+00 : f32
    %29 = vector.broadcast %cst_22 : f32 to vector<8x384xf32>
    %30 = arith.addf %29, %28 : vector<8x384xf32>
    %31 = arith.divf %29, %30 : vector<8x384xf32>
    %32 = vector.extract_strided_slice %25 {offsets = [0, 384], sizes = [8, 128], strides = [1, 1]} : vector<8x512xf32> to vector<8x128xf32>
    %33 = math.tanh %32 : vector<8x128xf32>
    %34 = vector.extract_strided_slice %31 {offsets = [0, 0], sizes = [8, 128], strides = [1, 1]} : vector<8x384xf32> to vector<8x128xf32>
    %35 = vector.extract_strided_slice %31 {offsets = [0, 128], sizes = [8, 128], strides = [1, 1]} : vector<8x384xf32> to vector<8x128xf32>
    %36 = vector.extract_strided_slice %31 {offsets = [0, 256], sizes = [8, 128], strides = [1, 1]} : vector<8x384xf32> to vector<8x128xf32>
    %37 = arith.mulf %35, %14 : vector<8x128xf32>
    %38 = arith.mulf %34, %33 : vector<8x128xf32>
    %39 = arith.addf %37, %38 : vector<8x128xf32>
    %40 = math.tanh %39 : vector<8x128xf32>
    %41 = arith.mulf %36, %40 : vector<8x128xf32>
    %42 = vector.shape_cast %19 : vector<8x1xi1> to vector<8x1xi1>
    %43 = vector.broadcast %42 : vector<8x1xi1> to vector<8x128xi1>
    %44 = arith.select %43, %41, %14 : vector<8x128xi1>, vector<8x128xf32>
    %45 = vector.shape_cast %19 : vector<8x1xi1> to vector<8x1xi1>
    %46 = vector.broadcast %45 : vector<8x1xi1> to vector<8x128xi1>
    %47 = arith.select %46, %39, %14 : vector<8x128xi1>, vector<8x128xf32>
    %c1_i32 = arith.constant 1 : i32
    %48 = arith.index_cast %c1_i32 : i32 to index
    %c0_23 = arith.constant 0 : index
    %c0_24 = arith.constant 0 : index
    %49 = vector.load %arg1[%48, %c0_23, %c0_24] : memref<8x8x1xf32, #tpu.memory_space<vmem>>, vector<1x8x1xf32>
    %50 = vector.shape_cast %49 : vector<1x8x1xf32> to vector<8x1xf32>
    %cst_25 = arith.constant 0.000000e+00 : f32
    %51 = vector.broadcast %cst_25 : f32 to vector<8x1xf32>
    %52 = arith.cmpf ogt, %50, %51 : vector<8x1xf32>
    %53 = arith.index_cast %c1_i32 : i32 to index
    %c0_26 = arith.constant 0 : index
    %c0_27 = arith.constant 0 : index
    %54 = vector.load %arg19[%53, %c0_26, %c0_27] : memref<8x8x512xf32, #tpu.memory_space<vmem>>, vector<1x8x512xf32>
    %55 = vector.shape_cast %54 : vector<1x8x512xf32> to vector<8x512xf32>
    %56 = arith.truncf %44 : vector<8x128xf32> to vector<8x128xbf16>
    %cst_28 = arith.constant dense<0.000000e+00> : vector<8x512xf32>
    %57 = tpu.matmul %56, %12, %cst_28 {dimension_numbers = #tpu.dot_dimension_numbers<[1], [0], [0], [1], [0, 0, 1, 1], [], []>} : vector<8x128xbf16>, vector<128x512xbf16>, vector<8x512xf32> -> vector<8x512xf32>
    %58 = arith.addf %55, %57 : vector<8x512xf32>
    %59 = vector.extract_strided_slice %58 {offsets = [0, 0], sizes = [8, 384], strides = [1, 1]} : vector<8x512xf32> to vector<8x384xf32>
    %60 = arith.negf %59 : vector<8x384xf32>
    %61 = math.exp %60 : vector<8x384xf32>
    %cst_29 = arith.constant 1.000000e+00 : f32
    %62 = vector.broadcast %cst_29 : f32 to vector<8x384xf32>
    %63 = arith.addf %62, %61 : vector<8x384xf32>
    %64 = arith.divf %62, %63 : vector<8x384xf32>
    %65 = vector.extract_strided_slice %58 {offsets = [0, 384], sizes = [8, 128], strides = [1, 1]} : vector<8x512xf32> to vector<8x128xf32>
    %66 = math.tanh %65 : vector<8x128xf32>
    %67 = vector.extract_strided_slice %64 {offsets = [0, 0], sizes = [8, 128], strides = [1, 1]} : vector<8x384xf32> to vector<8x128xf32>
    %68 = vector.extract_strided_slice %64 {offsets = [0, 128], sizes = [8, 128], strides = [1, 1]} : vector<8x384xf32> to vector<8x128xf32>
    %69 = vector.extract_strided_slice %64 {offsets = [0, 256], sizes = [8, 128], strides = [1, 1]} : vector<8x384xf32> to vector<8x128xf32>
    %70 = arith.mulf %68, %47 : vector<8x128xf32>
    %71 = arith.mulf %67, %66 : vector<8x128xf32>
    %72 = arith.addf %70, %71 : vector<8x128xf32>
    %73 = math.tanh %72 : vector<8x128xf32>
    %74 = arith.mulf %69, %73 : vector<8x128xf32>
    %75 = vector.shape_cast %52 : vector<8x1xi1> to vector<8x1xi1>
    %76 = vector.broadcast %75 : vector<8x1xi1> to vector<8x128xi1>
    %77 = arith.select %76, %74, %44 : vector<8x128xi1>, vector<8x128xf32>
    %78 = vector.shape_cast %52 : vector<8x1xi1> to vector<8x1xi1>
    %79 = vector.broadcast %78 : vector<8x1xi1> to vector<8x128xi1>
    %80 = arith.select %79, %72, %47 : vector<8x128xi1>, vector<8x128xf32>
    %c2_i32 = arith.constant 2 : i32
    %81 = arith.index_cast %c2_i32 : i32 to index
    %c0_30 = arith.constant 0 : index
    %c0_31 = arith.constant 0 : index
    %82 = vector.load %arg1[%81, %c0_30, %c0_31] : memref<8x8x1xf32, #tpu.memory_space<vmem>>, vector<1x8x1xf32>
    %83 = vector.shape_cast %82 : vector<1x8x1xf32> to vector<8x1xf32>
    %cst_32 = arith.constant 0.000000e+00 : f32
    %84 = vector.broadcast %cst_32 : f32 to vector<8x1xf32>
    %85 = arith.cmpf ogt, %83, %84 : vector<8x1xf32>
    %86 = arith.index_cast %c2_i32 : i32 to index
    %c0_33 = arith.constant 0 : index
    %c0_34 = arith.constant 0 : index
    %87 = vector.load %arg19[%86, %c0_33, %c0_34] : memref<8x8x512xf32, #tpu.memory_space<vmem>>, vector<1x8x512xf32>
    %88 = vector.shape_cast %87 : vector<1x8x512xf32> to vector<8x512xf32>
    %89 = arith.truncf %77 : vector<8x128xf32> to vector<8x128xbf16>
    %cst_35 = arith.constant dense<0.000000e+00> : vector<8x512xf32>
    %90 = tpu.matmul %89, %12, %cst_35 {dimension_numbers = #tpu.dot_dimension_numbers<[1], [0], [0], [1], [0, 0, 1, 1], [], []>} : vector<8x128xbf16>, vector<128x512xbf16>, vector<8x512xf32> -> vector<8x512xf32>
    %91 = arith.addf %88, %90 : vector<8x512xf32>
    %92 = vector.extract_strided_slice %91 {offsets = [0, 0], sizes = [8, 384], strides = [1, 1]} : vector<8x512xf32> to vector<8x384xf32>
    %93 = arith.negf %92 : vector<8x384xf32>
    %94 = math.exp %93 : vector<8x384xf32>
    %cst_36 = arith.constant 1.000000e+00 : f32
    %95 = vector.broadcast %cst_36 : f32 to vector<8x384xf32>
    %96 = arith.addf %95, %94 : vector<8x384xf32>
    %97 = arith.divf %95, %96 : vector<8x384xf32>
    %98 = vector.extract_strided_slice %91 {offsets = [0, 384], sizes = [8, 128], strides = [1, 1]} : vector<8x512xf32> to vector<8x128xf32>
    %99 = math.tanh %98 : vector<8x128xf32>
    %100 = vector.extract_strided_slice %97 {offsets = [0, 0], sizes = [8, 128], strides = [1, 1]} : vector<8x384xf32> to vector<8x128xf32>
    %101 = vector.extract_strided_slice %97 {offsets = [0, 128], sizes = [8, 128], strides = [1, 1]} : vector<8x384xf32> to vector<8x128xf32>
    %102 = vector.extract_strided_slice %97 {offsets = [0, 256], sizes = [8, 128], strides = [1, 1]} : vector<8x384xf32> to vector<8x128xf32>
    %103 = arith.mulf %101, %80 : vector<8x128xf32>
    %104 = arith.mulf %100, %99 : vector<8x128xf32>
    %105 = arith.addf %103, %104 : vector<8x128xf32>
    %106 = math.tanh %105 : vector<8x128xf32>
    %107 = arith.mulf %102, %106 : vector<8x128xf32>
    %108 = vector.shape_cast %85 : vector<8x1xi1> to vector<8x1xi1>
    %109 = vector.broadcast %108 : vector<8x1xi1> to vector<8x128xi1>
    %110 = arith.select %109, %107, %77 : vector<8x128xi1>, vector<8x128xf32>
    %111 = vector.shape_cast %85 : vector<8x1xi1> to vector<8x1xi1>
    %112 = vector.broadcast %111 : vector<8x1xi1> to vector<8x128xi1>
    %113 = arith.select %112, %105, %80 : vector<8x128xi1>, vector<8x128xf32>
    %c3_i32 = arith.constant 3 : i32
    %114 = arith.index_cast %c3_i32 : i32 to index
    %c0_37 = arith.constant 0 : index
    %c0_38 = arith.constant 0 : index
    %115 = vector.load %arg1[%114, %c0_37, %c0_38] : memref<8x8x1xf32, #tpu.memory_space<vmem>>, vector<1x8x1xf32>
    %116 = vector.shape_cast %115 : vector<1x8x1xf32> to vector<8x1xf32>
    %cst_39 = arith.constant 0.000000e+00 : f32
    %117 = vector.broadcast %cst_39 : f32 to vector<8x1xf32>
    %118 = arith.cmpf ogt, %116, %117 : vector<8x1xf32>
    %119 = arith.index_cast %c3_i32 : i32 to index
    %c0_40 = arith.constant 0 : index
    %c0_41 = arith.constant 0 : index
    %120 = vector.load %arg19[%119, %c0_40, %c0_41] : memref<8x8x512xf32, #tpu.memory_space<vmem>>, vector<1x8x512xf32>
    %121 = vector.shape_cast %120 : vector<1x8x512xf32> to vector<8x512xf32>
    %122 = arith.truncf %110 : vector<8x128xf32> to vector<8x128xbf16>
    %cst_42 = arith.constant dense<0.000000e+00> : vector<8x512xf32>
    %123 = tpu.matmul %122, %12, %cst_42 {dimension_numbers = #tpu.dot_dimension_numbers<[1], [0], [0], [1], [0, 0, 1, 1], [], []>} : vector<8x128xbf16>, vector<128x512xbf16>, vector<8x512xf32> -> vector<8x512xf32>
    %124 = arith.addf %121, %123 : vector<8x512xf32>
    %125 = vector.extract_strided_slice %124 {offsets = [0, 0], sizes = [8, 384], strides = [1, 1]} : vector<8x512xf32> to vector<8x384xf32>
    %126 = arith.negf %125 : vector<8x384xf32>
    %127 = math.exp %126 : vector<8x384xf32>
    %cst_43 = arith.constant 1.000000e+00 : f32
    %128 = vector.broadcast %cst_43 : f32 to vector<8x384xf32>
    %129 = arith.addf %128, %127 : vector<8x384xf32>
    %130 = arith.divf %128, %129 : vector<8x384xf32>
    %131 = vector.extract_strided_slice %124 {offsets = [0, 384], sizes = [8, 128], strides = [1, 1]} : vector<8x512xf32> to vector<8x128xf32>
    %132 = math.tanh %131 : vector<8x128xf32>
    %133 = vector.extract_strided_slice %130 {offsets = [0, 0], sizes = [8, 128], strides = [1, 1]} : vector<8x384xf32> to vector<8x128xf32>
    %134 = vector.extract_strided_slice %130 {offsets = [0, 128], sizes = [8, 128], strides = [1, 1]} : vector<8x384xf32> to vector<8x128xf32>
    %135 = vector.extract_strided_slice %130 {offsets = [0, 256], sizes = [8, 128], strides = [1, 1]} : vector<8x384xf32> to vector<8x128xf32>
    %136 = arith.mulf %134, %113 : vector<8x128xf32>
    %137 = arith.mulf %133, %132 : vector<8x128xf32>
    %138 = arith.addf %136, %137 : vector<8x128xf32>
    %139 = math.tanh %138 : vector<8x128xf32>
    %140 = arith.mulf %135, %139 : vector<8x128xf32>
    %141 = vector.shape_cast %118 : vector<8x1xi1> to vector<8x1xi1>
    %142 = vector.broadcast %141 : vector<8x1xi1> to vector<8x128xi1>
    %143 = arith.select %142, %140, %110 : vector<8x128xi1>, vector<8x128xf32>
    %144 = vector.shape_cast %118 : vector<8x1xi1> to vector<8x1xi1>
    %145 = vector.broadcast %144 : vector<8x1xi1> to vector<8x128xi1>
    %146 = arith.select %145, %138, %113 : vector<8x128xi1>, vector<8x128xf32>
    %c4_i32 = arith.constant 4 : i32
    %147 = arith.index_cast %c4_i32 : i32 to index
    %c0_44 = arith.constant 0 : index
    %c0_45 = arith.constant 0 : index
    %148 = vector.load %arg1[%147, %c0_44, %c0_45] : memref<8x8x1xf32, #tpu.memory_space<vmem>>, vector<1x8x1xf32>
    %149 = vector.shape_cast %148 : vector<1x8x1xf32> to vector<8x1xf32>
    %cst_46 = arith.constant 0.000000e+00 : f32
    %150 = vector.broadcast %cst_46 : f32 to vector<8x1xf32>
    %151 = arith.cmpf ogt, %149, %150 : vector<8x1xf32>
    %152 = arith.index_cast %c4_i32 : i32 to index
    %c0_47 = arith.constant 0 : index
    %c0_48 = arith.constant 0 : index
    %153 = vector.load %arg19[%152, %c0_47, %c0_48] : memref<8x8x512xf32, #tpu.memory_space<vmem>>, vector<1x8x512xf32>
    %154 = vector.shape_cast %153 : vector<1x8x512xf32> to vector<8x512xf32>
    %155 = arith.truncf %143 : vector<8x128xf32> to vector<8x128xbf16>
    %cst_49 = arith.constant dense<0.000000e+00> : vector<8x512xf32>
    %156 = tpu.matmul %155, %12, %cst_49 {dimension_numbers = #tpu.dot_dimension_numbers<[1], [0], [0], [1], [0, 0, 1, 1], [], []>} : vector<8x128xbf16>, vector<128x512xbf16>, vector<8x512xf32> -> vector<8x512xf32>
    %157 = arith.addf %154, %156 : vector<8x512xf32>
    %158 = vector.extract_strided_slice %157 {offsets = [0, 0], sizes = [8, 384], strides = [1, 1]} : vector<8x512xf32> to vector<8x384xf32>
    %159 = arith.negf %158 : vector<8x384xf32>
    %160 = math.exp %159 : vector<8x384xf32>
    %cst_50 = arith.constant 1.000000e+00 : f32
    %161 = vector.broadcast %cst_50 : f32 to vector<8x384xf32>
    %162 = arith.addf %161, %160 : vector<8x384xf32>
    %163 = arith.divf %161, %162 : vector<8x384xf32>
    %164 = vector.extract_strided_slice %157 {offsets = [0, 384], sizes = [8, 128], strides = [1, 1]} : vector<8x512xf32> to vector<8x128xf32>
    %165 = math.tanh %164 : vector<8x128xf32>
    %166 = vector.extract_strided_slice %163 {offsets = [0, 0], sizes = [8, 128], strides = [1, 1]} : vector<8x384xf32> to vector<8x128xf32>
    %167 = vector.extract_strided_slice %163 {offsets = [0, 128], sizes = [8, 128], strides = [1, 1]} : vector<8x384xf32> to vector<8x128xf32>
    %168 = vector.extract_strided_slice %163 {offsets = [0, 256], sizes = [8, 128], strides = [1, 1]} : vector<8x384xf32> to vector<8x128xf32>
    %169 = arith.mulf %167, %146 : vector<8x128xf32>
    %170 = arith.mulf %166, %165 : vector<8x128xf32>
    %171 = arith.addf %169, %170 : vector<8x128xf32>
    %172 = math.tanh %171 : vector<8x128xf32>
    %173 = arith.mulf %168, %172 : vector<8x128xf32>
    %174 = vector.shape_cast %151 : vector<8x1xi1> to vector<8x1xi1>
    %175 = vector.broadcast %174 : vector<8x1xi1> to vector<8x128xi1>
    %176 = arith.select %175, %173, %143 : vector<8x128xi1>, vector<8x128xf32>
    %177 = vector.shape_cast %151 : vector<8x1xi1> to vector<8x1xi1>
    %178 = vector.broadcast %177 : vector<8x1xi1> to vector<8x128xi1>
    %179 = arith.select %178, %171, %146 : vector<8x128xi1>, vector<8x128xf32>
    %c5_i32 = arith.constant 5 : i32
    %180 = arith.index_cast %c5_i32 : i32 to index
    %c0_51 = arith.constant 0 : index
    %c0_52 = arith.constant 0 : index
    %181 = vector.load %arg1[%180, %c0_51, %c0_52] : memref<8x8x1xf32, #tpu.memory_space<vmem>>, vector<1x8x1xf32>
    %182 = vector.shape_cast %181 : vector<1x8x1xf32> to vector<8x1xf32>
    %cst_53 = arith.constant 0.000000e+00 : f32
    %183 = vector.broadcast %cst_53 : f32 to vector<8x1xf32>
    %184 = arith.cmpf ogt, %182, %183 : vector<8x1xf32>
    %185 = arith.index_cast %c5_i32 : i32 to index
    %c0_54 = arith.constant 0 : index
    %c0_55 = arith.constant 0 : index
    %186 = vector.load %arg19[%185, %c0_54, %c0_55] : memref<8x8x512xf32, #tpu.memory_space<vmem>>, vector<1x8x512xf32>
    %187 = vector.shape_cast %186 : vector<1x8x512xf32> to vector<8x512xf32>
    %188 = arith.truncf %176 : vector<8x128xf32> to vector<8x128xbf16>
    %cst_56 = arith.constant dense<0.000000e+00> : vector<8x512xf32>
    %189 = tpu.matmul %188, %12, %cst_56 {dimension_numbers = #tpu.dot_dimension_numbers<[1], [0], [0], [1], [0, 0, 1, 1], [], []>} : vector<8x128xbf16>, vector<128x512xbf16>, vector<8x512xf32> -> vector<8x512xf32>
    %190 = arith.addf %187, %189 : vector<8x512xf32>
    %191 = vector.extract_strided_slice %190 {offsets = [0, 0], sizes = [8, 384], strides = [1, 1]} : vector<8x512xf32> to vector<8x384xf32>
    %192 = arith.negf %191 : vector<8x384xf32>
    %193 = math.exp %192 : vector<8x384xf32>
    %cst_57 = arith.constant 1.000000e+00 : f32
    %194 = vector.broadcast %cst_57 : f32 to vector<8x384xf32>
    %195 = arith.addf %194, %193 : vector<8x384xf32>
    %196 = arith.divf %194, %195 : vector<8x384xf32>
    %197 = vector.extract_strided_slice %190 {offsets = [0, 384], sizes = [8, 128], strides = [1, 1]} : vector<8x512xf32> to vector<8x128xf32>
    %198 = math.tanh %197 : vector<8x128xf32>
    %199 = vector.extract_strided_slice %196 {offsets = [0, 0], sizes = [8, 128], strides = [1, 1]} : vector<8x384xf32> to vector<8x128xf32>
    %200 = vector.extract_strided_slice %196 {offsets = [0, 128], sizes = [8, 128], strides = [1, 1]} : vector<8x384xf32> to vector<8x128xf32>
    %201 = vector.extract_strided_slice %196 {offsets = [0, 256], sizes = [8, 128], strides = [1, 1]} : vector<8x384xf32> to vector<8x128xf32>
    %202 = arith.mulf %200, %179 : vector<8x128xf32>
    %203 = arith.mulf %199, %198 : vector<8x128xf32>
    %204 = arith.addf %202, %203 : vector<8x128xf32>
    %205 = math.tanh %204 : vector<8x128xf32>
    %206 = arith.mulf %201, %205 : vector<8x128xf32>
    %207 = vector.shape_cast %184 : vector<8x1xi1> to vector<8x1xi1>
    %208 = vector.broadcast %207 : vector<8x1xi1> to vector<8x128xi1>
    %209 = arith.select %208, %206, %176 : vector<8x128xi1>, vector<8x128xf32>
    %210 = vector.shape_cast %184 : vector<8x1xi1> to vector<8x1xi1>
    %211 = vector.broadcast %210 : vector<8x1xi1> to vector<8x128xi1>
    %212 = arith.select %211, %204, %179 : vector<8x128xi1>, vector<8x128xf32>
    %c6_i32 = arith.constant 6 : i32
    %213 = arith.index_cast %c6_i32 : i32 to index
    %c0_58 = arith.constant 0 : index
    %c0_59 = arith.constant 0 : index
    %214 = vector.load %arg1[%213, %c0_58, %c0_59] : memref<8x8x1xf32, #tpu.memory_space<vmem>>, vector<1x8x1xf32>
    %215 = vector.shape_cast %214 : vector<1x8x1xf32> to vector<8x1xf32>
    %cst_60 = arith.constant 0.000000e+00 : f32
    %216 = vector.broadcast %cst_60 : f32 to vector<8x1xf32>
    %217 = arith.cmpf ogt, %215, %216 : vector<8x1xf32>
    %218 = arith.index_cast %c6_i32 : i32 to index
    %c0_61 = arith.constant 0 : index
    %c0_62 = arith.constant 0 : index
    %219 = vector.load %arg19[%218, %c0_61, %c0_62] : memref<8x8x512xf32, #tpu.memory_space<vmem>>, vector<1x8x512xf32>
    %220 = vector.shape_cast %219 : vector<1x8x512xf32> to vector<8x512xf32>
    %221 = arith.truncf %209 : vector<8x128xf32> to vector<8x128xbf16>
    %cst_63 = arith.constant dense<0.000000e+00> : vector<8x512xf32>
    %222 = tpu.matmul %221, %12, %cst_63 {dimension_numbers = #tpu.dot_dimension_numbers<[1], [0], [0], [1], [0, 0, 1, 1], [], []>} : vector<8x128xbf16>, vector<128x512xbf16>, vector<8x512xf32> -> vector<8x512xf32>
    %223 = arith.addf %220, %222 : vector<8x512xf32>
    %224 = vector.extract_strided_slice %223 {offsets = [0, 0], sizes = [8, 384], strides = [1, 1]} : vector<8x512xf32> to vector<8x384xf32>
    %225 = arith.negf %224 : vector<8x384xf32>
    %226 = math.exp %225 : vector<8x384xf32>
    %cst_64 = arith.constant 1.000000e+00 : f32
    %227 = vector.broadcast %cst_64 : f32 to vector<8x384xf32>
    %228 = arith.addf %227, %226 : vector<8x384xf32>
    %229 = arith.divf %227, %228 : vector<8x384xf32>
    %230 = vector.extract_strided_slice %223 {offsets = [0, 384], sizes = [8, 128], strides = [1, 1]} : vector<8x512xf32> to vector<8x128xf32>
    %231 = math.tanh %230 : vector<8x128xf32>
    %232 = vector.extract_strided_slice %229 {offsets = [0, 0], sizes = [8, 128], strides = [1, 1]} : vector<8x384xf32> to vector<8x128xf32>
    %233 = vector.extract_strided_slice %229 {offsets = [0, 128], sizes = [8, 128], strides = [1, 1]} : vector<8x384xf32> to vector<8x128xf32>
    %234 = vector.extract_strided_slice %229 {offsets = [0, 256], sizes = [8, 128], strides = [1, 1]} : vector<8x384xf32> to vector<8x128xf32>
    %235 = arith.mulf %233, %212 : vector<8x128xf32>
    %236 = arith.mulf %232, %231 : vector<8x128xf32>
    %237 = arith.addf %235, %236 : vector<8x128xf32>
    %238 = math.tanh %237 : vector<8x128xf32>
    %239 = arith.mulf %234, %238 : vector<8x128xf32>
    %240 = vector.shape_cast %217 : vector<8x1xi1> to vector<8x1xi1>
    %241 = vector.broadcast %240 : vector<8x1xi1> to vector<8x128xi1>
    %242 = arith.select %241, %239, %209 : vector<8x128xi1>, vector<8x128xf32>
    %243 = vector.shape_cast %217 : vector<8x1xi1> to vector<8x1xi1>
    %244 = vector.broadcast %243 : vector<8x1xi1> to vector<8x128xi1>
    %245 = arith.select %244, %237, %212 : vector<8x128xi1>, vector<8x128xf32>
    %c7_i32 = arith.constant 7 : i32
    %246 = arith.index_cast %c7_i32 : i32 to index
    %c0_65 = arith.constant 0 : index
    %c0_66 = arith.constant 0 : index
    %247 = vector.load %arg1[%246, %c0_65, %c0_66] : memref<8x8x1xf32, #tpu.memory_space<vmem>>, vector<1x8x1xf32>
    %248 = vector.shape_cast %247 : vector<1x8x1xf32> to vector<8x1xf32>
    %cst_67 = arith.constant 0.000000e+00 : f32
    %249 = vector.broadcast %cst_67 : f32 to vector<8x1xf32>
    %250 = arith.cmpf ogt, %248, %249 : vector<8x1xf32>
    %251 = arith.index_cast %c7_i32 : i32 to index
    %c0_68 = arith.constant 0 : index
    %c0_69 = arith.constant 0 : index
    %252 = vector.load %arg19[%251, %c0_68, %c0_69] : memref<8x8x512xf32, #tpu.memory_space<vmem>>, vector<1x8x512xf32>
    %253 = vector.shape_cast %252 : vector<1x8x512xf32> to vector<8x512xf32>
    %254 = arith.truncf %242 : vector<8x128xf32> to vector<8x128xbf16>
    %cst_70 = arith.constant dense<0.000000e+00> : vector<8x512xf32>
    %255 = tpu.matmul %254, %12, %cst_70 {dimension_numbers = #tpu.dot_dimension_numbers<[1], [0], [0], [1], [0, 0, 1, 1], [], []>} : vector<8x128xbf16>, vector<128x512xbf16>, vector<8x512xf32> -> vector<8x512xf32>
    %256 = arith.addf %253, %255 : vector<8x512xf32>
    %257 = vector.extract_strided_slice %256 {offsets = [0, 0], sizes = [8, 384], strides = [1, 1]} : vector<8x512xf32> to vector<8x384xf32>
    %258 = arith.negf %257 : vector<8x384xf32>
    %259 = math.exp %258 : vector<8x384xf32>
    %cst_71 = arith.constant 1.000000e+00 : f32
    %260 = vector.broadcast %cst_71 : f32 to vector<8x384xf32>
    %261 = arith.addf %260, %259 : vector<8x384xf32>
    %262 = arith.divf %260, %261 : vector<8x384xf32>
    %263 = vector.extract_strided_slice %256 {offsets = [0, 384], sizes = [8, 128], strides = [1, 1]} : vector<8x512xf32> to vector<8x128xf32>
    %264 = math.tanh %263 : vector<8x128xf32>
    %265 = vector.extract_strided_slice %262 {offsets = [0, 0], sizes = [8, 128], strides = [1, 1]} : vector<8x384xf32> to vector<8x128xf32>
    %266 = vector.extract_strided_slice %262 {offsets = [0, 128], sizes = [8, 128], strides = [1, 1]} : vector<8x384xf32> to vector<8x128xf32>
    %267 = vector.extract_strided_slice %262 {offsets = [0, 256], sizes = [8, 128], strides = [1, 1]} : vector<8x384xf32> to vector<8x128xf32>
    %268 = arith.mulf %266, %245 : vector<8x128xf32>
    %269 = arith.mulf %265, %264 : vector<8x128xf32>
    %270 = arith.addf %268, %269 : vector<8x128xf32>
    %271 = math.tanh %270 : vector<8x128xf32>
    %272 = arith.mulf %267, %271 : vector<8x128xf32>
    %273 = vector.shape_cast %250 : vector<8x1xi1> to vector<8x1xi1>
    %274 = vector.broadcast %273 : vector<8x1xi1> to vector<8x128xi1>
    %275 = arith.select %274, %272, %242 : vector<8x128xi1>, vector<8x128xf32>
    %276 = vector.shape_cast %250 : vector<8x1xi1> to vector<8x1xi1>
    %277 = vector.broadcast %276 : vector<8x1xi1> to vector<8x128xi1>
    %278 = arith.select %277, %270, %245 : vector<8x128xi1>, vector<8x128xf32>
    %c8_i32 = arith.constant 8 : i32
    %c0_72 = arith.constant 0 : index
    %c0_73 = arith.constant 0 : index
    %279 = vector.load %arg7[%c0_72, %c0_73] : memref<128x256xf32, #tpu.memory_space<vmem>>, vector<128x256xf32>
    %cst_74 = arith.constant dense<0.000000e+00> : vector<8x256xf32>
    %280 = tpu.matmul %275, %279, %cst_74 {dimension_numbers = #tpu.dot_dimension_numbers<[1], [0], [0], [1], [0, 0, 1, 1], [], []>} : vector<8x128xf32>, vector<128x256xf32>, vector<8x256xf32> -> vector<8x256xf32>
    %c0_75 = arith.constant 0 : index
    %c0_76 = arith.constant 0 : index
    %281 = vector.load %arg8[%c0_75, %c0_76] : memref<1x256xf32, #tpu.memory_space<vmem>>, vector<1x256xf32>
    %282 = vector.broadcast %281 : vector<1x256xf32> to vector<8x256xf32>
    %283 = arith.addf %280, %282 : vector<8x256xf32>
    %284 = vector.extract_strided_slice %283 {offsets = [0, 0], sizes = [8, 128], strides = [1, 1]} : vector<8x256xf32> to vector<8x128xf32>
    %285 = vector.extract_strided_slice %283 {offsets = [0, 128], sizes = [8, 128], strides = [1, 1]} : vector<8x256xf32> to vector<8x128xf32>
    %cst_77 = arith.constant 5.000000e-01 : f32
    %286 = vector.broadcast %cst_77 : f32 to vector<8x128xf32>
    %287 = arith.mulf %285, %286 : vector<8x128xf32>
    %288 = math.exp %287 : vector<8x128xf32>
    %c0_78 = arith.constant 0 : index
    %c0_79 = arith.constant 0 : index
    %289 = vector.load %arg2[%c0_78, %c0_79] : memref<8x128xf32, #tpu.memory_space<vmem>>, vector<8x128xf32>
    %290 = arith.mulf %288, %289 : vector<8x128xf32>
    %291 = arith.addf %284, %290 : vector<8x128xf32>
    %c0_80 = arith.constant 0 : index
    %c0_81 = arith.constant 0 : index
    %292 = vector.load %arg16[%c0_80, %c0_81] : memref<8x128xf32, #tpu.memory_space<vmem>>, vector<8x128xf32>
    tpu.vector_store %arg16[%c0_80, %c0_81], %284 {strides = array<i32>} : memref<8x128xf32, #tpu.memory_space<vmem>>, vector<8x128xf32>,
    %c0_82 = arith.constant 0 : index
    %c0_83 = arith.constant 0 : index
    %293 = vector.load %arg17[%c0_82, %c0_83] : memref<8x128xf32, #tpu.memory_space<vmem>>, vector<8x128xf32>
    tpu.vector_store %arg17[%c0_82, %c0_83], %285 {strides = array<i32>} : memref<8x128xf32, #tpu.memory_space<vmem>>, vector<8x128xf32>,
    %c0_84 = arith.constant 0 : index
    %c0_85 = arith.constant 0 : index
    %294 = vector.load %arg18[%c0_84, %c0_85] : memref<8x128xf32, #tpu.memory_space<vmem>>, vector<8x128xf32>
    tpu.vector_store %arg18[%c0_84, %c0_85], %291 {strides = array<i32>} : memref<8x128xf32, #tpu.memory_space<vmem>>, vector<8x128xf32>,
    %c0_86 = arith.constant 0 : index
    %c0_87 = arith.constant 0 : index
    %295 = vector.load %arg9[%c0_86, %c0_87] : memref<128x128xf32, #tpu.memory_space<vmem>>, vector<128x128xf32>
    %cst_88 = arith.constant dense<0.000000e+00> : vector<8x128xf32>
    %296 = tpu.matmul %291, %295, %cst_88 {dimension_numbers = #tpu.dot_dimension_numbers<[1], [0], [0], [1], [0, 0, 1, 1], [], []>} : vector<8x128xf32>, vector<128x128xf32>, vector<8x128xf32> -> vector<8x128xf32>
    %c0_89 = arith.constant 0 : index
    %c0_90 = arith.constant 0 : index
    %297 = vector.load %arg10[%c0_89, %c0_90] : memref<1x128xf32, #tpu.memory_space<vmem>>, vector<1x128xf32>
    %298 = vector.broadcast %297 : vector<1x128xf32> to vector<8x128xf32>
    %299 = arith.addf %296, %298 : vector<8x128xf32>
    %c0_91 = arith.constant 0 : index
    %c0_92 = arith.constant 0 : index
    %300 = vector.load %arg11[%c0_91, %c0_92] : memref<128x128xf32, #tpu.memory_space<vmem>>, vector<128x128xf32>
    %cst_93 = arith.constant dense<0.000000e+00> : vector<8x128xf32>
    %301 = tpu.matmul %291, %300, %cst_93 {dimension_numbers = #tpu.dot_dimension_numbers<[1], [0], [0], [1], [0, 0, 1, 1], [], []>} : vector<8x128xf32>, vector<128x128xf32>, vector<8x128xf32> -> vector<8x128xf32>
    %c0_94 = arith.constant 0 : index
    %c0_95 = arith.constant 0 : index
    %302 = vector.load %arg12[%c0_94, %c0_95] : memref<1x128xf32, #tpu.memory_space<vmem>>, vector<1x128xf32>
    %303 = vector.broadcast %302 : vector<1x128xf32> to vector<8x128xf32>
    %304 = arith.addf %301, %303 : vector<8x128xf32>
    %c0_i32_96 = arith.constant 0 : i32
    %305 = arith.index_cast %c0_i32_96 : i32 to index
    %c0_97 = arith.constant 0 : index
    %c0_98 = arith.constant 0 : index
    %306 = vector.load %arg1[%305, %c0_97, %c0_98] : memref<8x8x1xf32, #tpu.memory_space<vmem>>, vector<1x8x1xf32>
    %307 = vector.shape_cast %306 : vector<1x8x1xf32> to vector<8x1xf32>
    %cst_99 = arith.constant 0.000000e+00 : f32
    %308 = vector.broadcast %cst_99 : f32 to vector<8x1xf32>
    %309 = arith.cmpf ogt, %307, %308 : vector<8x1xf32>
    %310 = arith.index_cast %c0_i32_96 : i32 to index
    %c0_100 = arith.constant 0 : index
    %c0_101 = arith.constant 0 : index
    %311 = vector.load %arg20[%310, %c0_100, %c0_101] : memref<8x8x512xf32, #tpu.memory_space<vmem>>, vector<1x8x512xf32>
    %312 = vector.shape_cast %311 : vector<1x8x512xf32> to vector<8x512xf32>
    %313 = arith.truncf %299 : vector<8x128xf32> to vector<8x128xbf16>
    %cst_102 = arith.constant dense<0.000000e+00> : vector<8x512xf32>
    %314 = tpu.matmul %313, %13, %cst_102 {dimension_numbers = #tpu.dot_dimension_numbers<[1], [0], [0], [1], [0, 0, 1, 1], [], []>} : vector<8x128xbf16>, vector<128x512xbf16>, vector<8x512xf32> -> vector<8x512xf32>
    %315 = arith.addf %312, %314 : vector<8x512xf32>
    %316 = vector.extract_strided_slice %315 {offsets = [0, 0], sizes = [8, 384], strides = [1, 1]} : vector<8x512xf32> to vector<8x384xf32>
    %317 = arith.negf %316 : vector<8x384xf32>
    %318 = math.exp %317 : vector<8x384xf32>
    %cst_103 = arith.constant 1.000000e+00 : f32
    %319 = vector.broadcast %cst_103 : f32 to vector<8x384xf32>
    %320 = arith.addf %319, %318 : vector<8x384xf32>
    %321 = arith.divf %319, %320 : vector<8x384xf32>
    %322 = vector.extract_strided_slice %315 {offsets = [0, 384], sizes = [8, 128], strides = [1, 1]} : vector<8x512xf32> to vector<8x128xf32>
    %323 = math.tanh %322 : vector<8x128xf32>
    %324 = vector.extract_strided_slice %321 {offsets = [0, 0], sizes = [8, 128], strides = [1, 1]} : vector<8x384xf32> to vector<8x128xf32>
    %325 = vector.extract_strided_slice %321 {offsets = [0, 128], sizes = [8, 128], strides = [1, 1]} : vector<8x384xf32> to vector<8x128xf32>
    %326 = vector.extract_strided_slice %321 {offsets = [0, 256], sizes = [8, 128], strides = [1, 1]} : vector<8x384xf32> to vector<8x128xf32>
    %327 = arith.mulf %325, %304 : vector<8x128xf32>
    %328 = arith.mulf %324, %323 : vector<8x128xf32>
    %329 = arith.addf %327, %328 : vector<8x128xf32>
    %330 = math.tanh %329 : vector<8x128xf32>
    %331 = arith.mulf %326, %330 : vector<8x128xf32>
    %cst_104 = arith.constant 0.000000e+00 : f32
    %332 = vector.shape_cast %309 : vector<8x1xi1> to vector<8x1xi1>
    %333 = vector.broadcast %332 : vector<8x1xi1> to vector<8x128xi1>
    %334 = vector.broadcast %cst_104 : f32 to vector<8x128xf32>
    %335 = arith.select %333, %331, %334 : vector<8x128xi1>, vector<8x128xf32>
    %336 = arith.index_cast %c0_i32_96 : i32 to index
    %c0_105 = arith.constant 0 : index
    %c0_106 = arith.constant 0 : index
    %337 = vector.load %arg21[%336, %c0_105, %c0_106] : memref<8x8x128xf32, #tpu.memory_space<vmem>>, vector<1x8x128xf32>
    %338 = vector.shape_cast %337 : vector<1x8x128xf32> to vector<8x128xf32>
    %339 = vector.shape_cast %335 : vector<8x128xf32> to vector<1x8x128xf32>
    tpu.vector_store %arg21[%336, %c0_105, %c0_106], %339 {strides = array<i32>} : memref<8x8x128xf32, #tpu.memory_space<vmem>>, vector<1x8x128xf32>,
    %340 = vector.shape_cast %309 : vector<8x1xi1> to vector<8x1xi1>
    %341 = vector.broadcast %340 : vector<8x1xi1> to vector<8x128xi1>
    %342 = arith.select %341, %331, %299 : vector<8x128xi1>, vector<8x128xf32>
    %343 = vector.shape_cast %309 : vector<8x1xi1> to vector<8x1xi1>
    %344 = vector.broadcast %343 : vector<8x1xi1> to vector<8x128xi1>
    %345 = arith.select %344, %329, %304 : vector<8x128xi1>, vector<8x128xf32>
    %c1_i32_107 = arith.constant 1 : i32
    %346 = arith.index_cast %c1_i32_107 : i32 to index
    %c0_108 = arith.constant 0 : index
    %c0_109 = arith.constant 0 : index
    %347 = vector.load %arg1[%346, %c0_108, %c0_109] : memref<8x8x1xf32, #tpu.memory_space<vmem>>, vector<1x8x1xf32>
    %348 = vector.shape_cast %347 : vector<1x8x1xf32> to vector<8x1xf32>
    %cst_110 = arith.constant 0.000000e+00 : f32
    %349 = vector.broadcast %cst_110 : f32 to vector<8x1xf32>
    %350 = arith.cmpf ogt, %348, %349 : vector<8x1xf32>
    %351 = arith.index_cast %c1_i32_107 : i32 to index
    %c0_111 = arith.constant 0 : index
    %c0_112 = arith.constant 0 : index
    %352 = vector.load %arg20[%351, %c0_111, %c0_112] : memref<8x8x512xf32, #tpu.memory_space<vmem>>, vector<1x8x512xf32>
    %353 = vector.shape_cast %352 : vector<1x8x512xf32> to vector<8x512xf32>
    %354 = arith.truncf %342 : vector<8x128xf32> to vector<8x128xbf16>
    %cst_113 = arith.constant dense<0.000000e+00> : vector<8x512xf32>
    %355 = tpu.matmul %354, %13, %cst_113 {dimension_numbers = #tpu.dot_dimension_numbers<[1], [0], [0], [1], [0, 0, 1, 1], [], []>} : vector<8x128xbf16>, vector<128x512xbf16>, vector<8x512xf32> -> vector<8x512xf32>
    %356 = arith.addf %353, %355 : vector<8x512xf32>
    %357 = vector.extract_strided_slice %356 {offsets = [0, 0], sizes = [8, 384], strides = [1, 1]} : vector<8x512xf32> to vector<8x384xf32>
    %358 = arith.negf %357 : vector<8x384xf32>
    %359 = math.exp %358 : vector<8x384xf32>
    %cst_114 = arith.constant 1.000000e+00 : f32
    %360 = vector.broadcast %cst_114 : f32 to vector<8x384xf32>
    %361 = arith.addf %360, %359 : vector<8x384xf32>
    %362 = arith.divf %360, %361 : vector<8x384xf32>
    %363 = vector.extract_strided_slice %356 {offsets = [0, 384], sizes = [8, 128], strides = [1, 1]} : vector<8x512xf32> to vector<8x128xf32>
    %364 = math.tanh %363 : vector<8x128xf32>
    %365 = vector.extract_strided_slice %362 {offsets = [0, 0], sizes = [8, 128], strides = [1, 1]} : vector<8x384xf32> to vector<8x128xf32>
    %366 = vector.extract_strided_slice %362 {offsets = [0, 128], sizes = [8, 128], strides = [1, 1]} : vector<8x384xf32> to vector<8x128xf32>
    %367 = vector.extract_strided_slice %362 {offsets = [0, 256], sizes = [8, 128], strides = [1, 1]} : vector<8x384xf32> to vector<8x128xf32>
    %368 = arith.mulf %366, %345 : vector<8x128xf32>
    %369 = arith.mulf %365, %364 : vector<8x128xf32>
    %370 = arith.addf %368, %369 : vector<8x128xf32>
    %371 = math.tanh %370 : vector<8x128xf32>
    %372 = arith.mulf %367, %371 : vector<8x128xf32>
    %cst_115 = arith.constant 0.000000e+00 : f32
    %373 = vector.shape_cast %350 : vector<8x1xi1> to vector<8x1xi1>
    %374 = vector.broadcast %373 : vector<8x1xi1> to vector<8x128xi1>
    %375 = vector.broadcast %cst_115 : f32 to vector<8x128xf32>
    %376 = arith.select %374, %372, %375 : vector<8x128xi1>, vector<8x128xf32>
    %377 = arith.index_cast %c1_i32_107 : i32 to index
    %c0_116 = arith.constant 0 : index
    %c0_117 = arith.constant 0 : index
    %378 = vector.load %arg21[%377, %c0_116, %c0_117] : memref<8x8x128xf32, #tpu.memory_space<vmem>>, vector<1x8x128xf32>
    %379 = vector.shape_cast %378 : vector<1x8x128xf32> to vector<8x128xf32>
    %380 = vector.shape_cast %376 : vector<8x128xf32> to vector<1x8x128xf32>
    tpu.vector_store %arg21[%377, %c0_116, %c0_117], %380 {strides = array<i32>} : memref<8x8x128xf32, #tpu.memory_space<vmem>>, vector<1x8x128xf32>,
    %381 = vector.shape_cast %350 : vector<8x1xi1> to vector<8x1xi1>
    %382 = vector.broadcast %381 : vector<8x1xi1> to vector<8x128xi1>
    %383 = arith.select %382, %372, %342 : vector<8x128xi1>, vector<8x128xf32>
    %384 = vector.shape_cast %350 : vector<8x1xi1> to vector<8x1xi1>
    %385 = vector.broadcast %384 : vector<8x1xi1> to vector<8x128xi1>
    %386 = arith.select %385, %370, %345 : vector<8x128xi1>, vector<8x128xf32>
    %c2_i32_118 = arith.constant 2 : i32
    %387 = arith.index_cast %c2_i32_118 : i32 to index
    %c0_119 = arith.constant 0 : index
    %c0_120 = arith.constant 0 : index
    %388 = vector.load %arg1[%387, %c0_119, %c0_120] : memref<8x8x1xf32, #tpu.memory_space<vmem>>, vector<1x8x1xf32>
    %389 = vector.shape_cast %388 : vector<1x8x1xf32> to vector<8x1xf32>
    %cst_121 = arith.constant 0.000000e+00 : f32
    %390 = vector.broadcast %cst_121 : f32 to vector<8x1xf32>
    %391 = arith.cmpf ogt, %389, %390 : vector<8x1xf32>
    %392 = arith.index_cast %c2_i32_118 : i32 to index
    %c0_122 = arith.constant 0 : index
    %c0_123 = arith.constant 0 : index
    %393 = vector.load %arg20[%392, %c0_122, %c0_123] : memref<8x8x512xf32, #tpu.memory_space<vmem>>, vector<1x8x512xf32>
    %394 = vector.shape_cast %393 : vector<1x8x512xf32> to vector<8x512xf32>
    %395 = arith.truncf %383 : vector<8x128xf32> to vector<8x128xbf16>
    %cst_124 = arith.constant dense<0.000000e+00> : vector<8x512xf32>
    %396 = tpu.matmul %395, %13, %cst_124 {dimension_numbers = #tpu.dot_dimension_numbers<[1], [0], [0], [1], [0, 0, 1, 1], [], []>} : vector<8x128xbf16>, vector<128x512xbf16>, vector<8x512xf32> -> vector<8x512xf32>
    %397 = arith.addf %394, %396 : vector<8x512xf32>
    %398 = vector.extract_strided_slice %397 {offsets = [0, 0], sizes = [8, 384], strides = [1, 1]} : vector<8x512xf32> to vector<8x384xf32>
    %399 = arith.negf %398 : vector<8x384xf32>
    %400 = math.exp %399 : vector<8x384xf32>
    %cst_125 = arith.constant 1.000000e+00 : f32
    %401 = vector.broadcast %cst_125 : f32 to vector<8x384xf32>
    %402 = arith.addf %401, %400 : vector<8x384xf32>
    %403 = arith.divf %401, %402 : vector<8x384xf32>
    %404 = vector.extract_strided_slice %397 {offsets = [0, 384], sizes = [8, 128], strides = [1, 1]} : vector<8x512xf32> to vector<8x128xf32>
    %405 = math.tanh %404 : vector<8x128xf32>
    %406 = vector.extract_strided_slice %403 {offsets = [0, 0], sizes = [8, 128], strides = [1, 1]} : vector<8x384xf32> to vector<8x128xf32>
    %407 = vector.extract_strided_slice %403 {offsets = [0, 128], sizes = [8, 128], strides = [1, 1]} : vector<8x384xf32> to vector<8x128xf32>
    %408 = vector.extract_strided_slice %403 {offsets = [0, 256], sizes = [8, 128], strides = [1, 1]} : vector<8x384xf32> to vector<8x128xf32>
    %409 = arith.mulf %407, %386 : vector<8x128xf32>
    %410 = arith.mulf %406, %405 : vector<8x128xf32>
    %411 = arith.addf %409, %410 : vector<8x128xf32>
    %412 = math.tanh %411 : vector<8x128xf32>
    %413 = arith.mulf %408, %412 : vector<8x128xf32>
    %cst_126 = arith.constant 0.000000e+00 : f32
    %414 = vector.shape_cast %391 : vector<8x1xi1> to vector<8x1xi1>
    %415 = vector.broadcast %414 : vector<8x1xi1> to vector<8x128xi1>
    %416 = vector.broadcast %cst_126 : f32 to vector<8x128xf32>
    %417 = arith.select %415, %413, %416 : vector<8x128xi1>, vector<8x128xf32>
    %418 = arith.index_cast %c2_i32_118 : i32 to index
    %c0_127 = arith.constant 0 : index
    %c0_128 = arith.constant 0 : index
    %419 = vector.load %arg21[%418, %c0_127, %c0_128] : memref<8x8x128xf32, #tpu.memory_space<vmem>>, vector<1x8x128xf32>
    %420 = vector.shape_cast %419 : vector<1x8x128xf32> to vector<8x128xf32>
    %421 = vector.shape_cast %417 : vector<8x128xf32> to vector<1x8x128xf32>
    tpu.vector_store %arg21[%418, %c0_127, %c0_128], %421 {strides = array<i32>} : memref<8x8x128xf32, #tpu.memory_space<vmem>>, vector<1x8x128xf32>,
    %422 = vector.shape_cast %391 : vector<8x1xi1> to vector<8x1xi1>
    %423 = vector.broadcast %422 : vector<8x1xi1> to vector<8x128xi1>
    %424 = arith.select %423, %413, %383 : vector<8x128xi1>, vector<8x128xf32>
    %425 = vector.shape_cast %391 : vector<8x1xi1> to vector<8x1xi1>
    %426 = vector.broadcast %425 : vector<8x1xi1> to vector<8x128xi1>
    %427 = arith.select %426, %411, %386 : vector<8x128xi1>, vector<8x128xf32>
    %c3_i32_129 = arith.constant 3 : i32
    %428 = arith.index_cast %c3_i32_129 : i32 to index
    %c0_130 = arith.constant 0 : index
    %c0_131 = arith.constant 0 : index
    %429 = vector.load %arg1[%428, %c0_130, %c0_131] : memref<8x8x1xf32, #tpu.memory_space<vmem>>, vector<1x8x1xf32>
    %430 = vector.shape_cast %429 : vector<1x8x1xf32> to vector<8x1xf32>
    %cst_132 = arith.constant 0.000000e+00 : f32
    %431 = vector.broadcast %cst_132 : f32 to vector<8x1xf32>
    %432 = arith.cmpf ogt, %430, %431 : vector<8x1xf32>
    %433 = arith.index_cast %c3_i32_129 : i32 to index
    %c0_133 = arith.constant 0 : index
    %c0_134 = arith.constant 0 : index
    %434 = vector.load %arg20[%433, %c0_133, %c0_134] : memref<8x8x512xf32, #tpu.memory_space<vmem>>, vector<1x8x512xf32>
    %435 = vector.shape_cast %434 : vector<1x8x512xf32> to vector<8x512xf32>
    %436 = arith.truncf %424 : vector<8x128xf32> to vector<8x128xbf16>
    %cst_135 = arith.constant dense<0.000000e+00> : vector<8x512xf32>
    %437 = tpu.matmul %436, %13, %cst_135 {dimension_numbers = #tpu.dot_dimension_numbers<[1], [0], [0], [1], [0, 0, 1, 1], [], []>} : vector<8x128xbf16>, vector<128x512xbf16>, vector<8x512xf32> -> vector<8x512xf32>
    %438 = arith.addf %435, %437 : vector<8x512xf32>
    %439 = vector.extract_strided_slice %438 {offsets = [0, 0], sizes = [8, 384], strides = [1, 1]} : vector<8x512xf32> to vector<8x384xf32>
    %440 = arith.negf %439 : vector<8x384xf32>
    %441 = math.exp %440 : vector<8x384xf32>
    %cst_136 = arith.constant 1.000000e+00 : f32
    %442 = vector.broadcast %cst_136 : f32 to vector<8x384xf32>
    %443 = arith.addf %442, %441 : vector<8x384xf32>
    %444 = arith.divf %442, %443 : vector<8x384xf32>
    %445 = vector.extract_strided_slice %438 {offsets = [0, 384], sizes = [8, 128], strides = [1, 1]} : vector<8x512xf32> to vector<8x128xf32>
    %446 = math.tanh %445 : vector<8x128xf32>
    %447 = vector.extract_strided_slice %444 {offsets = [0, 0], sizes = [8, 128], strides = [1, 1]} : vector<8x384xf32> to vector<8x128xf32>
    %448 = vector.extract_strided_slice %444 {offsets = [0, 128], sizes = [8, 128], strides = [1, 1]} : vector<8x384xf32> to vector<8x128xf32>
    %449 = vector.extract_strided_slice %444 {offsets = [0, 256], sizes = [8, 128], strides = [1, 1]} : vector<8x384xf32> to vector<8x128xf32>
    %450 = arith.mulf %448, %427 : vector<8x128xf32>
    %451 = arith.mulf %447, %446 : vector<8x128xf32>
    %452 = arith.addf %450, %451 : vector<8x128xf32>
    %453 = math.tanh %452 : vector<8x128xf32>
    %454 = arith.mulf %449, %453 : vector<8x128xf32>
    %cst_137 = arith.constant 0.000000e+00 : f32
    %455 = vector.shape_cast %432 : vector<8x1xi1> to vector<8x1xi1>
    %456 = vector.broadcast %455 : vector<8x1xi1> to vector<8x128xi1>
    %457 = vector.broadcast %cst_137 : f32 to vector<8x128xf32>
    %458 = arith.select %456, %454, %457 : vector<8x128xi1>, vector<8x128xf32>
    %459 = arith.index_cast %c3_i32_129 : i32 to index
    %c0_138 = arith.constant 0 : index
    %c0_139 = arith.constant 0 : index
    %460 = vector.load %arg21[%459, %c0_138, %c0_139] : memref<8x8x128xf32, #tpu.memory_space<vmem>>, vector<1x8x128xf32>
    %461 = vector.shape_cast %460 : vector<1x8x128xf32> to vector<8x128xf32>
    %462 = vector.shape_cast %458 : vector<8x128xf32> to vector<1x8x128xf32>
    tpu.vector_store %arg21[%459, %c0_138, %c0_139], %462 {strides = array<i32>} : memref<8x8x128xf32, #tpu.memory_space<vmem>>, vector<1x8x128xf32>,
    %463 = vector.shape_cast %432 : vector<8x1xi1> to vector<8x1xi1>
    %464 = vector.broadcast %463 : vector<8x1xi1> to vector<8x128xi1>
    %465 = arith.select %464, %454, %424 : vector<8x128xi1>, vector<8x128xf32>
    %466 = vector.shape_cast %432 : vector<8x1xi1> to vector<8x1xi1>
    %467 = vector.broadcast %466 : vector<8x1xi1> to vector<8x128xi1>
    %468 = arith.select %467, %452, %427 : vector<8x128xi1>, vector<8x128xf32>
    %c4_i32_140 = arith.constant 4 : i32
    %469 = arith.index_cast %c4_i32_140 : i32 to index
    %c0_141 = arith.constant 0 : index
    %c0_142 = arith.constant 0 : index
    %470 = vector.load %arg1[%469, %c0_141, %c0_142] : memref<8x8x1xf32, #tpu.memory_space<vmem>>, vector<1x8x1xf32>
    %471 = vector.shape_cast %470 : vector<1x8x1xf32> to vector<8x1xf32>
    %cst_143 = arith.constant 0.000000e+00 : f32
    %472 = vector.broadcast %cst_143 : f32 to vector<8x1xf32>
    %473 = arith.cmpf ogt, %471, %472 : vector<8x1xf32>
    %474 = arith.index_cast %c4_i32_140 : i32 to index
    %c0_144 = arith.constant 0 : index
    %c0_145 = arith.constant 0 : index
    %475 = vector.load %arg20[%474, %c0_144, %c0_145] : memref<8x8x512xf32, #tpu.memory_space<vmem>>, vector<1x8x512xf32>
    %476 = vector.shape_cast %475 : vector<1x8x512xf32> to vector<8x512xf32>
    %477 = arith.truncf %465 : vector<8x128xf32> to vector<8x128xbf16>
    %cst_146 = arith.constant dense<0.000000e+00> : vector<8x512xf32>
    %478 = tpu.matmul %477, %13, %cst_146 {dimension_numbers = #tpu.dot_dimension_numbers<[1], [0], [0], [1], [0, 0, 1, 1], [], []>} : vector<8x128xbf16>, vector<128x512xbf16>, vector<8x512xf32> -> vector<8x512xf32>
    %479 = arith.addf %476, %478 : vector<8x512xf32>
    %480 = vector.extract_strided_slice %479 {offsets = [0, 0], sizes = [8, 384], strides = [1, 1]} : vector<8x512xf32> to vector<8x384xf32>
    %481 = arith.negf %480 : vector<8x384xf32>
    %482 = math.exp %481 : vector<8x384xf32>
    %cst_147 = arith.constant 1.000000e+00 : f32
    %483 = vector.broadcast %cst_147 : f32 to vector<8x384xf32>
    %484 = arith.addf %483, %482 : vector<8x384xf32>
    %485 = arith.divf %483, %484 : vector<8x384xf32>
    %486 = vector.extract_strided_slice %479 {offsets = [0, 384], sizes = [8, 128], strides = [1, 1]} : vector<8x512xf32> to vector<8x128xf32>
    %487 = math.tanh %486 : vector<8x128xf32>
    %488 = vector.extract_strided_slice %485 {offsets = [0, 0], sizes = [8, 128], strides = [1, 1]} : vector<8x384xf32> to vector<8x128xf32>
    %489 = vector.extract_strided_slice %485 {offsets = [0, 128], sizes = [8, 128], strides = [1, 1]} : vector<8x384xf32> to vector<8x128xf32>
    %490 = vector.extract_strided_slice %485 {offsets = [0, 256], sizes = [8, 128], strides = [1, 1]} : vector<8x384xf32> to vector<8x128xf32>
    %491 = arith.mulf %489, %468 : vector<8x128xf32>
    %492 = arith.mulf %488, %487 : vector<8x128xf32>
    %493 = arith.addf %491, %492 : vector<8x128xf32>
    %494 = math.tanh %493 : vector<8x128xf32>
    %495 = arith.mulf %490, %494 : vector<8x128xf32>
    %cst_148 = arith.constant 0.000000e+00 : f32
    %496 = vector.shape_cast %473 : vector<8x1xi1> to vector<8x1xi1>
    %497 = vector.broadcast %496 : vector<8x1xi1> to vector<8x128xi1>
    %498 = vector.broadcast %cst_148 : f32 to vector<8x128xf32>
    %499 = arith.select %497, %495, %498 : vector<8x128xi1>, vector<8x128xf32>
    %500 = arith.index_cast %c4_i32_140 : i32 to index
    %c0_149 = arith.constant 0 : index
    %c0_150 = arith.constant 0 : index
    %501 = vector.load %arg21[%500, %c0_149, %c0_150] : memref<8x8x128xf32, #tpu.memory_space<vmem>>, vector<1x8x128xf32>
    %502 = vector.shape_cast %501 : vector<1x8x128xf32> to vector<8x128xf32>
    %503 = vector.shape_cast %499 : vector<8x128xf32> to vector<1x8x128xf32>
    tpu.vector_store %arg21[%500, %c0_149, %c0_150], %503 {strides = array<i32>} : memref<8x8x128xf32, #tpu.memory_space<vmem>>, vector<1x8x128xf32>,
    %504 = vector.shape_cast %473 : vector<8x1xi1> to vector<8x1xi1>
    %505 = vector.broadcast %504 : vector<8x1xi1> to vector<8x128xi1>
    %506 = arith.select %505, %495, %465 : vector<8x128xi1>, vector<8x128xf32>
    %507 = vector.shape_cast %473 : vector<8x1xi1> to vector<8x1xi1>
    %508 = vector.broadcast %507 : vector<8x1xi1> to vector<8x128xi1>
    %509 = arith.select %508, %493, %468 : vector<8x128xi1>, vector<8x128xf32>
    %c5_i32_151 = arith.constant 5 : i32
    %510 = arith.index_cast %c5_i32_151 : i32 to index
    %c0_152 = arith.constant 0 : index
    %c0_153 = arith.constant 0 : index
    %511 = vector.load %arg1[%510, %c0_152, %c0_153] : memref<8x8x1xf32, #tpu.memory_space<vmem>>, vector<1x8x1xf32>
    %512 = vector.shape_cast %511 : vector<1x8x1xf32> to vector<8x1xf32>
    %cst_154 = arith.constant 0.000000e+00 : f32
    %513 = vector.broadcast %cst_154 : f32 to vector<8x1xf32>
    %514 = arith.cmpf ogt, %512, %513 : vector<8x1xf32>
    %515 = arith.index_cast %c5_i32_151 : i32 to index
    %c0_155 = arith.constant 0 : index
    %c0_156 = arith.constant 0 : index
    %516 = vector.load %arg20[%515, %c0_155, %c0_156] : memref<8x8x512xf32, #tpu.memory_space<vmem>>, vector<1x8x512xf32>
    %517 = vector.shape_cast %516 : vector<1x8x512xf32> to vector<8x512xf32>
    %518 = arith.truncf %506 : vector<8x128xf32> to vector<8x128xbf16>
    %cst_157 = arith.constant dense<0.000000e+00> : vector<8x512xf32>
    %519 = tpu.matmul %518, %13, %cst_157 {dimension_numbers = #tpu.dot_dimension_numbers<[1], [0], [0], [1], [0, 0, 1, 1], [], []>} : vector<8x128xbf16>, vector<128x512xbf16>, vector<8x512xf32> -> vector<8x512xf32>
    %520 = arith.addf %517, %519 : vector<8x512xf32>
    %521 = vector.extract_strided_slice %520 {offsets = [0, 0], sizes = [8, 384], strides = [1, 1]} : vector<8x512xf32> to vector<8x384xf32>
    %522 = arith.negf %521 : vector<8x384xf32>
    %523 = math.exp %522 : vector<8x384xf32>
    %cst_158 = arith.constant 1.000000e+00 : f32
    %524 = vector.broadcast %cst_158 : f32 to vector<8x384xf32>
    %525 = arith.addf %524, %523 : vector<8x384xf32>
    %526 = arith.divf %524, %525 : vector<8x384xf32>
    %527 = vector.extract_strided_slice %520 {offsets = [0, 384], sizes = [8, 128], strides = [1, 1]} : vector<8x512xf32> to vector<8x128xf32>
    %528 = math.tanh %527 : vector<8x128xf32>
    %529 = vector.extract_strided_slice %526 {offsets = [0, 0], sizes = [8, 128], strides = [1, 1]} : vector<8x384xf32> to vector<8x128xf32>
    %530 = vector.extract_strided_slice %526 {offsets = [0, 128], sizes = [8, 128], strides = [1, 1]} : vector<8x384xf32> to vector<8x128xf32>
    %531 = vector.extract_strided_slice %526 {offsets = [0, 256], sizes = [8, 128], strides = [1, 1]} : vector<8x384xf32> to vector<8x128xf32>
    %532 = arith.mulf %530, %509 : vector<8x128xf32>
    %533 = arith.mulf %529, %528 : vector<8x128xf32>
    %534 = arith.addf %532, %533 : vector<8x128xf32>
    %535 = math.tanh %534 : vector<8x128xf32>
    %536 = arith.mulf %531, %535 : vector<8x128xf32>
    %cst_159 = arith.constant 0.000000e+00 : f32
    %537 = vector.shape_cast %514 : vector<8x1xi1> to vector<8x1xi1>
    %538 = vector.broadcast %537 : vector<8x1xi1> to vector<8x128xi1>
    %539 = vector.broadcast %cst_159 : f32 to vector<8x128xf32>
    %540 = arith.select %538, %536, %539 : vector<8x128xi1>, vector<8x128xf32>
    %541 = arith.index_cast %c5_i32_151 : i32 to index
    %c0_160 = arith.constant 0 : index
    %c0_161 = arith.constant 0 : index
    %542 = vector.load %arg21[%541, %c0_160, %c0_161] : memref<8x8x128xf32, #tpu.memory_space<vmem>>, vector<1x8x128xf32>
    %543 = vector.shape_cast %542 : vector<1x8x128xf32> to vector<8x128xf32>
    %544 = vector.shape_cast %540 : vector<8x128xf32> to vector<1x8x128xf32>
    tpu.vector_store %arg21[%541, %c0_160, %c0_161], %544 {strides = array<i32>} : memref<8x8x128xf32, #tpu.memory_space<vmem>>, vector<1x8x128xf32>,
    %545 = vector.shape_cast %514 : vector<8x1xi1> to vector<8x1xi1>
    %546 = vector.broadcast %545 : vector<8x1xi1> to vector<8x128xi1>
    %547 = arith.select %546, %536, %506 : vector<8x128xi1>, vector<8x128xf32>
    %548 = vector.shape_cast %514 : vector<8x1xi1> to vector<8x1xi1>
    %549 = vector.broadcast %548 : vector<8x1xi1> to vector<8x128xi1>
    %550 = arith.select %549, %534, %509 : vector<8x128xi1>, vector<8x128xf32>
    %c6_i32_162 = arith.constant 6 : i32
    %551 = arith.index_cast %c6_i32_162 : i32 to index
    %c0_163 = arith.constant 0 : index
    %c0_164 = arith.constant 0 : index
    %552 = vector.load %arg1[%551, %c0_163, %c0_164] : memref<8x8x1xf32, #tpu.memory_space<vmem>>, vector<1x8x1xf32>
    %553 = vector.shape_cast %552 : vector<1x8x1xf32> to vector<8x1xf32>
    %cst_165 = arith.constant 0.000000e+00 : f32
    %554 = vector.broadcast %cst_165 : f32 to vector<8x1xf32>
    %555 = arith.cmpf ogt, %553, %554 : vector<8x1xf32>
    %556 = arith.index_cast %c6_i32_162 : i32 to index
    %c0_166 = arith.constant 0 : index
    %c0_167 = arith.constant 0 : index
    %557 = vector.load %arg20[%556, %c0_166, %c0_167] : memref<8x8x512xf32, #tpu.memory_space<vmem>>, vector<1x8x512xf32>
    %558 = vector.shape_cast %557 : vector<1x8x512xf32> to vector<8x512xf32>
    %559 = arith.truncf %547 : vector<8x128xf32> to vector<8x128xbf16>
    %cst_168 = arith.constant dense<0.000000e+00> : vector<8x512xf32>
    %560 = tpu.matmul %559, %13, %cst_168 {dimension_numbers = #tpu.dot_dimension_numbers<[1], [0], [0], [1], [0, 0, 1, 1], [], []>} : vector<8x128xbf16>, vector<128x512xbf16>, vector<8x512xf32> -> vector<8x512xf32>
    %561 = arith.addf %558, %560 : vector<8x512xf32>
    %562 = vector.extract_strided_slice %561 {offsets = [0, 0], sizes = [8, 384], strides = [1, 1]} : vector<8x512xf32> to vector<8x384xf32>
    %563 = arith.negf %562 : vector<8x384xf32>
    %564 = math.exp %563 : vector<8x384xf32>
    %cst_169 = arith.constant 1.000000e+00 : f32
    %565 = vector.broadcast %cst_169 : f32 to vector<8x384xf32>
    %566 = arith.addf %565, %564 : vector<8x384xf32>
    %567 = arith.divf %565, %566 : vector<8x384xf32>
    %568 = vector.extract_strided_slice %561 {offsets = [0, 384], sizes = [8, 128], strides = [1, 1]} : vector<8x512xf32> to vector<8x128xf32>
    %569 = math.tanh %568 : vector<8x128xf32>
    %570 = vector.extract_strided_slice %567 {offsets = [0, 0], sizes = [8, 128], strides = [1, 1]} : vector<8x384xf32> to vector<8x128xf32>
    %571 = vector.extract_strided_slice %567 {offsets = [0, 128], sizes = [8, 128], strides = [1, 1]} : vector<8x384xf32> to vector<8x128xf32>
    %572 = vector.extract_strided_slice %567 {offsets = [0, 256], sizes = [8, 128], strides = [1, 1]} : vector<8x384xf32> to vector<8x128xf32>
    %573 = arith.mulf %571, %550 : vector<8x128xf32>
    %574 = arith.mulf %570, %569 : vector<8x128xf32>
    %575 = arith.addf %573, %574 : vector<8x128xf32>
    %576 = math.tanh %575 : vector<8x128xf32>
    %577 = arith.mulf %572, %576 : vector<8x128xf32>
    %cst_170 = arith.constant 0.000000e+00 : f32
    %578 = vector.shape_cast %555 : vector<8x1xi1> to vector<8x1xi1>
    %579 = vector.broadcast %578 : vector<8x1xi1> to vector<8x128xi1>
    %580 = vector.broadcast %cst_170 : f32 to vector<8x128xf32>
    %581 = arith.select %579, %577, %580 : vector<8x128xi1>, vector<8x128xf32>
    %582 = arith.index_cast %c6_i32_162 : i32 to index
    %c0_171 = arith.constant 0 : index
    %c0_172 = arith.constant 0 : index
    %583 = vector.load %arg21[%582, %c0_171, %c0_172] : memref<8x8x128xf32, #tpu.memory_space<vmem>>, vector<1x8x128xf32>
    %584 = vector.shape_cast %583 : vector<1x8x128xf32> to vector<8x128xf32>
    %585 = vector.shape_cast %581 : vector<8x128xf32> to vector<1x8x128xf32>
    tpu.vector_store %arg21[%582, %c0_171, %c0_172], %585 {strides = array<i32>} : memref<8x8x128xf32, #tpu.memory_space<vmem>>, vector<1x8x128xf32>,
    %586 = vector.shape_cast %555 : vector<8x1xi1> to vector<8x1xi1>
    %587 = vector.broadcast %586 : vector<8x1xi1> to vector<8x128xi1>
    %588 = arith.select %587, %577, %547 : vector<8x128xi1>, vector<8x128xf32>
    %589 = vector.shape_cast %555 : vector<8x1xi1> to vector<8x1xi1>
    %590 = vector.broadcast %589 : vector<8x1xi1> to vector<8x128xi1>
    %591 = arith.select %590, %575, %550 : vector<8x128xi1>, vector<8x128xf32>
    %c7_i32_173 = arith.constant 7 : i32
    %592 = arith.index_cast %c7_i32_173 : i32 to index
    %c0_174 = arith.constant 0 : index
    %c0_175 = arith.constant 0 : index
    %593 = vector.load %arg1[%592, %c0_174, %c0_175] : memref<8x8x1xf32, #tpu.memory_space<vmem>>, vector<1x8x1xf32>
    %594 = vector.shape_cast %593 : vector<1x8x1xf32> to vector<8x1xf32>
    %cst_176 = arith.constant 0.000000e+00 : f32
    %595 = vector.broadcast %cst_176 : f32 to vector<8x1xf32>
    %596 = arith.cmpf ogt, %594, %595 : vector<8x1xf32>
    %597 = arith.index_cast %c7_i32_173 : i32 to index
    %c0_177 = arith.constant 0 : index
    %c0_178 = arith.constant 0 : index
    %598 = vector.load %arg20[%597, %c0_177, %c0_178] : memref<8x8x512xf32, #tpu.memory_space<vmem>>, vector<1x8x512xf32>
    %599 = vector.shape_cast %598 : vector<1x8x512xf32> to vector<8x512xf32>
    %600 = arith.truncf %588 : vector<8x128xf32> to vector<8x128xbf16>
    %cst_179 = arith.constant dense<0.000000e+00> : vector<8x512xf32>
    %601 = tpu.matmul %600, %13, %cst_179 {dimension_numbers = #tpu.dot_dimension_numbers<[1], [0], [0], [1], [0, 0, 1, 1], [], []>} : vector<8x128xbf16>, vector<128x512xbf16>, vector<8x512xf32> -> vector<8x512xf32>
    %602 = arith.addf %599, %601 : vector<8x512xf32>
    %603 = vector.extract_strided_slice %602 {offsets = [0, 0], sizes = [8, 384], strides = [1, 1]} : vector<8x512xf32> to vector<8x384xf32>
    %604 = arith.negf %603 : vector<8x384xf32>
    %605 = math.exp %604 : vector<8x384xf32>
    %cst_180 = arith.constant 1.000000e+00 : f32
    %606 = vector.broadcast %cst_180 : f32 to vector<8x384xf32>
    %607 = arith.addf %606, %605 : vector<8x384xf32>
    %608 = arith.divf %606, %607 : vector<8x384xf32>
    %609 = vector.extract_strided_slice %602 {offsets = [0, 384], sizes = [8, 128], strides = [1, 1]} : vector<8x512xf32> to vector<8x128xf32>
    %610 = math.tanh %609 : vector<8x128xf32>
    %611 = vector.extract_strided_slice %608 {offsets = [0, 0], sizes = [8, 128], strides = [1, 1]} : vector<8x384xf32> to vector<8x128xf32>
    %612 = vector.extract_strided_slice %608 {offsets = [0, 128], sizes = [8, 128], strides = [1, 1]} : vector<8x384xf32> to vector<8x128xf32>
    %613 = vector.extract_strided_slice %608 {offsets = [0, 256], sizes = [8, 128], strides = [1, 1]} : vector<8x384xf32> to vector<8x128xf32>
    %614 = arith.mulf %612, %591 : vector<8x128xf32>
    %615 = arith.mulf %611, %610 : vector<8x128xf32>
    %616 = arith.addf %614, %615 : vector<8x128xf32>
    %617 = math.tanh %616 : vector<8x128xf32>
    %618 = arith.mulf %613, %617 : vector<8x128xf32>
    %cst_181 = arith.constant 0.000000e+00 : f32
    %619 = vector.shape_cast %596 : vector<8x1xi1> to vector<8x1xi1>
    %620 = vector.broadcast %619 : vector<8x1xi1> to vector<8x128xi1>
    %621 = vector.broadcast %cst_181 : f32 to vector<8x128xf32>
    %622 = arith.select %620, %618, %621 : vector<8x128xi1>, vector<8x128xf32>
    %623 = arith.index_cast %c7_i32_173 : i32 to index
    %c0_182 = arith.constant 0 : index
    %c0_183 = arith.constant 0 : index
    %624 = vector.load %arg21[%623, %c0_182, %c0_183] : memref<8x8x128xf32, #tpu.memory_space<vmem>>, vector<1x8x128xf32>
    %625 = vector.shape_cast %624 : vector<1x8x128xf32> to vector<8x128xf32>
    %626 = vector.shape_cast %622 : vector<8x128xf32> to vector<1x8x128xf32>
    tpu.vector_store %arg21[%623, %c0_182, %c0_183], %626 {strides = array<i32>} : memref<8x8x128xf32, #tpu.memory_space<vmem>>, vector<1x8x128xf32>,
    %627 = vector.shape_cast %596 : vector<8x1xi1> to vector<8x1xi1>
    %628 = vector.broadcast %627 : vector<8x1xi1> to vector<8x128xi1>
    %629 = arith.select %628, %618, %588 : vector<8x128xi1>, vector<8x128xf32>
    %630 = vector.shape_cast %596 : vector<8x1xi1> to vector<8x1xi1>
    %631 = vector.broadcast %630 : vector<8x1xi1> to vector<8x128xi1>
    %632 = arith.select %631, %616, %591 : vector<8x128xi1>, vector<8x128xf32>
    %c8_i32_184 = arith.constant 8 : i32
    %c0_185 = arith.constant 0 : index
    %c0_186 = arith.constant 0 : index
    %c0_187 = arith.constant 0 : index
    %633 = vector.load %arg21[%c0_185, %c0_186, %c0_187] : memref<8x8x128xf32, #tpu.memory_space<vmem>>, vector<8x8x128xf32>
    %634 = vector.shape_cast %633 : vector<8x8x128xf32> to vector<64x128xf32>
    %635 = arith.truncf %634 : vector<64x128xf32> to vector<64x128xbf16>
    %c0_188 = arith.constant 0 : index
    %c0_189 = arith.constant 0 : index
    %636 = vector.load %arg13[%c0_188, %c0_189] : memref<128x128xbf16, #tpu.memory_space<vmem>>, vector<128x128xbf16>
    %cst_190 = arith.constant dense<0.000000e+00> : vector<64x128xf32>
    %637 = tpu.matmul %635, %636, %cst_190 {dimension_numbers = #tpu.dot_dimension_numbers<[1], [0], [0], [1], [0, 0, 1, 1], [], []>} : vector<64x128xbf16>, vector<128x128xbf16>, vector<64x128xf32> -> vector<64x128xf32>
    %c0_191 = arith.constant 0 : index
    %c0_192 = arith.constant 0 : index
    %638 = vector.load %arg14[%c0_191, %c0_192] : memref<1x128xf32, #tpu.memory_space<vmem>>, vector<1x128xf32>
    %639 = vector.broadcast %638 : vector<1x128xf32> to vector<64x128xf32>
    %640 = arith.addf %637, %639 : vector<64x128xf32>
    %c0_193 = arith.constant 0 : index
    %c0_194 = arith.constant 0 : index
    %641 = vector.load %arg15[%c0_193, %c0_194] : memref<64x128xf32, #tpu.memory_space<vmem>>, vector<64x128xf32>
    tpu.vector_store %arg15[%c0_193, %c0_194], %640 {strides = array<i32>} : memref<64x128xf32, #tpu.memory_space<vmem>>, vector<64x128xf32>,
    return
  }
}

</mosaic_0001>

<llo_original>
// kernel: tpu_custom_call.1
$region0: #{tpu_custom_call.1}
  #allocation0 [shape = 'u32[]', space=smem, size = 0x4, offset = 0x4, fixed_abs, tag = 'smem constant byte address 0x4 - core index']
  #allocation1 [shape = 'u32[144,128]{1,0:T(1,128)}', space=vmem, size = 0x12000, scoped, tag = 'internal scratch']
  #allocation2 [shape = 'f32[8,8,512]{2,1,0:T(8,128)}', space=vmem, size = 0x20000, scoped, tag = 'scratch operand']
  #allocation3 [shape = 'f32[8,8,512]{2,1,0:T(8,128)}', space=vmem, size = 0x20000, scoped, tag = 'scratch operand']
  #allocation4 [shape = 'f32[8,8,128]{2,1,0:T(8,128)}', space=vmem, size = 0x8000, scoped, tag = 'scratch operand']
  %s0 = inlined_call_operand.vmem [shape: bf16[64,128], index: 0, kind: input, shape index: {}]
  %s1 = inlined_call_operand.vmem [shape: f32[8,8,1], index: 1, kind: input, shape index: {}]
  %s2 = inlined_call_operand.vmem [shape: f32[8,128], index: 2, kind: input, shape index: {}]
  %s3 = inlined_call_operand.hbm [shape: bf16[128,1024], index: 3, kind: input, shape index: {}]
  %s4 = inlined_call_operand.vmem [shape: f32[1,1024], index: 4, kind: input, shape index: {}]
  %s5 = inlined_call_operand.hbm [shape: bf16[128,512], index: 5, kind: input, shape index: {}]
  %s6 = inlined_call_operand.hbm [shape: bf16[128,512], index: 6, kind: input, shape index: {}]
  %s7 = inlined_call_operand.hbm [shape: f32[128,256], index: 7, kind: input, shape index: {}]
  %s8 = inlined_call_operand.vmem [shape: f32[1,256], index: 8, kind: input, shape index: {}]
  %s9 = inlined_call_operand.hbm [shape: f32[128,128], index: 9, kind: input, shape index: {}]
  %s10 = inlined_call_operand.vmem [shape: f32[1,128], index: 10, kind: input, shape index: {}]
  %s11 = inlined_call_operand.hbm [shape: f32[128,128], index: 11, kind: input, shape index: {}]
  %s12 = inlined_call_operand.vmem [shape: f32[1,128], index: 12, kind: input, shape index: {}]
  %s13 = inlined_call_operand.vmem [shape: bf16[128,128], index: 13, kind: input, shape index: {}]
  %s14 = inlined_call_operand.vmem [shape: f32[1,128], index: 14, kind: input, shape index: {}]
  %s15 = inlined_call_operand.hbm [shape: f32[64,128], index: 15, kind: output, shape index: {0}]
  %s16 = inlined_call_operand.hbm [shape: f32[8,128], index: 16, kind: output, shape index: {1}]
  %s17 = inlined_call_operand.hbm [shape: f32[8,128], index: 17, kind: output, shape index: {2}]
  %s18 = inlined_call_operand.hbm [shape: f32[8,128], index: 18, kind: output, shape index: {3}]
  %19 = xla_tuple %s15, %s16, %s17, %s18
  %s20 = sld [smem:[#allocation0]]
  $region118: #{tpu_custom_call.1} parent=0
    _
  %s22 = ssub.s32 1, %s20
  %s23 = scalar_select 0, %s22, %s20
  $region1: #{tpu_custom_call.1} parent=0
    #allocation5 [shape = 'u8[262144]{0}', space=vmem, size = 0x40000, scoped, tag = 'input window, operand 3, single buffered']
    #allocation6 [shape = 's32[1]{0}', space=sflag, size = 0x4, scoped, tag = 'scoped memory for tpu_custom_call.1']
    #allocation7 [shape = 's32[1]{0}', space=sflag, size = 0x4, scoped, tag = 'scoped memory for tpu_custom_call.1']
    #allocation8 [shape = 'u8[131072]{0}', space=vmem, size = 0x20000, scoped, tag = 'input window, operand 5, single buffered']
    #allocation9 [shape = 's32[1]{0}', space=sflag, size = 0x4, scoped, tag = 'scoped memory for tpu_custom_call.1']
    #allocation10 [shape = 'u8[131072]{0}', space=vmem, size = 0x20000, scoped, tag = 'input window, operand 6, single buffered']
    #allocation11 [shape = 'u8[131072]{0}', space=vmem, size = 0x20000, scoped, tag = 'input window, operand 7, single buffered']
    #allocation12 [shape = 's32[1]{0}', space=sflag, size = 0x4, scoped, tag = 'scoped memory for tpu_custom_call.1']
    #allocation13 [shape = 'u8[65536]{0}', space=vmem, size = 0x10000, scoped, tag = 'input window, operand 9, single buffered']
    #allocation14 [shape = 'u8[65536]{0}', space=vmem, size = 0x10000, scoped, tag = 'input window, operand 11, single buffered']
    #allocation15 [shape = 's32[1]{0}', space=sflag, size = 0x4, scoped, tag = 'scoped memory for tpu_custom_call.1']
    #allocation16 [shape = 'u8[32768]{0}', space=vmem, size = 0x8000, scoped, tag = 'output window, operand 0, single buffered']
    #allocation17 [shape = 'u8[4096]{0}', space=vmem, size = 0x1000, scoped, tag = 'output window, operand 1, single buffered']
    #allocation18 [shape = 's32[1]{0}', space=sflag, size = 0x4, scoped, tag = 'scoped memory for tpu_custom_call.1']
    #allocation19 [shape = 'u8[4096]{0}', space=vmem, size = 0x1000, scoped, tag = 'output window, operand 2, single buffered']
    #allocation20 [shape = 'u8[4096]{0}', space=vmem, size = 0x1000, scoped, tag = 'output window, operand 3, single buffered']
    #allocation21 [shape = 's32[1]{0}', space=sflag, size = 0x4, scoped, tag = 'scoped memory for tpu_custom_call.1']
    %24 = vsyncpa [#allocation6], 0
    %25 = vsyncpa [#allocation9], 0
    %26 = vsyncpa [#allocation12], 0
    %27 = vsyncpa [#allocation15], 0
    %28 = vsyncpa [#allocation7], 0
    %29 = vsyncpa [#allocation18], 0
    %30 = vsyncpa [#allocation21], 0
    // Predicated region
    $region2: #{tpu_custom_call.1} parent=1 // pred_check
      _
    $region3: #{tpu_custom_call.1} parent=1 // pred_check_branch
      %32 = sbr.rel (0) target = $region5
    $region4: #{tpu_custom_call.1} parent=1 // pred_region
      _
    $region5: #{tpu_custom_call.1} parent=1 // pred_fallthru
      _
    // Predicated region
    $region6: #{tpu_custom_call.1} parent=1 // pred_check
      _
    $region7: #{tpu_custom_call.1} parent=1 // pred_check_branch
      %34 = sbr.rel (0) target = $region9
    $region8: #{tpu_custom_call.1} parent=1 // pred_region
      _
    $region9: #{tpu_custom_call.1} parent=1 // pred_fallthru
      _
    // Predicated region
    $region10: #{tpu_custom_call.1} parent=1 // pred_check
      _
    $region11: #{tpu_custom_call.1} parent=1 // pred_check_branch
      %36 = sbr.rel (0) target = $region13
    $region12: #{tpu_custom_call.1} parent=1 // pred_region
      _
    $region13: #{tpu_custom_call.1} parent=1 // pred_fallthru
      _
    // Predicated region
    $region14: #{tpu_custom_call.1} parent=1 // pred_check
      _
    $region15: #{tpu_custom_call.1} parent=1 // pred_check_branch
      %38 = sbr.rel (0) target = $region17
    $region16: #{tpu_custom_call.1} parent=1 // pred_region
      %s40 = ssub.s32 8192, 8192
      %41 = vsyncadd [#allocation6], %s40
      %s42 = sshll.u32 [#allocation5], 4
      %s43 = int_to_ptr.vmem [resolvable:$true] %s42
      %48 = dma.hbm_to_vmem [thread:$0]  %s3, 8192, %s43, [#allocation6], 512, 512, 32
    $region17: #{tpu_custom_call.1} parent=1 // pred_fallthru
      _
    // Predicated region
    $region18: #{tpu_custom_call.1} parent=1 // pred_check
      _
    $region19: #{tpu_custom_call.1} parent=1 // pred_check_branch
      %50 = sbr.rel (0) target = $region21
    $region20: #{tpu_custom_call.1} parent=1 // pred_region
      _
    $region21: #{tpu_custom_call.1} parent=1 // pred_fallthru
      _
    // Predicated region
    $region22: #{tpu_custom_call.1} parent=1 // pred_check
      _
    $region23: #{tpu_custom_call.1} parent=1 // pred_check_branch
      %52 = sbr.rel (0) target = $region25
    $region24: #{tpu_custom_call.1} parent=1 // pred_region
      %s54 = ssub.s32 4096, 4096
      %55 = vsyncadd [#allocation9], %s54
      %s56 = sshll.u32 [#allocation8], 4
      %s57 = int_to_ptr.vmem [resolvable:$true] %s56
      %62 = dma.hbm_to_vmem [thread:$0]  %s5, 4096, %s57, [#allocation9], 256, 256, 16
    $region25: #{tpu_custom_call.1} parent=1 // pred_fallthru
      _
    // Predicated region
    $region26: #{tpu_custom_call.1} parent=1 // pred_check
      _
    $region27: #{tpu_custom_call.1} parent=1 // pred_check_branch
      %64 = sbr.rel (0) target = $region29
    $region28: #{tpu_custom_call.1} parent=1 // pred_region
      %s66 = ssub.s32 4096, 4096
      %67 = vsyncadd [#allocation9], %s66
      %s68 = sshll.u32 [#allocation10], 4
      %s69 = int_to_ptr.vmem [resolvable:$true] %s68
      %74 = dma.hbm_to_vmem [thread:$0]  %s6, 4096, %s69, [#allocation9], 256, 256, 16
    $region29: #{tpu_custom_call.1} parent=1 // pred_fallthru
      _
    // Predicated region
    $region30: #{tpu_custom_call.1} parent=1 // pred_check
      _
    $region31: #{tpu_custom_call.1} parent=1 // pred_check_branch
      %76 = sbr.rel (0) target = $region33
    $region32: #{tpu_custom_call.1} parent=1 // pred_region
      %s78 = ssub.s32 4096, 4096
      %79 = vsyncadd [#allocation12], %s78
      %s80 = sshll.u32 [#allocation11], 4
      %s81 = int_to_ptr.vmem [resolvable:$true] %s80
      %86 = dma.hbm_to_vmem [thread:$0]  %s7, 4096, %s81, [#allocation12], 256, 256, 16
    $region33: #{tpu_custom_call.1} parent=1 // pred_fallthru
      _
    // Predicated region
    $region34: #{tpu_custom_call.1} parent=1 // pred_check
      _
    $region35: #{tpu_custom_call.1} parent=1 // pred_check_branch
      %88 = sbr.rel (0) target = $region37
    $region36: #{tpu_custom_call.1} parent=1 // pred_region
      _
    $region37: #{tpu_custom_call.1} parent=1 // pred_fallthru
      _
    // Predicated region
    $region38: #{tpu_custom_call.1} parent=1 // pred_check
      _
    $region39: #{tpu_custom_call.1} parent=1 // pred_check_branch
      %90 = sbr.rel (0) target = $region41
    $region40: #{tpu_custom_call.1} parent=1 // pred_region
      %s92 = ssub.s32 2048, 2048
      %93 = vsyncadd [#allocation12], %s92
      %s94 = sshll.u32 [#allocation13], 4
      %s95 = int_to_ptr.vmem [resolvable:$true] %s94
      %100 = dma.hbm_to_vmem [thread:$0]  %s9, 2048, %s95, [#allocation12], 128, 128, 8
    $region41: #{tpu_custom_call.1} parent=1 // pred_fallthru
      _
    // Predicated region
    $region42: #{tpu_custom_call.1} parent=1 // pred_check
      _
    $region43: #{tpu_custom_call.1} parent=1 // pred_check_branch
      %102 = sbr.rel (0) target = $region45
    $region44: #{tpu_custom_call.1} parent=1 // pred_region
      _
    $region45: #{tpu_custom_call.1} parent=1 // pred_fallthru
      _
    // Predicated region
    $region46: #{tpu_custom_call.1} parent=1 // pred_check
      _
    $region47: #{tpu_custom_call.1} parent=1 // pred_check_branch
      %104 = sbr.rel (0) target = $region49
    $region48: #{tpu_custom_call.1} parent=1 // pred_region
      %s106 = ssub.s32 2048, 2048
      %107 = vsyncadd [#allocation15], %s106
      %s108 = sshll.u32 [#allocation14], 4
      %s109 = int_to_ptr.vmem [resolvable:$true] %s108
      %114 = dma.hbm_to_vmem [thread:$0]  %s11, 2048, %s109, [#allocation15], 128, 128, 8
    $region49: #{tpu_custom_call.1} parent=1 // pred_fallthru
      _
    // Predicated region
    $region50: #{tpu_custom_call.1} parent=1 // pred_check
      _
    $region51: #{tpu_custom_call.1} parent=1 // pred_check_branch
      %116 = sbr.rel (0) target = $region53
    $region52: #{tpu_custom_call.1} parent=1 // pred_region
      _
    $region53: #{tpu_custom_call.1} parent=1 // pred_fallthru
      _
    // Predicated region
    $region54: #{tpu_custom_call.1} parent=1 // pred_check
      _
    $region55: #{tpu_custom_call.1} parent=1 // pred_check_branch
      %118 = sbr.rel (0) target = $region57
    $region56: #{tpu_custom_call.1} parent=1 // pred_region
      _
    $region57: #{tpu_custom_call.1} parent=1 // pred_fallthru
      _
    // Predicated region
    $region58: #{tpu_custom_call.1} parent=1 // pred_check
      _
    $region59: #{tpu_custom_call.1} parent=1 // pred_check_branch
      %120 = sbr.rel (0) target = $region61
    $region60: #{tpu_custom_call.1} parent=1 // pred_region
      _
    $region61: #{tpu_custom_call.1} parent=1 // pred_fallthru
      _
    // Predicated region
    $region62: #{tpu_custom_call.1} parent=1 // pred_check
      _
    $region63: #{tpu_custom_call.1} parent=1 // pred_check_branch
      %122 = sbr.rel (0) target = $region65
    $region64: #{tpu_custom_call.1} parent=1 // pred_region
      %123 = dma.done [#allocation6], 8192
    $region65: #{tpu_custom_call.1} parent=1 // pred_fallthru
      _
    // Predicated region
    $region66: #{tpu_custom_call.1} parent=1 // pred_check
      _
    $region67: #{tpu_custom_call.1} parent=1 // pred_check_branch
      %125 = sbr.rel (0) target = $region69
    $region68: #{tpu_custom_call.1} parent=1 // pred_region
      %126 = dma.done [#allocation9], 4096
    $region69: #{tpu_custom_call.1} parent=1 // pred_fallthru
      _
    // Predicated region
    $region70: #{tpu_custom_call.1} parent=1 // pred_check
      _
    $region71: #{tpu_custom_call.1} parent=1 // pred_check_branch
      %128 = sbr.rel (0) target = $region73
    $region72: #{tpu_custom_call.1} parent=1 // pred_region
      %129 = dma.done [#allocation9], 4096
    $region73: #{tpu_custom_call.1} parent=1 // pred_fallthru
      _
    // Predicated region
    $region74: #{tpu_custom_call.1} parent=1 // pred_check
      _
    $region75: #{tpu_custom_call.1} parent=1 // pred_check_branch
      %131 = sbr.rel (0) target = $region77
    $region76: #{tpu_custom_call.1} parent=1 // pred_region
      %132 = dma.done [#allocation12], 4096
    $region77: #{tpu_custom_call.1} parent=1 // pred_fallthru
      _
    // Predicated region
    $region78: #{tpu_custom_call.1} parent=1 // pred_check
      _
    $region79: #{tpu_custom_call.1} parent=1 // pred_check_branch
      %134 = sbr.rel (0) target = $region81
    $region80: #{tpu_custom_call.1} parent=1 // pred_region
      %135 = dma.done [#allocation12], 2048
    $region81: #{tpu_custom_call.1} parent=1 // pred_fallthru
      _
    // Predicated region
    $region82: #{tpu_custom_call.1} parent=1 // pred_check
      _
    $region83: #{tpu_custom_call.1} parent=1 // pred_check_branch
      %137 = sbr.rel (0) target = $region85
    $region84: #{tpu_custom_call.1} parent=1 // pred_region
      %138 = dma.done [#allocation15], 2048
    $region85: #{tpu_custom_call.1} parent=1 // pred_fallthru
      _
    %v140 = vld [vmem:[%s0] sm:$0xf]
    %v141 = vld [vmem:[%s0 + $0x4] sm:$0xf]
    %v142 = vld [vmem:[%s0 + $0x8] sm:$0xf]
    %v143 = vld [vmem:[%s0 + $0xc] sm:$0xf]
    %v144 = vld [vmem:[%s0 + $0x10] sm:$0xf]
    %v145 = vld [vmem:[%s0 + $0x14] sm:$0xf]
    %v146 = vld [vmem:[%s0 + $0x18] sm:$0xf]
    %v147 = vld [vmem:[%s0 + $0x1c] sm:$0xf]
    %v148 = vld [vmem:[#allocation5] sm:$0xff]
    %v149 = vld [vmem:[#allocation5 + $0x8] sm:$0xff]
    %v150 = vld [vmem:[#allocation5 + $0x10] sm:$0xff]
    %v151 = vld [vmem:[#allocation5 + $0x18] sm:$0xff]
    %v152 = vld [vmem:[#allocation5 + $0x20] sm:$0xff]
    %v153 = vld [vmem:[#allocation5 + $0x28] sm:$0xff]
    %v154 = vld [vmem:[#allocation5 + $0x30] sm:$0xff]
    %v155 = vld [vmem:[#allocation5 + $0x38] sm:$0xff]
    %v156 = vld [vmem:[#allocation5 + $0x40] sm:$0xff]
    %v157 = vld [vmem:[#allocation5 + $0x48] sm:$0xff]
    %v158 = vld [vmem:[#allocation5 + $0x50] sm:$0xff]
    %v159 = vld [vmem:[#allocation5 + $0x58] sm:$0xff]
    %v160 = vld [vmem:[#allocation5 + $0x60] sm:$0xff]
    %v161 = vld [vmem:[#allocation5 + $0x68] sm:$0xff]
    %v162 = vld [vmem:[#allocation5 + $0x70] sm:$0xff]
    %v163 = vld [vmem:[#allocation5 + $0x78] sm:$0xff]
    %v164 = vld [vmem:[#allocation5 + $0x80] sm:$0xff]
    %v165 = vld [vmem:[#allocation5 + $0x88] sm:$0xff]
    %v166 = vld [vmem:[#allocation5 + $0x90] sm:$0xff]
    %v167 = vld [vmem:[#allocation5 + $0x98] sm:$0xff]
    %v168 = vld [vmem:[#allocation5 + $0xa0] sm:$0xff]
    %v169 = vld [vmem:[#allocation5 + $0xa8] sm:$0xff]
    %v170 = vld [vmem:[#allocation5 + $0xb0] sm:$0xff]
    %v171 = vld [vmem:[#allocation5 + $0xb8] sm:$0xff]
    %v172 = vld [vmem:[#allocation5 + $0xc0] sm:$0xff]
    %v173 = vld [vmem:[#allocation5 + $0xc8] sm:$0xff]
    %v174 = vld [vmem:[#allocation5 + $0xd0] sm:$0xff]
    %v175 = vld [vmem:[#allocation5 + $0xd8] sm:$0xff]
    %v176 = vld [vmem:[#allocation5 + $0xe0] sm:$0xff]
    %v177 = vld [vmem:[#allocation5 + $0xe8] sm:$0xff]
    %v178 = vld [vmem:[#allocation5 + $0xf0] sm:$0xff]
    %v179 = vld [vmem:[#allocation5 + $0xf8] sm:$0xff]
    %v180 = vld [vmem:[#allocation5 + $0x100] sm:$0xff]
    %v181 = vld [vmem:[#allocation5 + $0x108] sm:$0xff]
    %v182 = vld [vmem:[#allocation5 + $0x110] sm:$0xff]
    %v183 = vld [vmem:[#allocation5 + $0x118] sm:$0xff]
    %v184 = vld [vmem:[#allocation5 + $0x120] sm:$0xff]
    %v185 = vld [vmem:[#allocation5 + $0x128] sm:$0xff]
    %v186 = vld [vmem:[#allocation5 + $0x130] sm:$0xff]
    %v187 = vld [vmem:[#allocation5 + $0x138] sm:$0xff]
    %v188 = vld [vmem:[#allocation5 + $0x140] sm:$0xff]
    %v189 = vld [vmem:[#allocation5 + $0x148] sm:$0xff]
    %v190 = vld [vmem:[#allocation5 + $0x150] sm:$0xff]
    %v191 = vld [vmem:[#allocation5 + $0x158] sm:$0xff]
    %v192 = vld [vmem:[#allocation5 + $0x160] sm:$0xff]
    %v193 = vld [vmem:[#allocation5 + $0x168] sm:$0xff]
    %v194 = vld [vmem:[#allocation5 + $0x170] sm:$0xff]
    %v195 = vld [vmem:[#allocation5 + $0x178] sm:$0xff]
    %v196 = vld [vmem:[#allocation5 + $0x180] sm:$0xff]
    %v197 = vld [vmem:[#allocation5 + $0x188] sm:$0xff]
    %v198 = vld [vmem:[#allocation5 + $0x190] sm:$0xff]
    %v199 = vld [vmem:[#allocation5 + $0x198] sm:$0xff]
    %v200 = vld [vmem:[#allocation5 + $0x1a0] sm:$0xff]
    %v201 = vld [vmem:[#allocation5 + $0x1a8] sm:$0xff]
    %v202 = vld [vmem:[#allocation5 + $0x1b0] sm:$0xff]
    %v203 = vld [vmem:[#allocation5 + $0x1b8] sm:$0xff]
    %v204 = vld [vmem:[#allocation5 + $0x1c0] sm:$0xff]
    %v205 = vld [vmem:[#allocation5 + $0x1c8] sm:$0xff]
    %v206 = vld [vmem:[#allocation5 + $0x1d0] sm:$0xff]
    %v207 = vld [vmem:[#allocation5 + $0x1d8] sm:$0xff]
    %v208 = vld [vmem:[#allocation5 + $0x1e0] sm:$0xff]
    %v209 = vld [vmem:[#allocation5 + $0x1e8] sm:$0xff]
    %v210 = vld [vmem:[#allocation5 + $0x1f0] sm:$0xff]
    %v211 = vld [vmem:[#allocation5 + $0x1f8] sm:$0xff]
    %v212 = vld [vmem:[%s4] sm:$0xff]
    %v214 = vlaneseq
    %v215 = vshrl.u32 %v214, 7
    %v216 = vsub.s32 0, %v215
    %v217 = vrot.slane %v212, %v216
    %v218 = vlaneseq
    %v219 = vshrl.u32 %v218, 7
    %v220 = vsub.s32 1, %v219
    %v221 = vrot.slane %v212, %v220
    %v222 = vlaneseq
    %v223 = vshrl.u32 %v222, 7
    %v224 = vsub.s32 2, %v223
    %v225 = vrot.slane %v212, %v224
    %v226 = vlaneseq
    %v227 = vshrl.u32 %v226, 7
    %v228 = vsub.s32 3, %v227
    %v229 = vrot.slane %v212, %v228
    %v230 = vlaneseq
    %v231 = vshrl.u32 %v230, 7
    %v232 = vsub.s32 4, %v231
    %v233 = vrot.slane %v212, %v232
    %v234 = vlaneseq
    %v235 = vshrl.u32 %v234, 7
    %v236 = vsub.s32 5, %v235
    %v237 = vrot.slane %v212, %v236
    %v238 = vlaneseq
    %v239 = vshrl.u32 %v238, 7
    %v240 = vsub.s32 6, %v239
    %v241 = vrot.slane %v212, %v240
    %v242 = vlaneseq
    %v243 = vshrl.u32 %v242, 7
    %v244 = vsub.s32 7, %v243
    %v245 = vrot.slane %v212, %v244
    %v262 = vunpack.c.l.b16 %v140
    %v263 = vunpack.c.l.b16 %v141
    %v264 = vunpack.c.l.b16 %v142
    %v265 = vunpack.c.l.b16 %v143
    %v266 = vunpack.c.l.b16 %v144
    %v267 = vunpack.c.l.b16 %v145
    %v268 = vunpack.c.l.b16 %v146
    %v269 = vunpack.c.l.b16 %v147
    %v270 = vpack.c.b16 %v263, %v262
    %v271 = vpack.c.b16 %v265, %v264
    %v272 = vpack.c.b16 %v267, %v266
    %v273 = vpack.c.b16 %v269, %v268
    %v342 = vunpack.c.l.b16 %v148
    %v343 = vunpack.c.h.b16 %v148
    %v344 = vunpack.c.l.b16 %v149
    %v345 = vunpack.c.h.b16 %v149
    %v346 = vunpack.c.l.b16 %v150
    %v347 = vunpack.c.h.b16 %v150
    %v348 = vunpack.c.l.b16 %v151
    %v349 = vunpack.c.h.b16 %v151
    %v350 = vunpack.c.l.b16 %v152
    %v351 = vunpack.c.h.b16 %v152
    %v352 = vunpack.c.l.b16 %v153
    %v353 = vunpack.c.h.b16 %v153
    %v354 = vunpack.c.l.b16 %v154
    %v355 = vunpack.c.h.b16 %v154
    %v356 = vunpack.c.l.b16 %v155
    %v357 = vunpack.c.h.b16 %v155
    %v358 = vunpack.c.l.b16 %v156
    %v359 = vunpack.c.h.b16 %v156
    %v360 = vunpack.c.l.b16 %v157
    %v361 = vunpack.c.h.b16 %v157
    %v362 = vunpack.c.l.b16 %v158
    %v363 = vunpack.c.h.b16 %v158
    %v364 = vunpack.c.l.b16 %v159
    %v365 = vunpack.c.h.b16 %v159
    %v366 = vunpack.c.l.b16 %v160
    %v367 = vunpack.c.h.b16 %v160
    %v368 = vunpack.c.l.b16 %v161
    %v369 = vunpack.c.h.b16 %v161
    %v370 = vunpack.c.l.b16 %v162
    %v371 = vunpack.c.h.b16 %v162
    %v372 = vunpack.c.l.b16 %v163
    %v373 = vunpack.c.h.b16 %v163
    %v374 = vunpack.c.l.b16 %v164
    %v375 = vunpack.c.h.b16 %v164
    %v376 = vunpack.c.l.b16 %v165
    %v377 = vunpack.c.h.b16 %v165
    %v378 = vunpack.c.l.b16 %v166
    %v379 = vunpack.c.h.b16 %v166
    %v380 = vunpack.c.l.b16 %v167
    %v381 = vunpack.c.h.b16 %v167
    %v382 = vunpack.c.l.b16 %v168
    %v383 = vunpack.c.h.b16 %v168
    %v384 = vunpack.c.l.b16 %v169
    %v385 = vunpack.c.h.b16 %v169
    %v386 = vunpack.c.l.b16 %v170
    %v387 = vunpack.c.h.b16 %v170
    %v388 = vunpack.c.l.b16 %v171
    %v389 = vunpack.c.h.b16 %v171
    %v390 = vunpack.c.l.b16 %v172
    %v391 = vunpack.c.h.b16 %v172
    %v392 = vunpack.c.l.b16 %v173
    %v393 = vunpack.c.h.b16 %v173
    %v394 = vunpack.c.l.b16 %v174
    %v395 = vunpack.c.h.b16 %v174
    %v396 = vunpack.c.l.b16 %v175
    %v397 = vunpack.c.h.b16 %v175
    %v398 = vunpack.c.l.b16 %v176
    %v399 = vunpack.c.h.b16 %v176
    %v400 = vunpack.c.l.b16 %v177
    %v401 = vunpack.c.h.b16 %v177
    %v402 = vunpack.c.l.b16 %v178
    %v403 = vunpack.c.h.b16 %v178
    %v404 = vunpack.c.l.b16 %v179
    %v405 = vunpack.c.h.b16 %v179
    %v406 = vunpack.c.l.b16 %v180
    %v407 = vunpack.c.h.b16 %v180
    %v408 = vunpack.c.l.b16 %v181
    %v409 = vunpack.c.h.b16 %v181
    %v410 = vunpack.c.l.b16 %v182
    %v411 = vunpack.c.h.b16 %v182
    %v412 = vunpack.c.l.b16 %v183
    %v413 = vunpack.c.h.b16 %v183
    %v414 = vunpack.c.l.b16 %v184
    %v415 = vunpack.c.h.b16 %v184
    %v416 = vunpack.c.l.b16 %v185
    %v417 = vunpack.c.h.b16 %v185
    %v418 = vunpack.c.l.b16 %v186
    %v419 = vunpack.c.h.b16 %v186
    %v420 = vunpack.c.l.b16 %v187
    %v421 = vunpack.c.h.b16 %v187
    %v422 = vunpack.c.l.b16 %v188
    %v423 = vunpack.c.h.b16 %v188
    %v424 = vunpack.c.l.b16 %v189
    %v425 = vunpack.c.h.b16 %v189
    %v426 = vunpack.c.l.b16 %v190
    %v427 = vunpack.c.h.b16 %v190
    %v428 = vunpack.c.l.b16 %v191
    %v429 = vunpack.c.h.b16 %v191
    %v430 = vunpack.c.l.b16 %v192
    %v431 = vunpack.c.h.b16 %v192
    %v432 = vunpack.c.l.b16 %v193
    %v433 = vunpack.c.h.b16 %v193
    %v434 = vunpack.c.l.b16 %v194
    %v435 = vunpack.c.h.b16 %v194
    %v436 = vunpack.c.l.b16 %v195
    %v437 = vunpack.c.h.b16 %v195
    %v438 = vunpack.c.l.b16 %v196
    %v439 = vunpack.c.h.b16 %v196
    %v440 = vunpack.c.l.b16 %v197
    %v441 = vunpack.c.h.b16 %v197
    %v442 = vunpack.c.l.b16 %v198
    %v443 = vunpack.c.h.b16 %v198
    %v444 = vunpack.c.l.b16 %v199
    %v445 = vunpack.c.h.b16 %v199
    %v446 = vunpack.c.l.b16 %v200
    %v447 = vunpack.c.h.b16 %v200
    %v448 = vunpack.c.l.b16 %v201
    %v449 = vunpack.c.h.b16 %v201
    %v450 = vunpack.c.l.b16 %v202
    %v451 = vunpack.c.h.b16 %v202
    %v452 = vunpack.c.l.b16 %v203
    %v453 = vunpack.c.h.b16 %v203
    %v454 = vunpack.c.l.b16 %v204
    %v455 = vunpack.c.h.b16 %v204
    %v456 = vunpack.c.l.b16 %v205
    %v457 = vunpack.c.h.b16 %v205
    %v458 = vunpack.c.l.b16 %v206
    %v459 = vunpack.c.h.b16 %v206
    %v460 = vunpack.c.l.b16 %v207
    %v461 = vunpack.c.h.b16 %v207
    %v462 = vunpack.c.l.b16 %v208
    %v463 = vunpack.c.h.b16 %v208
    %v464 = vunpack.c.l.b16 %v209
    %v465 = vunpack.c.h.b16 %v209
    %v466 = vunpack.c.l.b16 %v210
    %v467 = vunpack.c.h.b16 %v210
    %v468 = vunpack.c.l.b16 %v211
    %v469 = vunpack.c.h.b16 %v211
    %v470 = vpack.c.b16 %v350, %v342
    %v471 = vpack.c.b16 %v351, %v343
    %v472 = vpack.c.b16 %v352, %v344
    %v473 = vpack.c.b16 %v353, %v345
    %v474 = vpack.c.b16 %v354, %v346
    %v475 = vpack.c.b16 %v355, %v347
    %v476 = vpack.c.b16 %v356, %v348
    %v477 = vpack.c.b16 %v357, %v349
    %v478 = vpack.c.b16 %v366, %v358
    %v479 = vpack.c.b16 %v367, %v359
    %v480 = vpack.c.b16 %v368, %v360
    %v481 = vpack.c.b16 %v369, %v361
    %v482 = vpack.c.b16 %v370, %v362
    %v483 = vpack.c.b16 %v371, %v363
    %v484 = vpack.c.b16 %v372, %v364
    %v485 = vpack.c.b16 %v373, %v365
    %v486 = vpack.c.b16 %v382, %v374
    %v487 = vpack.c.b16 %v383, %v375
    %v488 = vpack.c.b16 %v384, %v376
    %v489 = vpack.c.b16 %v385, %v377
    %v490 = vpack.c.b16 %v386, %v378
    %v491 = vpack.c.b16 %v387, %v379
    %v492 = vpack.c.b16 %v388, %v380
    %v493 = vpack.c.b16 %v389, %v381
    %v494 = vpack.c.b16 %v398, %v390
    %v495 = vpack.c.b16 %v399, %v391
    %v496 = vpack.c.b16 %v400, %v392
    %v497 = vpack.c.b16 %v401, %v393
    %v498 = vpack.c.b16 %v402, %v394
    %v499 = vpack.c.b16 %v403, %v395
    %v500 = vpack.c.b16 %v404, %v396
    %v501 = vpack.c.b16 %v405, %v397
    %v502 = vpack.c.b16 %v414, %v406
    %v503 = vpack.c.b16 %v415, %v407
    %v504 = vpack.c.b16 %v416, %v408
    %v505 = vpack.c.b16 %v417, %v409
    %v506 = vpack.c.b16 %v418, %v410
    %v507 = vpack.c.b16 %v419, %v411
    %v508 = vpack.c.b16 %v420, %v412
    %v509 = vpack.c.b16 %v421, %v413
    %v510 = vpack.c.b16 %v430, %v422
    %v511 = vpack.c.b16 %v431, %v423
    %v512 = vpack.c.b16 %v432, %v424
    %v513 = vpack.c.b16 %v433, %v425
    %v514 = vpack.c.b16 %v434, %v426
    %v515 = vpack.c.b16 %v435, %v427
    %v516 = vpack.c.b16 %v436, %v428
    %v517 = vpack.c.b16 %v437, %v429
    %v518 = vpack.c.b16 %v446, %v438
    %v519 = vpack.c.b16 %v447, %v439
    %v520 = vpack.c.b16 %v448, %v440
    %v521 = vpack.c.b16 %v449, %v441
    %v522 = vpack.c.b16 %v450, %v442
    %v523 = vpack.c.b16 %v451, %v443
    %v524 = vpack.c.b16 %v452, %v444
    %v525 = vpack.c.b16 %v453, %v445
    %v526 = vpack.c.b16 %v462, %v454
    %v527 = vpack.c.b16 %v463, %v455
    %v528 = vpack.c.b16 %v464, %v456
    %v529 = vpack.c.b16 %v465, %v457
    %v530 = vpack.c.b16 %v466, %v458
    %v531 = vpack.c.b16 %v467, %v459
    %v532 = vpack.c.b16 %v468, %v460
    %v533 = vpack.c.b16 %v469, %v461
    %598 = vmatprep.subr.bf16.mxu0 %v471
    %599 = vmatpush1.bf16.msra.mxu0 %v470
    %600 = vmatprep.subr.bf16.mxu0 %v479
    %601 = vmatpush1.bf16.msra.mxu0 %v478
    %602 = vmatprep.subr.bf16.mxu0 %v487
    %603 = vmatpush1.bf16.msra.mxu0 %v486
    %604 = vmatprep.subr.bf16.mxu0 %v495
    %605 = vmatpush1.bf16.msra.mxu0 %v494
    %606 = vmatprep.subr.bf16.mxu0 %v503
    %607 = vmatpush1.bf16.msra.mxu0 %v502
    %608 = vmatprep.subr.bf16.mxu0 %v511
    %609 = vmatpush1.bf16.msra.mxu0 %v510
    %610 = vmatprep.subr.bf16.mxu0 %v519
    %611 = vmatpush1.bf16.msra.mxu0 %v518
    %612 = vmatprep.subr.bf16.mxu0 %v527
    %613 = vmatpush1.bf16.msra.mxu0 %v526
    %614 = vmatprep.subr.bf16.mxu0 0
    %615 = vmatpush1.bf16.msra.mxu0 0
    %616 = vmatprep.subr.bf16.mxu0 0
    %617 = vmatpush1.bf16.msra.mxu0 0
    %618 = vmatprep.subr.bf16.mxu0 0
    %619 = vmatpush1.bf16.msra.mxu0 0
    %620 = vmatprep.subr.bf16.mxu0 0
    %621 = vmatpush1.bf16.msra.mxu0 0
    %622 = vmatprep.subr.bf16.mxu0 0
    %623 = vmatpush1.bf16.msra.mxu0 0
    %624 = vmatprep.subr.bf16.mxu0 0
    %625 = vmatpush1.bf16.msra.mxu0 0
    %626 = vmatprep.subr.bf16.mxu0 0
    %627 = vmatpush1.bf16.msra.mxu0 0
    %628 = vmatprep.subr.bf16.mxu0 0
    %629 = vmatpush1.bf16.msra.mxu0 0
    %630 = vmatprep.mubr.bf16.mxu0 0
    %631 = vmatmul.mubr.bf16.gmra.mrb[0].mxu0 %v270
    %v632 = vpop.f32.mrb[0].mxu0
    %v633 = vadd.f32 %v217, %v632
    %v634 = vpop.f32.mrb[0].mxu0
    %v635 = vadd.f32 %v221, %v634
    %v636 = vpop.f32.mrb[0].mxu0
    %v637 = vadd.f32 %v217, %v636
    %v638 = vpop.f32.mrb[0].mxu0
    %v639 = vadd.f32 %v221, %v638
    %640 = vmatprep.mubr.bf16.mxu0 0
    %641 = vmatmul.mubr.bf16.gmra.mrb[0].mxu0 %v271
    %v642 = vpop.f32.mrb[0].mxu0
    %v643 = vadd.f32 %v217, %v642
    %v644 = vpop.f32.mrb[0].mxu0
    %v645 = vadd.f32 %v221, %v644
    %v646 = vpop.f32.mrb[0].mxu0
    %v647 = vadd.f32 %v217, %v646
    %v648 = vpop.f32.mrb[0].mxu0
    %v649 = vadd.f32 %v221, %v648
    %650 = vmatprep.mubr.bf16.mxu0 0
    %651 = vmatmul.mubr.bf16.gmra.mrb[0].mxu0 %v272
    %v652 = vpop.f32.mrb[0].mxu0
    %v653 = vadd.f32 %v217, %v652
    %v654 = vpop.f32.mrb[0].mxu0
    %v655 = vadd.f32 %v221, %v654
    %v656 = vpop.f32.mrb[0].mxu0
    %v657 = vadd.f32 %v217, %v656
    %v658 = vpop.f32.mrb[0].mxu0
    %v659 = vadd.f32 %v221, %v658
    %660 = vmatprep.mubr.bf16.mxu0 0
    %661 = vmatmul.mubr.bf16.gmra.mrb[0].mxu0 %v273
    %v662 = vpop.f32.mrb[0].mxu0
    %v663 = vadd.f32 %v217, %v662
    %v664 = vpop.f32.mrb[0].mxu0
    %v665 = vadd.f32 %v221, %v664
    %v666 = vpop.f32.mrb[0].mxu0
    %v667 = vadd.f32 %v217, %v666
    %v668 = vpop.f32.mrb[0].mxu0
    %v669 = vadd.f32 %v221, %v668
    %670 = vdwg.mxu0
    %671 = vmatprep.subr.bf16.mxu0 %v473
    %672 = vmatpush1.bf16.msra.mxu0 %v472
    %673 = vmatprep.subr.bf16.mxu0 %v481
    %674 = vmatpush1.bf16.msra.mxu0 %v480
    %675 = vmatprep.subr.bf16.mxu0 %v489
    %676 = vmatpush1.bf16.msra.mxu0 %v488
    %677 = vmatprep.subr.bf16.mxu0 %v497
    %678 = vmatpush1.bf16.msra.mxu0 %v496
    %679 = vmatprep.subr.bf16.mxu0 %v505
    %680 = vmatpush1.bf16.msra.mxu0 %v504
    %681 = vmatprep.subr.bf16.mxu0 %v513
    %682 = vmatpush1.bf16.msra.mxu0 %v512
    %683 = vmatprep.subr.bf16.mxu0 %v521
    %684 = vmatpush1.bf16.msra.mxu0 %v520
    %685 = vmatprep.subr.bf16.mxu0 %v529
    %686 = vmatpush1.bf16.msra.mxu0 %v528
    %687 = vmatprep.subr.bf16.mxu0 0
    %688 = vmatpush1.bf16.msra.mxu0 0
    %689 = vmatprep.subr.bf16.mxu0 0
    %690 = vmatpush1.bf16.msra.mxu0 0
    %691 = vmatprep.subr.bf16.mxu0 0
    %692 = vmatpush1.bf16.msra.mxu0 0
    %693 = vmatprep.subr.bf16.mxu0 0
    %694 = vmatpush1.bf16.msra.mxu0 0
    %695 = vmatprep.subr.bf16.mxu0 0
    %696 = vmatpush1.bf16.msra.mxu0 0
    %697 = vmatprep.subr.bf16.mxu0 0
    %698 = vmatpush1.bf16.msra.mxu0 0
    %699 = vmatprep.subr.bf16.mxu0 0
    %700 = vmatpush1.bf16.msra.mxu0 0
    %701 = vmatprep.subr.bf16.mxu0 0
    %702 = vmatpush1.bf16.msra.mxu0 0
    %703 = vmatprep.mubr.bf16.mxu0 0
    %704 = vmatmul.mubr.bf16.gmra.mrb[0].mxu0 %v270
    %v705 = vpop.f32.mrb[0].mxu0
    %v706 = vadd.f32 %v225, %v705
    %v707 = vpop.f32.mrb[0].mxu0
    %v708 = vadd.f32 %v229, %v707
    %v709 = vpop.f32.mrb[0].mxu0
    %v710 = vadd.f32 %v225, %v709
    %v711 = vpop.f32.mrb[0].mxu0
    %v712 = vadd.f32 %v229, %v711
    %713 = vmatprep.mubr.bf16.mxu0 0
    %714 = vmatmul.mubr.bf16.gmra.mrb[0].mxu0 %v271
    %v715 = vpop.f32.mrb[0].mxu0
    %v716 = vadd.f32 %v225, %v715
    %v717 = vpop.f32.mrb[0].mxu0
    %v718 = vadd.f32 %v229, %v717
    %v719 = vpop.f32.mrb[0].mxu0
    %v720 = vadd.f32 %v225, %v719
    %v721 = vpop.f32.mrb[0].mxu0
    %v722 = vadd.f32 %v229, %v721
    %723 = vmatprep.mubr.bf16.mxu0 0
    %724 = vmatmul.mubr.bf16.gmra.mrb[0].mxu0 %v272
    %v725 = vpop.f32.mrb[0].mxu0
    %v726 = vadd.f32 %v225, %v725
    %v727 = vpop.f32.mrb[0].mxu0
    %v728 = vadd.f32 %v229, %v727
    %v729 = vpop.f32.mrb[0].mxu0
    %v730 = vadd.f32 %v225, %v729
    %v731 = vpop.f32.mrb[0].mxu0
    %v732 = vadd.f32 %v229, %v731
    %733 = vmatprep.mubr.bf16.mxu0 0
    %734 = vmatmul.mubr.bf16.gmra.mrb[0].mxu0 %v273
    %v735 = vpop.f32.mrb[0].mxu0
    %v736 = vadd.f32 %v225, %v735
    %v737 = vpop.f32.mrb[0].mxu0
    %v738 = vadd.f32 %v229, %v737
    %v739 = vpop.f32.mrb[0].mxu0
    %v740 = vadd.f32 %v225, %v739
    %v741 = vpop.f32.mrb[0].mxu0
    %v742 = vadd.f32 %v229, %v741
    %743 = vdwg.mxu0
    %744 = vmatprep.subr.bf16.mxu0 %v475
    %745 = vmatpush1.bf16.msra.mxu0 %v474
    %746 = vmatprep.subr.bf16.mxu0 %v483
    %747 = vmatpush1.bf16.msra.mxu0 %v482
    %748 = vmatprep.subr.bf16.mxu0 %v491
    %749 = vmatpush1.bf16.msra.mxu0 %v490
    %750 = vmatprep.subr.bf16.mxu0 %v499
    %751 = vmatpush1.bf16.msra.mxu0 %v498
    %752 = vmatprep.subr.bf16.mxu0 %v507
    %753 = vmatpush1.bf16.msra.mxu0 %v506
    %754 = vmatprep.subr.bf16.mxu0 %v515
    %755 = vmatpush1.bf16.msra.mxu0 %v514
    %756 = vmatprep.subr.bf16.mxu0 %v523
    %757 = vmatpush1.bf16.msra.mxu0 %v522
    %758 = vmatprep.subr.bf16.mxu0 %v531
    %759 = vmatpush1.bf16.msra.mxu0 %v530
    %760 = vmatprep.subr.bf16.mxu0 0
    %761 = vmatpush1.bf16.msra.mxu0 0
    %762 = vmatprep.subr.bf16.mxu0 0
    %763 = vmatpush1.bf16.msra.mxu0 0
    %764 = vmatprep.subr.bf16.mxu0 0
    %765 = vmatpush1.bf16.msra.mxu0 0
    %766 = vmatprep.subr.bf16.mxu0 0
    %767 = vmatpush1.bf16.msra.mxu0 0
    %768 = vmatprep.subr.bf16.mxu0 0
    %769 = vmatpush1.bf16.msra.mxu0 0
    %770 = vmatprep.subr.bf16.mxu0 0
    %771 = vmatpush1.bf16.msra.mxu0 0
    %772 = vmatprep.subr.bf16.mxu0 0
    %773 = vmatpush1.bf16.msra.mxu0 0
    %774 = vmatprep.subr.bf16.mxu0 0
    %775 = vmatpush1.bf16.msra.mxu0 0
    %776 = vmatprep.mubr.bf16.mxu0 0
    %777 = vmatmul.mubr.bf16.gmra.mrb[0].mxu0 %v270
    %v778 = vpop.f32.mrb[0].mxu0
    %v779 = vadd.f32 %v233, %v778
    %v780 = vpop.f32.mrb[0].mxu0
    %v781 = vadd.f32 %v237, %v780
    %v782 = vpop.f32.mrb[0].mxu0
    %v783 = vadd.f32 %v233, %v782
    %v784 = vpop.f32.mrb[0].mxu0
    %v785 = vadd.f32 %v237, %v784
    %786 = vmatprep.mubr.bf16.mxu0 0
    %787 = vmatmul.mubr.bf16.gmra.mrb[0].mxu0 %v271
    %v788 = vpop.f32.mrb[0].mxu0
    %v789 = vadd.f32 %v233, %v788
    %v790 = vpop.f32.mrb[0].mxu0
    %v791 = vadd.f32 %v237, %v790
    %v792 = vpop.f32.mrb[0].mxu0
    %v793 = vadd.f32 %v233, %v792
    %v794 = vpop.f32.mrb[0].mxu0
    %v795 = vadd.f32 %v237, %v794
    %796 = vmatprep.mubr.bf16.mxu0 0
    %797 = vmatmul.mubr.bf16.gmra.mrb[0].mxu0 %v272
    %v798 = vpop.f32.mrb[0].mxu0
    %v799 = vadd.f32 %v233, %v798
    %v800 = vpop.f32.mrb[0].mxu0
    %v801 = vadd.f32 %v237, %v800
    %v802 = vpop.f32.mrb[0].mxu0
    %v803 = vadd.f32 %v233, %v802
    %v804 = vpop.f32.mrb[0].mxu0
    %v805 = vadd.f32 %v237, %v804
    %806 = vmatprep.mubr.bf16.mxu0 0
    %807 = vmatmul.mubr.bf16.gmra.mrb[0].mxu0 %v273
    %v808 = vpop.f32.mrb[0].mxu0
    %v809 = vadd.f32 %v233, %v808
    %v810 = vpop.f32.mrb[0].mxu0
    %v811 = vadd.f32 %v237, %v810
    %v812 = vpop.f32.mrb[0].mxu0
    %v813 = vadd.f32 %v233, %v812
    %v814 = vpop.f32.mrb[0].mxu0
    %v815 = vadd.f32 %v237, %v814
    %816 = vdwg.mxu0
    %817 = vmatprep.subr.bf16.mxu0 %v477
    %818 = vmatpush1.bf16.msra.mxu0 %v476
    %819 = vmatprep.subr.bf16.mxu0 %v485
    %820 = vmatpush1.bf16.msra.mxu0 %v484
    %821 = vmatprep.subr.bf16.mxu0 %v493
    %822 = vmatpush1.bf16.msra.mxu0 %v492
    %823 = vmatprep.subr.bf16.mxu0 %v501
    %824 = vmatpush1.bf16.msra.mxu0 %v500
    %825 = vmatprep.subr.bf16.mxu0 %v509
    %826 = vmatpush1.bf16.msra.mxu0 %v508
    %827 = vmatprep.subr.bf16.mxu0 %v517
    %828 = vmatpush1.bf16.msra.mxu0 %v516
    %829 = vmatprep.subr.bf16.mxu0 %v525
    %830 = vmatpush1.bf16.msra.mxu0 %v524
    %831 = vmatprep.subr.bf16.mxu0 %v533
    %832 = vmatpush1.bf16.msra.mxu0 %v532
    %833 = vmatprep.subr.bf16.mxu0 0
    %834 = vmatpush1.bf16.msra.mxu0 0
    %835 = vmatprep.subr.bf16.mxu0 0
    %836 = vmatpush1.bf16.msra.mxu0 0
    %837 = vmatprep.subr.bf16.mxu0 0
    %838 = vmatpush1.bf16.msra.mxu0 0
    %839 = vmatprep.subr.bf16.mxu0 0
    %840 = vmatpush1.bf16.msra.mxu0 0
    %841 = vmatprep.subr.bf16.mxu0 0
    %842 = vmatpush1.bf16.msra.mxu0 0
    %843 = vmatprep.subr.bf16.mxu0 0
    %844 = vmatpush1.bf16.msra.mxu0 0
    %845 = vmatprep.subr.bf16.mxu0 0
    %846 = vmatpush1.bf16.msra.mxu0 0
    %847 = vmatprep.subr.bf16.mxu0 0
    %848 = vmatpush1.bf16.msra.mxu0 0
    %849 = vmatprep.mubr.bf16.mxu0 0
    %850 = vmatmul.mubr.bf16.gmra.mrb[0].mxu0 %v270
    %v851 = vpop.f32.mrb[0].mxu0
    %v852 = vadd.f32 %v241, %v851
    %v853 = vpop.f32.mrb[0].mxu0
    %v854 = vadd.f32 %v245, %v853
    %v855 = vpop.f32.mrb[0].mxu0
    %v856 = vadd.f32 %v241, %v855
    %v857 = vpop.f32.mrb[0].mxu0
    %v858 = vadd.f32 %v245, %v857
    %859 = vmatprep.mubr.bf16.mxu0 0
    %860 = vmatmul.mubr.bf16.gmra.mrb[0].mxu0 %v271
    %v861 = vpop.f32.mrb[0].mxu0
    %v862 = vadd.f32 %v241, %v861
    %v863 = vpop.f32.mrb[0].mxu0
    %v864 = vadd.f32 %v245, %v863
    %v865 = vpop.f32.mrb[0].mxu0
    %v866 = vadd.f32 %v241, %v865
    %v867 = vpop.f32.mrb[0].mxu0
    %v868 = vadd.f32 %v245, %v867
    %869 = vmatprep.mubr.bf16.mxu0 0
    %870 = vmatmul.mubr.bf16.gmra.mrb[0].mxu0 %v272
    %v871 = vpop.f32.mrb[0].mxu0
    %v872 = vadd.f32 %v241, %v871
    %v873 = vpop.f32.mrb[0].mxu0
    %v874 = vadd.f32 %v245, %v873
    %v875 = vpop.f32.mrb[0].mxu0
    %v876 = vadd.f32 %v241, %v875
    %v877 = vpop.f32.mrb[0].mxu0
    %v878 = vadd.f32 %v245, %v877
    %879 = vmatprep.mubr.bf16.mxu0 0
    %880 = vmatmul.mubr.bf16.gmra.mrb[0].mxu0 %v273
    %v881 = vpop.f32.mrb[0].mxu0
    %v882 = vadd.f32 %v241, %v881
    %v883 = vpop.f32.mrb[0].mxu0
    %v884 = vadd.f32 %v245, %v883
    %v885 = vpop.f32.mrb[0].mxu0
    %v886 = vadd.f32 %v241, %v885
    %v887 = vpop.f32.mrb[0].mxu0
    %v888 = vadd.f32 %v245, %v887
    %889 = vdwg.mxu0
    %890 = vst [vmem:[#allocation2] sm:$0xff] %v633
    %891 = vst [vmem:[#allocation2 + $0x8] sm:$0xff] %v635
    %892 = vst [vmem:[#allocation2 + $0x10] sm:$0xff] %v706
    %893 = vst [vmem:[#allocation2 + $0x18] sm:$0xff] %v708
    %894 = vst [vmem:[#allocation2 + $0x20] sm:$0xff] %v637
    %895 = vst [vmem:[#allocation2 + $0x28] sm:$0xff] %v639
    %896 = vst [vmem:[#allocation2 + $0x30] sm:$0xff] %v710
    %897 = vst [vmem:[#allocation2 + $0x38] sm:$0xff] %v712
    %898 = vst [vmem:[#allocation2 + $0x40] sm:$0xff] %v643
    %899 = vst [vmem:[#allocation2 + $0x48] sm:$0xff] %v645
    %900 = vst [vmem:[#allocation2 + $0x50] sm:$0xff] %v716
    %901 = vst [vmem:[#allocation2 + $0x58] sm:$0xff] %v718
    %902 = vst [vmem:[#allocation2 + $0x60] sm:$0xff] %v647
    %903 = vst [vmem:[#allocation2 + $0x68] sm:$0xff] %v649
    %904 = vst [vmem:[#allocation2 + $0x70] sm:$0xff] %v720
    %905 = vst [vmem:[#allocation2 + $0x78] sm:$0xff] %v722
    %906 = vst [vmem:[#allocation2 + $0x80] sm:$0xff] %v653
    %907 = vst [vmem:[#allocation2 + $0x88] sm:$0xff] %v655
    %908 = vst [vmem:[#allocation2 + $0x90] sm:$0xff] %v726
    %909 = vst [vmem:[#allocation2 + $0x98] sm:$0xff] %v728
    %910 = vst [vmem:[#allocation2 + $0xa0] sm:$0xff] %v657
    %911 = vst [vmem:[#allocation2 + $0xa8] sm:$0xff] %v659
    %912 = vst [vmem:[#allocation2 + $0xb0] sm:$0xff] %v730
    %913 = vst [vmem:[#allocation2 + $0xb8] sm:$0xff] %v732
    %914 = vst [vmem:[#allocation2 + $0xc0] sm:$0xff] %v663
    %915 = vst [vmem:[#allocation2 + $0xc8] sm:$0xff] %v665
    %916 = vst [vmem:[#allocation2 + $0xd0] sm:$0xff] %v736
    %917 = vst [vmem:[#allocation2 + $0xd8] sm:$0xff] %v738
    %918 = vst [vmem:[#allocation2 + $0xe0] sm:$0xff] %v667
    %919 = vst [vmem:[#allocation2 + $0xe8] sm:$0xff] %v669
    %920 = vst [vmem:[#allocation2 + $0xf0] sm:$0xff] %v740
    %921 = vst [vmem:[#allocation2 + $0xf8] sm:$0xff] %v742
    %922 = vst [vmem:[#allocation3] sm:$0xff] %v779
    %923 = vst [vmem:[#allocation3 + $0x8] sm:$0xff] %v781
    %924 = vst [vmem:[#allocation3 + $0x10] sm:$0xff] %v852
    %925 = vst [vmem:[#allocation3 + $0x18] sm:$0xff] %v854
    %926 = vst [vmem:[#allocation3 + $0x20] sm:$0xff] %v783
    %927 = vst [vmem:[#allocation3 + $0x28] sm:$0xff] %v785
    %928 = vst [vmem:[#allocation3 + $0x30] sm:$0xff] %v856
    %929 = vst [vmem:[#allocation3 + $0x38] sm:$0xff] %v858
    %930 = vst [vmem:[#allocation3 + $0x40] sm:$0xff] %v789
    %931 = vst [vmem:[#allocation3 + $0x48] sm:$0xff] %v791
    %932 = vst [vmem:[#allocation3 + $0x50] sm:$0xff] %v862
    %933 = vst [vmem:[#allocation3 + $0x58] sm:$0xff] %v864
    %934 = vst [vmem:[#allocation3 + $0x60] sm:$0xff] %v793
    %935 = vst [vmem:[#allocation3 + $0x68] sm:$0xff] %v795
    %936 = vst [vmem:[#allocation3 + $0x70] sm:$0xff] %v866
    %937 = vst [vmem:[#allocation3 + $0x78] sm:$0xff] %v868
    %938 = vst [vmem:[#allocation3 + $0x80] sm:$0xff] %v799
    %939 = vst [vmem:[#allocation3 + $0x88] sm:$0xff] %v801
    %940 = vst [vmem:[#allocation3 + $0x90] sm:$0xff] %v872
    %941 = vst [vmem:[#allocation3 + $0x98] sm:$0xff] %v874
    %942 = vst [vmem:[#allocation3 + $0xa0] sm:$0xff] %v803
    %943 = vst [vmem:[#allocation3 + $0xa8] sm:$0xff] %v805
    %944 = vst [vmem:[#allocation3 + $0xb0] sm:$0xff] %v876
    %945 = vst [vmem:[#allocation3 + $0xb8] sm:$0xff] %v878
    %946 = vst [vmem:[#allocation3 + $0xc0] sm:$0xff] %v809
    %947 = vst [vmem:[#allocation3 + $0xc8] sm:$0xff] %v811
    %948 = vst [vmem:[#allocation3 + $0xd0] sm:$0xff] %v882
    %949 = vst [vmem:[#allocation3 + $0xd8] sm:$0xff] %v884
    %950 = vst [vmem:[#allocation3 + $0xe0] sm:$0xff] %v813
    %951 = vst [vmem:[#allocation3 + $0xe8] sm:$0xff] %v815
    %952 = vst [vmem:[#allocation3 + $0xf0] sm:$0xff] %v886
    %953 = vst [vmem:[#allocation3 + $0xf8] sm:$0xff] %v888
    %v954 = vld [vmem:[#allocation8] sm:$0xff]
    %v955 = vld [vmem:[#allocation8 + $0x8] sm:$0xff]
    %v956 = vld [vmem:[#allocation8 + $0x10] sm:$0xff]
    %v957 = vld [vmem:[#allocation8 + $0x18] sm:$0xff]
    %v958 = vld [vmem:[#allocation8 + $0x20] sm:$0xff]
    %v959 = vld [vmem:[#allocation8 + $0x28] sm:$0xff]
    %v960 = vld [vmem:[#allocation8 + $0x30] sm:$0xff]
    %v961 = vld [vmem:[#allocation8 + $0x38] sm:$0xff]
    %v962 = vld [vmem:[#allocation8 + $0x40] sm:$0xff]
    %v963 = vld [vmem:[#allocation8 + $0x48] sm:$0xff]
    %v964 = vld [vmem:[#allocation8 + $0x50] sm:$0xff]
    %v965 = vld [vmem:[#allocation8 + $0x58] sm:$0xff]
    %v966 = vld [vmem:[#allocation8 + $0x60] sm:$0xff]
    %v967 = vld [vmem:[#allocation8 + $0x68] sm:$0xff]
    %v968 = vld [vmem:[#allocation8 + $0x70] sm:$0xff]
    %v969 = vld [vmem:[#allocation8 + $0x78] sm:$0xff]
    %v970 = vld [vmem:[#allocation8 + $0x80] sm:$0xff]
    %v971 = vld [vmem:[#allocation8 + $0x88] sm:$0xff]
    %v972 = vld [vmem:[#allocation8 + $0x90] sm:$0xff]
    %v973 = vld [vmem:[#allocation8 + $0x98] sm:$0xff]
    %v974 = vld [vmem:[#allocation8 + $0xa0] sm:$0xff]
    %v975 = vld [vmem:[#allocation8 + $0xa8] sm:$0xff]
    %v976 = vld [vmem:[#allocation8 + $0xb0] sm:$0xff]
    %v977 = vld [vmem:[#allocation8 + $0xb8] sm:$0xff]
    %v978 = vld [vmem:[#allocation8 + $0xc0] sm:$0xff]
    %v979 = vld [vmem:[#allocation8 + $0xc8] sm:$0xff]
    %v980 = vld [vmem:[#allocation8 + $0xd0] sm:$0xff]
    %v981 = vld [vmem:[#allocation8 + $0xd8] sm:$0xff]
    %v982 = vld [vmem:[#allocation8 + $0xe0] sm:$0xff]
    %v983 = vld [vmem:[#allocation8 + $0xe8] sm:$0xff]
    %v984 = vld [vmem:[#allocation8 + $0xf0] sm:$0xff]
    %v985 = vld [vmem:[#allocation8 + $0xf8] sm:$0xff]
    %v986 = vld [vmem:[#allocation10] sm:$0xff]
    %v987 = vld [vmem:[#allocation10 + $0x8] sm:$0xff]
    %v988 = vld [vmem:[#allocation10 + $0x10] sm:$0xff]
    %v989 = vld [vmem:[#allocation10 + $0x18] sm:$0xff]
    %v990 = vld [vmem:[#allocation10 + $0x20] sm:$0xff]
    %v991 = vld [vmem:[#allocation10 + $0x28] sm:$0xff]
    %v992 = vld [vmem:[#allocation10 + $0x30] sm:$0xff]
    %v993 = vld [vmem:[#allocation10 + $0x38] sm:$0xff]
    %v994 = vld [vmem:[#allocation10 + $0x40] sm:$0xff]
    %v995 = vld [vmem:[#allocation10 + $0x48] sm:$0xff]
    %v996 = vld [vmem:[#allocation10 + $0x50] sm:$0xff]
    %v997 = vld [vmem:[#allocation10 + $0x58] sm:$0xff]
    %v998 = vld [vmem:[#allocation10 + $0x60] sm:$0xff]
    %v999 = vld [vmem:[#allocation10 + $0x68] sm:$0xff]
    %v1000 = vld [vmem:[#allocation10 + $0x70] sm:$0xff]
    %v1001 = vld [vmem:[#allocation10 + $0x78] sm:$0xff]
    %v1002 = vld [vmem:[#allocation10 + $0x80] sm:$0xff]
    %v1003 = vld [vmem:[#allocation10 + $0x88] sm:$0xff]
    %v1004 = vld [vmem:[#allocation10 + $0x90] sm:$0xff]
    %v1005 = vld [vmem:[#allocation10 + $0x98] sm:$0xff]
    %v1006 = vld [vmem:[#allocation10 + $0xa0] sm:$0xff]
    %v1007 = vld [vmem:[#allocation10 + $0xa8] sm:$0xff]
    %v1008 = vld [vmem:[#allocation10 + $0xb0] sm:$0xff]
    %v1009 = vld [vmem:[#allocation10 + $0xb8] sm:$0xff]
    %v1010 = vld [vmem:[#allocation10 + $0xc0] sm:$0xff]
    %v1011 = vld [vmem:[#allocation10 + $0xc8] sm:$0xff]
    %v1012 = vld [vmem:[#allocation10 + $0xd0] sm:$0xff]
    %v1013 = vld [vmem:[#allocation10 + $0xd8] sm:$0xff]
    %v1014 = vld [vmem:[#allocation10 + $0xe0] sm:$0xff]
    %v1015 = vld [vmem:[#allocation10 + $0xe8] sm:$0xff]
    %v1016 = vld [vmem:[#allocation10 + $0xf0] sm:$0xff]
    %v1017 = vld [vmem:[#allocation10 + $0xf8] sm:$0xff]
    %v1018 = vld [vmem:[%s1] sm:$0xff]
    %vm1019 = vcmp.gt.f32.partialorder %v1018, 0.0
    %v1020 = vld [vmem:[#allocation2] sm:$0xff]
    %v1021 = vld [vmem:[#allocation2 + $0x8] sm:$0xff]
    %v1022 = vld [vmem:[#allocation2 + $0x10] sm:$0xff]
    %v1023 = vld [vmem:[#allocation2 + $0x18] sm:$0xff]
    %v1056 = vunpack.c.l.b16 %v954
    %v1057 = vunpack.c.h.b16 %v954
    %v1058 = vunpack.c.l.b16 %v955
    %v1059 = vunpack.c.h.b16 %v955
    %v1060 = vunpack.c.l.b16 %v956
    %v1061 = vunpack.c.h.b16 %v956
    %v1062 = vunpack.c.l.b16 %v957
    %v1063 = vunpack.c.h.b16 %v957
    %v1064 = vunpack.c.l.b16 %v958
    %v1065 = vunpack.c.h.b16 %v958
    %v1066 = vunpack.c.l.b16 %v959
    %v1067 = vunpack.c.h.b16 %v959
    %v1068 = vunpack.c.l.b16 %v960
    %v1069 = vunpack.c.h.b16 %v960
    %v1070 = vunpack.c.l.b16 %v961
    %v1071 = vunpack.c.h.b16 %v961
    %v1072 = vunpack.c.l.b16 %v962
    %v1073 = vunpack.c.h.b16 %v962
    %v1074 = vunpack.c.l.b16 %v963
    %v1075 = vunpack.c.h.b16 %v963
    %v1076 = vunpack.c.l.b16 %v964
    %v1077 = vunpack.c.h.b16 %v964
    %v1078 = vunpack.c.l.b16 %v965
    %v1079 = vunpack.c.h.b16 %v965
    %v1080 = vunpack.c.l.b16 %v966
    %v1081 = vunpack.c.h.b16 %v966
    %v1082 = vunpack.c.l.b16 %v967
    %v1083 = vunpack.c.h.b16 %v967
    %v1084 = vunpack.c.l.b16 %v968
    %v1085 = vunpack.c.h.b16 %v968
    %v1086 = vunpack.c.l.b16 %v969
    %v1087 = vunpack.c.h.b16 %v969
    %v1088 = vunpack.c.l.b16 %v970
    %v1089 = vunpack.c.h.b16 %v970
    %v1090 = vunpack.c.l.b16 %v971
    %v1091 = vunpack.c.h.b16 %v971
    %v1092 = vunpack.c.l.b16 %v972
    %v1093 = vunpack.c.h.b16 %v972
    %v1094 = vunpack.c.l.b16 %v973
    %v1095 = vunpack.c.h.b16 %v973
    %v1096 = vunpack.c.l.b16 %v974
    %v1097 = vunpack.c.h.b16 %v974
    %v1098 = vunpack.c.l.b16 %v975
    %v1099 = vunpack.c.h.b16 %v975
    %v1100 = vunpack.c.l.b16 %v976
    %v1101 = vunpack.c.h.b16 %v976
    %v1102 = vunpack.c.l.b16 %v977
    %v1103 = vunpack.c.h.b16 %v977
    %v1104 = vunpack.c.l.b16 %v978
    %v1105 = vunpack.c.h.b16 %v978
    %v1106 = vunpack.c.l.b16 %v979
    %v1107 = vunpack.c.h.b16 %v979
    %v1108 = vunpack.c.l.b16 %v980
    %v1109 = vunpack.c.h.b16 %v980
    %v1110 = vunpack.c.l.b16 %v981
    %v1111 = vunpack.c.h.b16 %v981
    %v1112 = vunpack.c.l.b16 %v982
    %v1113 = vunpack.c.h.b16 %v982
    %v1114 = vunpack.c.l.b16 %v983
    %v1115 = vunpack.c.h.b16 %v983
    %v1116 = vunpack.c.l.b16 %v984
    %v1117 = vunpack.c.h.b16 %v984
    %v1118 = vunpack.c.l.b16 %v985
    %v1119 = vunpack.c.h.b16 %v985
    %v1120 = vpack.c.b16 %v1060, %v1056
    %v1121 = vpack.c.b16 %v1061, %v1057
    %v1122 = vpack.c.b16 %v1062, %v1058
    %v1123 = vpack.c.b16 %v1063, %v1059
    %v1124 = vpack.c.b16 %v1068, %v1064
    %v1125 = vpack.c.b16 %v1069, %v1065
    %v1126 = vpack.c.b16 %v1070, %v1066
    %v1127 = vpack.c.b16 %v1071, %v1067
    %v1128 = vpack.c.b16 %v1076, %v1072
    %v1129 = vpack.c.b16 %v1077, %v1073
    %v1130 = vpack.c.b16 %v1078, %v1074
    %v1131 = vpack.c.b16 %v1079, %v1075
    %v1132 = vpack.c.b16 %v1084, %v1080
    %v1133 = vpack.c.b16 %v1085, %v1081
    %v1134 = vpack.c.b16 %v1086, %v1082
    %v1135 = vpack.c.b16 %v1087, %v1083
    %v1136 = vpack.c.b16 %v1092, %v1088
    %v1137 = vpack.c.b16 %v1093, %v1089
    %v1138 = vpack.c.b16 %v1094, %v1090
    %v1139 = vpack.c.b16 %v1095, %v1091
    %v1140 = vpack.c.b16 %v1100, %v1096
    %v1141 = vpack.c.b16 %v1101, %v1097
    %v1142 = vpack.c.b16 %v1102, %v1098
    %v1143 = vpack.c.b16 %v1103, %v1099
    %v1144 = vpack.c.b16 %v1108, %v1104
    %v1145 = vpack.c.b16 %v1109, %v1105
    %v1146 = vpack.c.b16 %v1110, %v1106
    %v1147 = vpack.c.b16 %v1111, %v1107
    %v1148 = vpack.c.b16 %v1116, %v1112
    %v1149 = vpack.c.b16 %v1117, %v1113
    %v1150 = vpack.c.b16 %v1118, %v1114
    %v1151 = vpack.c.b16 %v1119, %v1115
    %1184 = vmatprep.subr.bf16.mxu0 %v1121
    %1185 = vmatpush1.bf16.msra.mxu0 %v1120
    %1186 = vmatprep.subr.bf16.mxu0 %v1125
    %1187 = vmatpush1.bf16.msra.mxu0 %v1124
    %1188 = vmatprep.subr.bf16.mxu0 %v1129
    %1189 = vmatpush1.bf16.msra.mxu0 %v1128
    %1190 = vmatprep.subr.bf16.mxu0 %v1133
    %1191 = vmatpush1.bf16.msra.mxu0 %v1132
    %1192 = vmatprep.subr.bf16.mxu0 %v1137
    %1193 = vmatpush1.bf16.msra.mxu0 %v1136
    %1194 = vmatprep.subr.bf16.mxu0 %v1141
    %1195 = vmatpush1.bf16.msra.mxu0 %v1140
    %1196 = vmatprep.subr.bf16.mxu0 %v1145
    %1197 = vmatpush1.bf16.msra.mxu0 %v1144
    %1198 = vmatprep.subr.bf16.mxu0 %v1149
    %1199 = vmatpush1.bf16.msra.mxu0 %v1148
    %1200 = vmatprep.subr.bf16.mxu0 0
    %1201 = vmatpush1.bf16.msra.mxu0 0
    %1202 = vmatprep.subr.bf16.mxu0 0
    %1203 = vmatpush1.bf16.msra.mxu0 0
    %1204 = vmatprep.subr.bf16.mxu0 0
    %1205 = vmatpush1.bf16.msra.mxu0 0
    %1206 = vmatprep.subr.bf16.mxu0 0
    %1207 = vmatpush1.bf16.msra.mxu0 0
    %1208 = vmatprep.subr.bf16.mxu0 0
    %1209 = vmatpush1.bf16.msra.mxu0 0
    %1210 = vmatprep.subr.bf16.mxu0 0
    %1211 = vmatpush1.bf16.msra.mxu0 0
    %1212 = vmatprep.subr.bf16.mxu0 0
    %1213 = vmatpush1.bf16.msra.mxu0 0
    %1214 = vmatprep.subr.bf16.mxu0 0
    %1215 = vmatpush1.bf16.msra.mxu0 0
    %1216 = vmatprep.mubr.bf16.mxu0 0
    %1217 = vmatmul.mubr.bf16.gmra.mrb[0].mxu0 0
    %v1218 = vpop.f32.mrb[0].mxu0
    %v1219 = vadd.f32 0.0, %v1218
    %v1220 = vpop.f32.mrb[0].mxu0
    %v1221 = vadd.f32 0.0, %v1220
    %v1222 = vpop.f32.mrb[0].mxu0
    %v1223 = vpop.f32.mrb[0].mxu0
    %1224 = vdwg.mxu0
    %1225 = vmatprep.subr.bf16.mxu0 %v1123
    %1226 = vmatpush1.bf16.msra.mxu0 %v1122
    %1227 = vmatprep.subr.bf16.mxu0 %v1127
    %1228 = vmatpush1.bf16.msra.mxu0 %v1126
    %1229 = vmatprep.subr.bf16.mxu0 %v1131
    %1230 = vmatpush1.bf16.msra.mxu0 %v1130
    %1231 = vmatprep.subr.bf16.mxu0 %v1135
    %1232 = vmatpush1.bf16.msra.mxu0 %v1134
    %1233 = vmatprep.subr.bf16.mxu0 %v1139
    %1234 = vmatpush1.bf16.msra.mxu0 %v1138
    %1235 = vmatprep.subr.bf16.mxu0 %v1143
    %1236 = vmatpush1.bf16.msra.mxu0 %v1142
    %1237 = vmatprep.subr.bf16.mxu0 %v1147
    %1238 = vmatpush1.bf16.msra.mxu0 %v1146
    %1239 = vmatprep.subr.bf16.mxu0 %v1151
    %1240 = vmatpush1.bf16.msra.mxu0 %v1150
    %1241 = vmatprep.subr.bf16.mxu0 0
    %1242 = vmatpush1.bf16.msra.mxu0 0
    %1243 = vmatprep.subr.bf16.mxu0 0
    %1244 = vmatpush1.bf16.msra.mxu0 0
    %1245 = vmatprep.subr.bf16.mxu0 0
    %1246 = vmatpush1.bf16.msra.mxu0 0
    %1247 = vmatprep.subr.bf16.mxu0 0
    %1248 = vmatpush1.bf16.msra.mxu0 0
    %1249 = vmatprep.subr.bf16.mxu0 0
    %1250 = vmatpush1.bf16.msra.mxu0 0
    %1251 = vmatprep.subr.bf16.mxu0 0
    %1252 = vmatpush1.bf16.msra.mxu0 0
    %1253 = vmatprep.subr.bf16.mxu0 0
    %1254 = vmatpush1.bf16.msra.mxu0 0
    %1255 = vmatprep.subr.bf16.mxu0 0
    %1256 = vmatpush1.bf16.msra.mxu0 0
    %1257 = vmatprep.mubr.bf16.mxu0 0
    %1258 = vmatmul.mubr.bf16.gmra.mrb[0].mxu0 0
    %v1259 = vpop.f32.mrb[0].mxu0
    %v1260 = vadd.f32 0.0, %v1259
    %v1261 = vpop.f32.mrb[0].mxu0
    %v1262 = vadd.f32 0.0, %v1261
    %v1263 = vpop.f32.mrb[0].mxu0
    %v1264 = vpop.f32.mrb[0].mxu0
    %1265 = vdwg.mxu0
    %v1266 = vadd.f32 %v1020, %v1219
    %v1267 = vadd.f32 %v1021, %v1221
    %v1268 = vadd.f32 %v1022, %v1260
    %v1269 = vadd.f32 %v1023, %v1262
    %v1270 = vxor.u32 %v1266, 2147483648
    %v1271 = vxor.u32 %v1267, 2147483648
    %v1272 = vxor.u32 %v1268, 2147483648
    %v1273 = vmul.f32 %v1270, 1.442695
    %v1274 = vpow.pop %v1273
    %v1275 = vmul.f32 %v1271, 1.442695
    %v1276 = vpow.pop %v1275
    %v1277 = vmul.f32 %v1272, 1.442695
    %v1278 = vpow.pop %v1277
    %v1279 = vadd.f32 %v1274, 1.0
    %v1280 = vadd.f32 %v1276, 1.0
    %v1281 = vadd.f32 %v1278, 1.0
    %v1282 = vrcp.pop %v1279
    %v1283 = vmul.f32 1.0, %v1282
    %v1284 = vrcp.pop %v1280
    %v1285 = vmul.f32 1.0, %v1284
    %v1286 = vrcp.pop %v1281
    %v1287 = vmul.f32 1.0, %v1286
    %v1288 = vtanh.pop %v1269
    %v1289 = vmul.f32 %v1285, 0.0
    %v1290 = vmul.f32 %v1283, %v1288
    %v1291 = vadd.f32 %v1289, %v1290
    %v1292 = vtanh.pop %v1291
    %v1293 = vmul.f32 %v1287, %v1292
    %v1294 = vsel %vm1019, 1, 0
    %1295 = vset.pattern.permute.xlu0 0
    %1296 = vperm.xlu0 %1295, %v1294
    %v1297 = vpop.permute.xlu0 %1296
    %vm1298 = vcmp.eq.s32.totalorder %v1297, 1
    %v1299 = vsel %vm1298, %v1293, 0.0
    %v1300 = vsel %vm1298, %v1291, 0.0
    %s1301 = scalar_lea.vmem %s1, 8
    %v1302 = vld [vmem:[%s1301] sm:$0xff]
    %vm1303 = vcmp.gt.f32.partialorder %v1302, 0.0
    %s1304 = scalar_lea.vmem [#allocation2], 32
    %v1305 = vld [vmem:[%s1304] sm:$0xff]
    %v1306 = vld [vmem:[%s1304 + $0x8] sm:$0xff]
    %v1307 = vld [vmem:[%s1304 + $0x10] sm:$0xff]
    %v1308 = vld [vmem:[%s1304 + $0x18] sm:$0xff]
    %v1309 = vpack.c.bf16 %v1299, %v1299
    %1310 = vmatprep.subr.bf16.mxu0 %v1121
    %1311 = vmatpush1.bf16.msra.mxu0 %v1120
    %1312 = vmatprep.subr.bf16.mxu0 %v1125
    %1313 = vmatpush1.bf16.msra.mxu0 %v1124
    %1314 = vmatprep.subr.bf16.mxu0 %v1129
    %1315 = vmatpush1.bf16.msra.mxu0 %v1128
    %1316 = vmatprep.subr.bf16.mxu0 %v1133
    %1317 = vmatpush1.bf16.msra.mxu0 %v1132
    %1318 = vmatprep.subr.bf16.mxu0 %v1137
    %1319 = vmatpush1.bf16.msra.mxu0 %v1136
    %1320 = vmatprep.subr.bf16.mxu0 %v1141
    %1321 = vmatpush1.bf16.msra.mxu0 %v1140
    %1322 = vmatprep.subr.bf16.mxu0 %v1145
    %1323 = vmatpush1.bf16.msra.mxu0 %v1144
    %1324 = vmatprep.subr.bf16.mxu0 %v1149
    %1325 = vmatpush1.bf16.msra.mxu0 %v1148
    %1326 = vmatprep.subr.bf16.mxu0 0
    %1327 = vmatpush1.bf16.msra.mxu0 0
    %1328 = vmatprep.subr.bf16.mxu0 0
    %1329 = vmatpush1.bf16.msra.mxu0 0
    %1330 = vmatprep.subr.bf16.mxu0 0
    %1331 = vmatpush1.bf16.msra.mxu0 0
    %1332 = vmatprep.subr.bf16.mxu0 0
    %1333 = vmatpush1.bf16.msra.mxu0 0
    %1334 = vmatprep.subr.bf16.mxu0 0
    %1335 = vmatpush1.bf16.msra.mxu0 0
    %1336 = vmatprep.subr.bf16.mxu0 0
    %1337 = vmatpush1.bf16.msra.mxu0 0
    %1338 = vmatprep.subr.bf16.mxu0 0
    %1339 = vmatpush1.bf16.msra.mxu0 0
    %1340 = vmatprep.subr.bf16.mxu0 0
    %1341 = vmatpush1.bf16.msra.mxu0 0
    %1342 = vmatprep.mubr.bf16.mxu0 0
    %1343 = vmatmul.mubr.bf16.gmra.mrb[0].mxu0 %v1309
    %v1344 = vpop.f32.mrb[0].mxu0
    %v1345 = vadd.f32 0.0, %v1344
    %v1346 = vpop.f32.mrb[0].mxu0
    %v1347 = vadd.f32 0.0, %v1346
    %v1348 = vpop.f32.mrb[0].mxu0
    %v1349 = vpop.f32.mrb[0].mxu0
    %1350 = vdwg.mxu0
    %1351 = vmatprep.subr.bf16.mxu0 %v1123
    %1352 = vmatpush1.bf16.msra.mxu0 %v1122
    %1353 = vmatprep.subr.bf16.mxu0 %v1127
    %1354 = vmatpush1.bf16.msra.mxu0 %v1126
    %1355 = vmatprep.subr.bf16.mxu0 %v1131
    %1356 = vmatpush1.bf16.msra.mxu0 %v1130
    %1357 = vmatprep.subr.bf16.mxu0 %v1135
    %1358 = vmatpush1.bf16.msra.mxu0 %v1134
    %1359 = vmatprep.subr.bf16.mxu0 %v1139
    %1360 = vmatpush1.bf16.msra.mxu0 %v1138
    %1361 = vmatprep.subr.bf16.mxu0 %v1143
    %1362 = vmatpush1.bf16.msra.mxu0 %v1142
    %1363 = vmatprep.subr.bf16.mxu0 %v1147
    %1364 = vmatpush1.bf16.msra.mxu0 %v1146
    %1365 = vmatprep.subr.bf16.mxu0 %v1151
    %1366 = vmatpush1.bf16.msra.mxu0 %v1150
    %1367 = vmatprep.subr.bf16.mxu0 0
    %1368 = vmatpush1.bf16.msra.mxu0 0
    %1369 = vmatprep.subr.bf16.mxu0 0
    %1370 = vmatpush1.bf16.msra.mxu0 0
    %1371 = vmatprep.subr.bf16.mxu0 0
    %1372 = vmatpush1.bf16.msra.mxu0 0
    %1373 = vmatprep.subr.bf16.mxu0 0
    %1374 = vmatpush1.bf16.msra.mxu0 0
    %1375 = vmatprep.subr.bf16.mxu0 0
    %1376 = vmatpush1.bf16.msra.mxu0 0
    %1377 = vmatprep.subr.bf16.mxu0 0
    %1378 = vmatpush1.bf16.msra.mxu0 0
    %1379 = vmatprep.subr.bf16.mxu0 0
    %1380 = vmatpush1.bf16.msra.mxu0 0
    %1381 = vmatprep.subr.bf16.mxu0 0
    %1382 = vmatpush1.bf16.msra.mxu0 0
    %1383 = vmatprep.mubr.bf16.mxu0 0
    %1384 = vmatmul.mubr.bf16.gmra.mrb[0].mxu0 %v1309
    %v1385 = vpop.f32.mrb[0].mxu0
    %v1386 = vadd.f32 0.0, %v1385
    %v1387 = vpop.f32.mrb[0].mxu0
    %v1388 = vadd.f32 0.0, %v1387
    %v1389 = vpop.f32.mrb[0].mxu0
    %v1390 = vpop.f32.mrb[0].mxu0
    %1391 = vdwg.mxu0
    %v1392 = vadd.f32 %v1305, %v1345
    %v1393 = vadd.f32 %v1306, %v1347
    %v1394 = vadd.f32 %v1307, %v1386
    %v1395 = vadd.f32 %v1308, %v1388
    %v1396 = vxor.u32 %v1392, 2147483648
    %v1397 = vxor.u32 %v1393, 2147483648
    %v1398 = vxor.u32 %v1394, 2147483648
    %v1399 = vmul.f32 %v1396, 1.442695
    %v1400 = vpow.pop %v1399
    %v1401 = vmul.f32 %v1397, 1.442695
    %v1402 = vpow.pop %v1401
    %v1403 = vmul.f32 %v1398, 1.442695
    %v1404 = vpow.pop %v1403
    %v1405 = vadd.f32 %v1400, 1.0
    %v1406 = vadd.f32 %v1402, 1.0
    %v1407 = vadd.f32 %v1404, 1.0
    %v1408 = vrcp.pop %v1405
    %v1409 = vmul.f32 1.0, %v1408
    %v1410 = vrcp.pop %v1406
    %v1411 = vmul.f32 1.0, %v1410
    %v1412 = vrcp.pop %v1407
    %v1413 = vmul.f32 1.0, %v1412
    %v1414 = vtanh.pop %v1395
    %v1415 = vmul.f32 %v1411, %v1300
    %v1416 = vmul.f32 %v1409, %v1414
    %v1417 = vadd.f32 %v1415, %v1416
    %v1418 = vtanh.pop %v1417
    %v1419 = vmul.f32 %v1413, %v1418
    %v1420 = vsel %vm1303, 1, 0
    %1421 = vset.pattern.permute.xlu0 0
    %1422 = vperm.xlu0 %1421, %v1420
    %v1423 = vpop.permute.xlu0 %1422
    %vm1424 = vcmp.eq.s32.totalorder %v1423, 1
    %v1425 = vsel %vm1424, %v1419, %v1299
    %v1426 = vsel %vm1424, %v1417, %v1300
    %s1427 = scalar_lea.vmem %s1, 16
    %v1428 = vld [vmem:[%s1427] sm:$0xff]
    %vm1429 = vcmp.gt.f32.partialorder %v1428, 0.0
    %s1430 = scalar_lea.vmem [#allocation2], 64
    %v1431 = vld [vmem:[%s1430] sm:$0xff]
    %v1432 = vld [vmem:[%s1430 + $0x8] sm:$0xff]
    %v1433 = vld [vmem:[%s1430 + $0x10] sm:$0xff]
    %v1434 = vld [vmem:[%s1430 + $0x18] sm:$0xff]
    %v1435 = vpack.c.bf16 %v1425, %v1425
    %1436 = vmatprep.subr.bf16.mxu0 %v1121
    %1437 = vmatpush1.bf16.msra.mxu0 %v1120
    %1438 = vmatprep.subr.bf16.mxu0 %v1125
    %1439 = vmatpush1.bf16.msra.mxu0 %v1124
    %1440 = vmatprep.subr.bf16.mxu0 %v1129
    %1441 = vmatpush1.bf16.msra.mxu0 %v1128
    %1442 = vmatprep.subr.bf16.mxu0 %v1133
    %1443 = vmatpush1.bf16.msra.mxu0 %v1132
    %1444 = vmatprep.subr.bf16.mxu0 %v1137
    %1445 = vmatpush1.bf16.msra.mxu0 %v1136
    %1446 = vmatprep.subr.bf16.mxu0 %v1141
    %1447 = vmatpush1.bf16.msra.mxu0 %v1140
    %1448 = vmatprep.subr.bf16.mxu0 %v1145
    %1449 = vmatpush1.bf16.msra.mxu0 %v1144
    %1450 = vmatprep.subr.bf16.mxu0 %v1149
    %1451 = vmatpush1.bf16.msra.mxu0 %v1148
    %1452 = vmatprep.subr.bf16.mxu0 0
    %1453 = vmatpush1.bf16.msra.mxu0 0
    %1454 = vmatprep.subr.bf16.mxu0 0
    %1455 = vmatpush1.bf16.msra.mxu0 0
    %1456 = vmatprep.subr.bf16.mxu0 0
    %1457 = vmatpush1.bf16.msra.mxu0 0
    %1458 = vmatprep.subr.bf16.mxu0 0
    %1459 = vmatpush1.bf16.msra.mxu0 0
    %1460 = vmatprep.subr.bf16.mxu0 0
    %1461 = vmatpush1.bf16.msra.mxu0 0
    %1462 = vmatprep.subr.bf16.mxu0 0
    %1463 = vmatpush1.bf16.msra.mxu0 0
    %1464 = vmatprep.subr.bf16.mxu0 0
    %1465 = vmatpush1.bf16.msra.mxu0 0
    %1466 = vmatprep.subr.bf16.mxu0 0
    %1467 = vmatpush1.bf16.msra.mxu0 0
    %1468 = vmatprep.mubr.bf16.mxu0 0
    %1469 = vmatmul.mubr.bf16.gmra.mrb[0].mxu0 %v1435
    %v1470 = vpop.f32.mrb[0].mxu0
    %v1471 = vadd.f32 0.0, %v1470
    %v1472 = vpop.f32.mrb[0].mxu0
    %v1473 = vadd.f32 0.0, %v1472
    %v1474 = vpop.f32.mrb[0].mxu0
    %v1475 = vpop.f32.mrb[0].mxu0
    %1476 = vdwg.mxu0
    %1477 = vmatprep.subr.bf16.mxu0 %v1123
    %1478 = vmatpush1.bf16.msra.mxu0 %v1122
    %1479 = vmatprep.subr.bf16.mxu0 %v1127
    %1480 = vmatpush1.bf16.msra.mxu0 %v1126
    %1481 = vmatprep.subr.bf16.mxu0 %v1131
    %1482 = vmatpush1.bf16.msra.mxu0 %v1130
    %1483 = vmatprep.subr.bf16.mxu0 %v1135
    %1484 = vmatpush1.bf16.msra.mxu0 %v1134
    %1485 = vmatprep.subr.bf16.mxu0 %v1139
    %1486 = vmatpush1.bf16.msra.mxu0 %v1138
    %1487 = vmatprep.subr.bf16.mxu0 %v1143
    %1488 = vmatpush1.bf16.msra.mxu0 %v1142
    %1489 = vmatprep.subr.bf16.mxu0 %v1147
    %1490 = vmatpush1.bf16.msra.mxu0 %v1146
    %1491 = vmatprep.subr.bf16.mxu0 %v1151
    %1492 = vmatpush1.bf16.msra.mxu0 %v1150
    %1493 = vmatprep.subr.bf16.mxu0 0
    %1494 = vmatpush1.bf16.msra.mxu0 0
    %1495 = vmatprep.subr.bf16.mxu0 0
    %1496 = vmatpush1.bf16.msra.mxu0 0
    %1497 = vmatprep.subr.bf16.mxu0 0
    %1498 = vmatpush1.bf16.msra.mxu0 0
    %1499 = vmatprep.subr.bf16.mxu0 0
    %1500 = vmatpush1.bf16.msra.mxu0 0
    %1501 = vmatprep.subr.bf16.mxu0 0
    %1502 = vmatpush1.bf16.msra.mxu0 0
    %1503 = vmatprep.subr.bf16.mxu0 0
    %1504 = vmatpush1.bf16.msra.mxu0 0
    %1505 = vmatprep.subr.bf16.mxu0 0
    %1506 = vmatpush1.bf16.msra.mxu0 0
    %1507 = vmatprep.subr.bf16.mxu0 0
    %1508 = vmatpush1.bf16.msra.mxu0 0
    %1509 = vmatprep.mubr.bf16.mxu0 0
    %1510 = vmatmul.mubr.bf16.gmra.mrb[0].mxu0 %v1435
    %v1511 = vpop.f32.mrb[0].mxu0
    %v1512 = vadd.f32 0.0, %v1511
    %v1513 = vpop.f32.mrb[0].mxu0
    %v1514 = vadd.f32 0.0, %v1513
    %v1515 = vpop.f32.mrb[0].mxu0
    %v1516 = vpop.f32.mrb[0].mxu0
    %1517 = vdwg.mxu0
    %v1518 = vadd.f32 %v1431, %v1471
    %v1519 = vadd.f32 %v1432, %v1473
    %v1520 = vadd.f32 %v1433, %v1512
    %v1521 = vadd.f32 %v1434, %v1514
    %v1522 = vxor.u32 %v1518, 2147483648
    %v1523 = vxor.u32 %v1519, 2147483648
    %v1524 = vxor.u32 %v1520, 2147483648
    %v1525 = vmul.f32 %v1522, 1.442695
    %v1526 = vpow.pop %v1525
    %v1527 = vmul.f32 %v1523, 1.442695
    %v1528 = vpow.pop %v1527
    %v1529 = vmul.f32 %v1524, 1.442695
    %v1530 = vpow.pop %v1529
    %v1531 = vadd.f32 %v1526, 1.0
    %v1532 = vadd.f32 %v1528, 1.0
    %v1533 = vadd.f32 %v1530, 1.0
    %v1534 = vrcp.pop %v1531
    %v1535 = vmul.f32 1.0, %v1534
    %v1536 = vrcp.pop %v1532
    %v1537 = vmul.f32 1.0, %v1536
    %v1538 = vrcp.pop %v1533
    %v1539 = vmul.f32 1.0, %v1538
    %v1540 = vtanh.pop %v1521
    %v1541 = vmul.f32 %v1537, %v1426
    %v1542 = vmul.f32 %v1535, %v1540
    %v1543 = vadd.f32 %v1541, %v1542
    %v1544 = vtanh.pop %v1543
    %v1545 = vmul.f32 %v1539, %v1544
    %v1546 = vsel %vm1429, 1, 0
    %1547 = vset.pattern.permute.xlu0 0
    %1548 = vperm.xlu0 %1547, %v1546
    %v1549 = vpop.permute.xlu0 %1548
    %vm1550 = vcmp.eq.s32.totalorder %v1549, 1
    %v1551 = vsel %vm1550, %v1545, %v1425
    %v1552 = vsel %vm1550, %v1543, %v1426
    %s1553 = scalar_lea.vmem %s1, 24
    %v1554 = vld [vmem:[%s1553] sm:$0xff]
    %vm1555 = vcmp.gt.f32.partialorder %v1554, 0.0
    %s1556 = scalar_lea.vmem [#allocation2], 96
    %v1557 = vld [vmem:[%s1556] sm:$0xff]
    %v1558 = vld [vmem:[%s1556 + $0x8] sm:$0xff]
    %v1559 = vld [vmem:[%s1556 + $0x10] sm:$0xff]
    %v1560 = vld [vmem:[%s1556 + $0x18] sm:$0xff]
    %v1561 = vpack.c.bf16 %v1551, %v1551
    %1562 = vmatprep.subr.bf16.mxu0 %v1121
    %1563 = vmatpush1.bf16.msra.mxu0 %v1120
    %1564 = vmatprep.subr.bf16.mxu0 %v1125
    %1565 = vmatpush1.bf16.msra.mxu0 %v1124
    %1566 = vmatprep.subr.bf16.mxu0 %v1129
    %1567 = vmatpush1.bf16.msra.mxu0 %v1128
    %1568 = vmatprep.subr.bf16.mxu0 %v1133
    %1569 = vmatpush1.bf16.msra.mxu0 %v1132
    %1570 = vmatprep.subr.bf16.mxu0 %v1137
    %1571 = vmatpush1.bf16.msra.mxu0 %v1136
    %1572 = vmatprep.subr.bf16.mxu0 %v1141
    %1573 = vmatpush1.bf16.msra.mxu0 %v1140
    %1574 = vmatprep.subr.bf16.mxu0 %v1145
    %1575 = vmatpush1.bf16.msra.mxu0 %v1144
    %1576 = vmatprep.subr.bf16.mxu0 %v1149
    %1577 = vmatpush1.bf16.msra.mxu0 %v1148
    %1578 = vmatprep.subr.bf16.mxu0 0
    %1579 = vmatpush1.bf16.msra.mxu0 0
    %1580 = vmatprep.subr.bf16.mxu0 0
    %1581 = vmatpush1.bf16.msra.mxu0 0
    %1582 = vmatprep.subr.bf16.mxu0 0
    %1583 = vmatpush1.bf16.msra.mxu0 0
    %1584 = vmatprep.subr.bf16.mxu0 0
    %1585 = vmatpush1.bf16.msra.mxu0 0
    %1586 = vmatprep.subr.bf16.mxu0 0
    %1587 = vmatpush1.bf16.msra.mxu0 0
    %1588 = vmatprep.subr.bf16.mxu0 0
    %1589 = vmatpush1.bf16.msra.mxu0 0
    %1590 = vmatprep.subr.bf16.mxu0 0
    %1591 = vmatpush1.bf16.msra.mxu0 0
    %1592 = vmatprep.subr.bf16.mxu0 0
    %1593 = vmatpush1.bf16.msra.mxu0 0
    %1594 = vmatprep.mubr.bf16.mxu0 0
    %1595 = vmatmul.mubr.bf16.gmra.mrb[0].mxu0 %v1561
    %v1596 = vpop.f32.mrb[0].mxu0
    %v1597 = vadd.f32 0.0, %v1596
    %v1598 = vpop.f32.mrb[0].mxu0
    %v1599 = vadd.f32 0.0, %v1598
    %v1600 = vpop.f32.mrb[0].mxu0
    %v1601 = vpop.f32.mrb[0].mxu0
    %1602 = vdwg.mxu0
    %1603 = vmatprep.subr.bf16.mxu0 %v1123
    %1604 = vmatpush1.bf16.msra.mxu0 %v1122
    %1605 = vmatprep.subr.bf16.mxu0 %v1127
    %1606 = vmatpush1.bf16.msra.mxu0 %v1126
    %1607 = vmatprep.subr.bf16.mxu0 %v1131
    %1608 = vmatpush1.bf16.msra.mxu0 %v1130
    %1609 = vmatprep.subr.bf16.mxu0 %v1135
    %1610 = vmatpush1.bf16.msra.mxu0 %v1134
    %1611 = vmatprep.subr.bf16.mxu0 %v1139
    %1612 = vmatpush1.bf16.msra.mxu0 %v1138
    %1613 = vmatprep.subr.bf16.mxu0 %v1143
    %1614 = vmatpush1.bf16.msra.mxu0 %v1142
    %1615 = vmatprep.subr.bf16.mxu0 %v1147
    %1616 = vmatpush1.bf16.msra.mxu0 %v1146
    %1617 = vmatprep.subr.bf16.mxu0 %v1151
    %1618 = vmatpush1.bf16.msra.mxu0 %v1150
    %1619 = vmatprep.subr.bf16.mxu0 0
    %1620 = vmatpush1.bf16.msra.mxu0 0
    %1621 = vmatprep.subr.bf16.mxu0 0
    %1622 = vmatpush1.bf16.msra.mxu0 0
    %1623 = vmatprep.subr.bf16.mxu0 0
    %1624 = vmatpush1.bf16.msra.mxu0 0
    %1625 = vmatprep.subr.bf16.mxu0 0
    %1626 = vmatpush1.bf16.msra.mxu0 0
    %1627 = vmatprep.subr.bf16.mxu0 0
    %1628 = vmatpush1.bf16.msra.mxu0 0
    %1629 = vmatprep.subr.bf16.mxu0 0
    %1630 = vmatpush1.bf16.msra.mxu0 0
    %1631 = vmatprep.subr.bf16.mxu0 0
    %1632 = vmatpush1.bf16.msra.mxu0 0
    %1633 = vmatprep.subr.bf16.mxu0 0
    %1634 = vmatpush1.bf16.msra.mxu0 0
    %1635 = vmatprep.mubr.bf16.mxu0 0
    %1636 = vmatmul.mubr.bf16.gmra.mrb[0].mxu0 %v1561
    %v1637 = vpop.f32.mrb[0].mxu0
    %v1638 = vadd.f32 0.0, %v1637
    %v1639 = vpop.f32.mrb[0].mxu0
    %v1640 = vadd.f32 0.0, %v1639
    %v1641 = vpop.f32.mrb[0].mxu0
    %v1642 = vpop.f32.mrb[0].mxu0
    %1643 = vdwg.mxu0
    %v1644 = vadd.f32 %v1557, %v1597
    %v1645 = vadd.f32 %v1558, %v1599
    %v1646 = vadd.f32 %v1559, %v1638
    %v1647 = vadd.f32 %v1560, %v1640
    %v1648 = vxor.u32 %v1644, 2147483648
    %v1649 = vxor.u32 %v1645, 2147483648
    %v1650 = vxor.u32 %v1646, 2147483648
    %v1651 = vmul.f32 %v1648, 1.442695
    %v1652 = vpow.pop %v1651
    %v1653 = vmul.f32 %v1649, 1.442695
    %v1654 = vpow.pop %v1653
    %v1655 = vmul.f32 %v1650, 1.442695
    %v1656 = vpow.pop %v1655
    %v1657 = vadd.f32 %v1652, 1.0
    %v1658 = vadd.f32 %v1654, 1.0
    %v1659 = vadd.f32 %v1656, 1.0
    %v1660 = vrcp.pop %v1657
    %v1661 = vmul.f32 1.0, %v1660
    %v1662 = vrcp.pop %v1658
    %v1663 = vmul.f32 1.0, %v1662
    %v1664 = vrcp.pop %v1659
    %v1665 = vmul.f32 1.0, %v1664
    %v1666 = vtanh.pop %v1647
    %v1667 = vmul.f32 %v1663, %v1552
    %v1668 = vmul.f32 %v1661, %v1666
    %v1669 = vadd.f32 %v1667, %v1668
    %v1670 = vtanh.pop %v1669
    %v1671 = vmul.f32 %v1665, %v1670
    %v1672 = vsel %vm1555, 1, 0
    %1673 = vset.pattern.permute.xlu0 0
    %1674 = vperm.xlu0 %1673, %v1672
    %v1675 = vpop.permute.xlu0 %1674
    %vm1676 = vcmp.eq.s32.totalorder %v1675, 1
    %v1677 = vsel %vm1676, %v1671, %v1551
    %v1678 = vsel %vm1676, %v1669, %v1552
    %s1679 = scalar_lea.vmem %s1, 32
    %v1680 = vld [vmem:[%s1679] sm:$0xff]
    %vm1681 = vcmp.gt.f32.partialorder %v1680, 0.0
    %s1682 = scalar_lea.vmem [#allocation2], 128
    %v1683 = vld [vmem:[%s1682] sm:$0xff]
    %v1684 = vld [vmem:[%s1682 + $0x8] sm:$0xff]
    %v1685 = vld [vmem:[%s1682 + $0x10] sm:$0xff]
    %v1686 = vld [vmem:[%s1682 + $0x18] sm:$0xff]
    %v1687 = vpack.c.bf16 %v1677, %v1677
    %1688 = vmatprep.subr.bf16.mxu0 %v1121
    %1689 = vmatpush1.bf16.msra.mxu0 %v1120
    %1690 = vmatprep.subr.bf16.mxu0 %v1125
    %1691 = vmatpush1.bf16.msra.mxu0 %v1124
    %1692 = vmatprep.subr.bf16.mxu0 %v1129
    %1693 = vmatpush1.bf16.msra.mxu0 %v1128
    %1694 = vmatprep.subr.bf16.mxu0 %v1133
    %1695 = vmatpush1.bf16.msra.mxu0 %v1132
    %1696 = vmatprep.subr.bf16.mxu0 %v1137
    %1697 = vmatpush1.bf16.msra.mxu0 %v1136
    %1698 = vmatprep.subr.bf16.mxu0 %v1141
    %1699 = vmatpush1.bf16.msra.mxu0 %v1140
    %1700 = vmatprep.subr.bf16.mxu0 %v1145
    %1701 = vmatpush1.bf16.msra.mxu0 %v1144
    %1702 = vmatprep.subr.bf16.mxu0 %v1149
    %1703 = vmatpush1.bf16.msra.mxu0 %v1148
    %1704 = vmatprep.subr.bf16.mxu0 0
    %1705 = vmatpush1.bf16.msra.mxu0 0
    %1706 = vmatprep.subr.bf16.mxu0 0
    %1707 = vmatpush1.bf16.msra.mxu0 0
    %1708 = vmatprep.subr.bf16.mxu0 0
    %1709 = vmatpush1.bf16.msra.mxu0 0
    %1710 = vmatprep.subr.bf16.mxu0 0
    %1711 = vmatpush1.bf16.msra.mxu0 0
    %1712 = vmatprep.subr.bf16.mxu0 0
    %1713 = vmatpush1.bf16.msra.mxu0 0
    %1714 = vmatprep.subr.bf16.mxu0 0
    %1715 = vmatpush1.bf16.msra.mxu0 0
    %1716 = vmatprep.subr.bf16.mxu0 0
    %1717 = vmatpush1.bf16.msra.mxu0 0
    %1718 = vmatprep.subr.bf16.mxu0 0
    %1719 = vmatpush1.bf16.msra.mxu0 0
    %1720 = vmatprep.mubr.bf16.mxu0 0
    %1721 = vmatmul.mubr.bf16.gmra.mrb[0].mxu0 %v1687
    %v1722 = vpop.f32.mrb[0].mxu0
    %v1723 = vadd.f32 0.0, %v1722
    %v1724 = vpop.f32.mrb[0].mxu0
    %v1725 = vadd.f32 0.0, %v1724
    %v1726 = vpop.f32.mrb[0].mxu0
    %v1727 = vpop.f32.mrb[0].mxu0
    %1728 = vdwg.mxu0
    %1729 = vmatprep.subr.bf16.mxu0 %v1123
    %1730 = vmatpush1.bf16.msra.mxu0 %v1122
    %1731 = vmatprep.subr.bf16.mxu0 %v1127
    %1732 = vmatpush1.bf16.msra.mxu0 %v1126
    %1733 = vmatprep.subr.bf16.mxu0 %v1131
    %1734 = vmatpush1.bf16.msra.mxu0 %v1130
    %1735 = vmatprep.subr.bf16.mxu0 %v1135
    %1736 = vmatpush1.bf16.msra.mxu0 %v1134
    %1737 = vmatprep.subr.bf16.mxu0 %v1139
    %1738 = vmatpush1.bf16.msra.mxu0 %v1138
    %1739 = vmatprep.subr.bf16.mxu0 %v1143
    %1740 = vmatpush1.bf16.msra.mxu0 %v1142
    %1741 = vmatprep.subr.bf16.mxu0 %v1147
    %1742 = vmatpush1.bf16.msra.mxu0 %v1146
    %1743 = vmatprep.subr.bf16.mxu0 %v1151
    %1744 = vmatpush1.bf16.msra.mxu0 %v1150
    %1745 = vmatprep.subr.bf16.mxu0 0
    %1746 = vmatpush1.bf16.msra.mxu0 0
    %1747 = vmatprep.subr.bf16.mxu0 0
    %1748 = vmatpush1.bf16.msra.mxu0 0
    %1749 = vmatprep.subr.bf16.mxu0 0
    %1750 = vmatpush1.bf16.msra.mxu0 0
    %1751 = vmatprep.subr.bf16.mxu0 0
    %1752 = vmatpush1.bf16.msra.mxu0 0
    %1753 = vmatprep.subr.bf16.mxu0 0
    %1754 = vmatpush1.bf16.msra.mxu0 0
    %1755 = vmatprep.subr.bf16.mxu0 0
    %1756 = vmatpush1.bf16.msra.mxu0 0
    %1757 = vmatprep.subr.bf16.mxu0 0
    %1758 = vmatpush1.bf16.msra.mxu0 0
    %1759 = vmatprep.subr.bf16.mxu0 0
    %1760 = vmatpush1.bf16.msra.mxu0 0
    %1761 = vmatprep.mubr.bf16.mxu0 0
    %1762 = vmatmul.mubr.bf16.gmra.mrb[0].mxu0 %v1687
    %v1763 = vpop.f32.mrb[0].mxu0
    %v1764 = vadd.f32 0.0, %v1763
    %v1765 = vpop.f32.mrb[0].mxu0
    %v1766 = vadd.f32 0.0, %v1765
    %v1767 = vpop.f32.mrb[0].mxu0
    %v1768 = vpop.f32.mrb[0].mxu0
    %1769 = vdwg.mxu0
    %v1770 = vadd.f32 %v1683, %v1723
    %v1771 = vadd.f32 %v1684, %v1725
    %v1772 = vadd.f32 %v1685, %v1764
    %v1773 = vadd.f32 %v1686, %v1766
    %v1774 = vxor.u32 %v1770, 2147483648
    %v1775 = vxor.u32 %v1771, 2147483648
    %v1776 = vxor.u32 %v1772, 2147483648
    %v1777 = vmul.f32 %v1774, 1.442695
    %v1778 = vpow.pop %v1777
    %v1779 = vmul.f32 %v1775, 1.442695
    %v1780 = vpow.pop %v1779
    %v1781 = vmul.f32 %v1776, 1.442695
    %v1782 = vpow.pop %v1781
    %v1783 = vadd.f32 %v1778, 1.0
    %v1784 = vadd.f32 %v1780, 1.0
    %v1785 = vadd.f32 %v1782, 1.0
    %v1786 = vrcp.pop %v1783
    %v1787 = vmul.f32 1.0, %v1786
    %v1788 = vrcp.pop %v1784
    %v1789 = vmul.f32 1.0, %v1788
    %v1790 = vrcp.pop %v1785
    %v1791 = vmul.f32 1.0, %v1790
    %v1792 = vtanh.pop %v1773
    %v1793 = vmul.f32 %v1789, %v1678
    %v1794 = vmul.f32 %v1787, %v1792
    %v1795 = vadd.f32 %v1793, %v1794
    %v1796 = vtanh.pop %v1795
    %v1797 = vmul.f32 %v1791, %v1796
    %v1798 = vsel %vm1681, 1, 0
    %1799 = vset.pattern.permute.xlu0 0
    %1800 = vperm.xlu0 %1799, %v1798
    %v1801 = vpop.permute.xlu0 %1800
    %vm1802 = vcmp.eq.s32.totalorder %v1801, 1
    %v1803 = vsel %vm1802, %v1797, %v1677
    %v1804 = vsel %vm1802, %v1795, %v1678
    %s1805 = scalar_lea.vmem %s1, 40
    %v1806 = vld [vmem:[%s1805] sm:$0xff]
    %vm1807 = vcmp.gt.f32.partialorder %v1806, 0.0
    %s1808 = scalar_lea.vmem [#allocation2], 160
    %v1809 = vld [vmem:[%s1808] sm:$0xff]
    %v1810 = vld [vmem:[%s1808 + $0x8] sm:$0xff]
    %v1811 = vld [vmem:[%s1808 + $0x10] sm:$0xff]
    %v1812 = vld [vmem:[%s1808 + $0x18] sm:$0xff]
    %v1813 = vpack.c.bf16 %v1803, %v1803
    %1814 = vmatprep.subr.bf16.mxu0 %v1121
    %1815 = vmatpush1.bf16.msra.mxu0 %v1120
    %1816 = vmatprep.subr.bf16.mxu0 %v1125
    %1817 = vmatpush1.bf16.msra.mxu0 %v1124
    %1818 = vmatprep.subr.bf16.mxu0 %v1129
    %1819 = vmatpush1.bf16.msra.mxu0 %v1128
    %1820 = vmatprep.subr.bf16.mxu0 %v1133
    %1821 = vmatpush1.bf16.msra.mxu0 %v1132
    %1822 = vmatprep.subr.bf16.mxu0 %v1137
    %1823 = vmatpush1.bf16.msra.mxu0 %v1136
    %1824 = vmatprep.subr.bf16.mxu0 %v1141
    %1825 = vmatpush1.bf16.msra.mxu0 %v1140
    %1826 = vmatprep.subr.bf16.mxu0 %v1145
    %1827 = vmatpush1.bf16.msra.mxu0 %v1144
    %1828 = vmatprep.subr.bf16.mxu0 %v1149
    %1829 = vmatpush1.bf16.msra.mxu0 %v1148
    %1830 = vmatprep.subr.bf16.mxu0 0
    %1831 = vmatpush1.bf16.msra.mxu0 0
    %1832 = vmatprep.subr.bf16.mxu0 0
    %1833 = vmatpush1.bf16.msra.mxu0 0
    %1834 = vmatprep.subr.bf16.mxu0 0
    %1835 = vmatpush1.bf16.msra.mxu0 0
    %1836 = vmatprep.subr.bf16.mxu0 0
    %1837 = vmatpush1.bf16.msra.mxu0 0
    %1838 = vmatprep.subr.bf16.mxu0 0
    %1839 = vmatpush1.bf16.msra.mxu0 0
    %1840 = vmatprep.subr.bf16.mxu0 0
    %1841 = vmatpush1.bf16.msra.mxu0 0
    %1842 = vmatprep.subr.bf16.mxu0 0
    %1843 = vmatpush1.bf16.msra.mxu0 0
    %1844 = vmatprep.subr.bf16.mxu0 0
    %1845 = vmatpush1.bf16.msra.mxu0 0
    %1846 = vmatprep.mubr.bf16.mxu0 0
    %1847 = vmatmul.mubr.bf16.gmra.mrb[0].mxu0 %v1813
    %v1848 = vpop.f32.mrb[0].mxu0
    %v1849 = vadd.f32 0.0, %v1848
    %v1850 = vpop.f32.mrb[0].mxu0
    %v1851 = vadd.f32 0.0, %v1850
    %v1852 = vpop.f32.mrb[0].mxu0
    %v1853 = vpop.f32.mrb[0].mxu0
    %1854 = vdwg.mxu0
    %1855 = vmatprep.subr.bf16.mxu0 %v1123
    %1856 = vmatpush1.bf16.msra.mxu0 %v1122
    %1857 = vmatprep.subr.bf16.mxu0 %v1127
    %1858 = vmatpush1.bf16.msra.mxu0 %v1126
    %1859 = vmatprep.subr.bf16.mxu0 %v1131
    %1860 = vmatpush1.bf16.msra.mxu0 %v1130
    %1861 = vmatprep.subr.bf16.mxu0 %v1135
    %1862 = vmatpush1.bf16.msra.mxu0 %v1134
    %1863 = vmatprep.subr.bf16.mxu0 %v1139
    %1864 = vmatpush1.bf16.msra.mxu0 %v1138
    %1865 = vmatprep.subr.bf16.mxu0 %v1143
    %1866 = vmatpush1.bf16.msra.mxu0 %v1142
    %1867 = vmatprep.subr.bf16.mxu0 %v1147
    %1868 = vmatpush1.bf16.msra.mxu0 %v1146
    %1869 = vmatprep.subr.bf16.mxu0 %v1151
    %1870 = vmatpush1.bf16.msra.mxu0 %v1150
    %1871 = vmatprep.subr.bf16.mxu0 0
    %1872 = vmatpush1.bf16.msra.mxu0 0
    %1873 = vmatprep.subr.bf16.mxu0 0
    %1874 = vmatpush1.bf16.msra.mxu0 0
    %1875 = vmatprep.subr.bf16.mxu0 0
    %1876 = vmatpush1.bf16.msra.mxu0 0
    %1877 = vmatprep.subr.bf16.mxu0 0
    %1878 = vmatpush1.bf16.msra.mxu0 0
    %1879 = vmatprep.subr.bf16.mxu0 0
    %1880 = vmatpush1.bf16.msra.mxu0 0
    %1881 = vmatprep.subr.bf16.mxu0 0
    %1882 = vmatpush1.bf16.msra.mxu0 0
    %1883 = vmatprep.subr.bf16.mxu0 0
    %1884 = vmatpush1.bf16.msra.mxu0 0
    %1885 = vmatprep.subr.bf16.mxu0 0
    %1886 = vmatpush1.bf16.msra.mxu0 0
    %1887 = vmatprep.mubr.bf16.mxu0 0
    %1888 = vmatmul.mubr.bf16.gmra.mrb[0].mxu0 %v1813
    %v1889 = vpop.f32.mrb[0].mxu0
    %v1890 = vadd.f32 0.0, %v1889
    %v1891 = vpop.f32.mrb[0].mxu0
    %v1892 = vadd.f32 0.0, %v1891
    %v1893 = vpop.f32.mrb[0].mxu0
    %v1894 = vpop.f32.mrb[0].mxu0
    %1895 = vdwg.mxu0
    %v1896 = vadd.f32 %v1809, %v1849
    %v1897 = vadd.f32 %v1810, %v1851
    %v1898 = vadd.f32 %v1811, %v1890
    %v1899 = vadd.f32 %v1812, %v1892
    %v1900 = vxor.u32 %v1896, 2147483648
    %v1901 = vxor.u32 %v1897, 2147483648
    %v1902 = vxor.u32 %v1898, 2147483648
    %v1903 = vmul.f32 %v1900, 1.442695
    %v1904 = vpow.pop %v1903
    %v1905 = vmul.f32 %v1901, 1.442695
    %v1906 = vpow.pop %v1905
    %v1907 = vmul.f32 %v1902, 1.442695
    %v1908 = vpow.pop %v1907
    %v1909 = vadd.f32 %v1904, 1.0
    %v1910 = vadd.f32 %v1906, 1.0
    %v1911 = vadd.f32 %v1908, 1.0
    %v1912 = vrcp.pop %v1909
    %v1913 = vmul.f32 1.0, %v1912
    %v1914 = vrcp.pop %v1910
    %v1915 = vmul.f32 1.0, %v1914
    %v1916 = vrcp.pop %v1911
    %v1917 = vmul.f32 1.0, %v1916
    %v1918 = vtanh.pop %v1899
    %v1919 = vmul.f32 %v1915, %v1804
    %v1920 = vmul.f32 %v1913, %v1918
    %v1921 = vadd.f32 %v1919, %v1920
    %v1922 = vtanh.pop %v1921
    %v1923 = vmul.f32 %v1917, %v1922
    %v1924 = vsel %vm1807, 1, 0
    %1925 = vset.pattern.permute.xlu0 0
    %1926 = vperm.xlu0 %1925, %v1924
    %v1927 = vpop.permute.xlu0 %1926
    %vm1928 = vcmp.eq.s32.totalorder %v1927, 1
    %v1929 = vsel %vm1928, %v1923, %v1803
    %v1930 = vsel %vm1928, %v1921, %v1804
    %s1931 = scalar_lea.vmem %s1, 48
    %v1932 = vld [vmem:[%s1931] sm:$0xff]
    %vm1933 = vcmp.gt.f32.partialorder %v1932, 0.0
    %s1934 = scalar_lea.vmem [#allocation2], 192
    %v1935 = vld [vmem:[%s1934] sm:$0xff]
    %v1936 = vld [vmem:[%s1934 + $0x8] sm:$0xff]
    %v1937 = vld [vmem:[%s1934 + $0x10] sm:$0xff]
    %v1938 = vld [vmem:[%s1934 + $0x18] sm:$0xff]
    %v1939 = vpack.c.bf16 %v1929, %v1929
    %1940 = vmatprep.subr.bf16.mxu0 %v1121
    %1941 = vmatpush1.bf16.msra.mxu0 %v1120
    %1942 = vmatprep.subr.bf16.mxu0 %v1125
    %1943 = vmatpush1.bf16.msra.mxu0 %v1124
    %1944 = vmatprep.subr.bf16.mxu0 %v1129
    %1945 = vmatpush1.bf16.msra.mxu0 %v1128
    %1946 = vmatprep.subr.bf16.mxu0 %v1133
    %1947 = vmatpush1.bf16.msra.mxu0 %v1132
    %1948 = vmatprep.subr.bf16.mxu0 %v1137
    %1949 = vmatpush1.bf16.msra.mxu0 %v1136
    %1950 = vmatprep.subr.bf16.mxu0 %v1141
    %1951 = vmatpush1.bf16.msra.mxu0 %v1140
    %1952 = vmatprep.subr.bf16.mxu0 %v1145
    %1953 = vmatpush1.bf16.msra.mxu0 %v1144
    %1954 = vmatprep.subr.bf16.mxu0 %v1149
    %1955 = vmatpush1.bf16.msra.mxu0 %v1148
    %1956 = vmatprep.subr.bf16.mxu0 0
    %1957 = vmatpush1.bf16.msra.mxu0 0
    %1958 = vmatprep.subr.bf16.mxu0 0
    %1959 = vmatpush1.bf16.msra.mxu0 0
    %1960 = vmatprep.subr.bf16.mxu0 0
    %1961 = vmatpush1.bf16.msra.mxu0 0
    %1962 = vmatprep.subr.bf16.mxu0 0
    %1963 = vmatpush1.bf16.msra.mxu0 0
    %1964 = vmatprep.subr.bf16.mxu0 0
    %1965 = vmatpush1.bf16.msra.mxu0 0
    %1966 = vmatprep.subr.bf16.mxu0 0
    %1967 = vmatpush1.bf16.msra.mxu0 0
    %1968 = vmatprep.subr.bf16.mxu0 0
    %1969 = vmatpush1.bf16.msra.mxu0 0
    %1970 = vmatprep.subr.bf16.mxu0 0
    %1971 = vmatpush1.bf16.msra.mxu0 0
    %1972 = vmatprep.mubr.bf16.mxu0 0
    %1973 = vmatmul.mubr.bf16.gmra.mrb[0].mxu0 %v1939
    %v1974 = vpop.f32.mrb[0].mxu0
    %v1975 = vadd.f32 0.0, %v1974
    %v1976 = vpop.f32.mrb[0].mxu0
    %v1977 = vadd.f32 0.0, %v1976
    %v1978 = vpop.f32.mrb[0].mxu0
    %v1979 = vpop.f32.mrb[0].mxu0
    %1980 = vdwg.mxu0
    %1981 = vmatprep.subr.bf16.mxu0 %v1123
    %1982 = vmatpush1.bf16.msra.mxu0 %v1122
    %1983 = vmatprep.subr.bf16.mxu0 %v1127
    %1984 = vmatpush1.bf16.msra.mxu0 %v1126
    %1985 = vmatprep.subr.bf16.mxu0 %v1131
    %1986 = vmatpush1.bf16.msra.mxu0 %v1130
    %1987 = vmatprep.subr.bf16.mxu0 %v1135
    %1988 = vmatpush1.bf16.msra.mxu0 %v1134
    %1989 = vmatprep.subr.bf16.mxu0 %v1139
    %1990 = vmatpush1.bf16.msra.mxu0 %v1138
    %1991 = vmatprep.subr.bf16.mxu0 %v1143
    %1992 = vmatpush1.bf16.msra.mxu0 %v1142
    %1993 = vmatprep.subr.bf16.mxu0 %v1147
    %1994 = vmatpush1.bf16.msra.mxu0 %v1146
    %1995 = vmatprep.subr.bf16.mxu0 %v1151
    %1996 = vmatpush1.bf16.msra.mxu0 %v1150
    %1997 = vmatprep.subr.bf16.mxu0 0
    %1998 = vmatpush1.bf16.msra.mxu0 0
    %1999 = vmatprep.subr.bf16.mxu0 0
    %2000 = vmatpush1.bf16.msra.mxu0 0
    %2001 = vmatprep.subr.bf16.mxu0 0
    %2002 = vmatpush1.bf16.msra.mxu0 0
    %2003 = vmatprep.subr.bf16.mxu0 0
    %2004 = vmatpush1.bf16.msra.mxu0 0
    %2005 = vmatprep.subr.bf16.mxu0 0
    %2006 = vmatpush1.bf16.msra.mxu0 0
    %2007 = vmatprep.subr.bf16.mxu0 0
    %2008 = vmatpush1.bf16.msra.mxu0 0
    %2009 = vmatprep.subr.bf16.mxu0 0
    %2010 = vmatpush1.bf16.msra.mxu0 0
    %2011 = vmatprep.subr.bf16.mxu0 0
    %2012 = vmatpush1.bf16.msra.mxu0 0
    %2013 = vmatprep.mubr.bf16.mxu0 0
    %2014 = vmatmul.mubr.bf16.gmra.mrb[0].mxu0 %v1939
    %v2015 = vpop.f32.mrb[0].mxu0
    %v2016 = vadd.f32 0.0, %v2015
    %v2017 = vpop.f32.mrb[0].mxu0
    %v2018 = vadd.f32 0.0, %v2017
    %v2019 = vpop.f32.mrb[0].mxu0
    %v2020 = vpop.f32.mrb[0].mxu0
    %2021 = vdwg.mxu0
    %v2022 = vadd.f32 %v1935, %v1975
    %v2023 = vadd.f32 %v1936, %v1977
    %v2024 = vadd.f32 %v1937, %v2016
    %v2025 = vadd.f32 %v1938, %v2018
    %v2026 = vxor.u32 %v2022, 2147483648
    %v2027 = vxor.u32 %v2023, 2147483648
    %v2028 = vxor.u32 %v2024, 2147483648
    %v2029 = vmul.f32 %v2026, 1.442695
    %v2030 = vpow.pop %v2029
    %v2031 = vmul.f32 %v2027, 1.442695
    %v2032 = vpow.pop %v2031
    %v2033 = vmul.f32 %v2028, 1.442695
    %v2034 = vpow.pop %v2033
    %v2035 = vadd.f32 %v2030, 1.0
    %v2036 = vadd.f32 %v2032, 1.0
    %v2037 = vadd.f32 %v2034, 1.0
    %v2038 = vrcp.pop %v2035
    %v2039 = vmul.f32 1.0, %v2038
    %v2040 = vrcp.pop %v2036
    %v2041 = vmul.f32 1.0, %v2040
    %v2042 = vrcp.pop %v2037
    %v2043 = vmul.f32 1.0, %v2042
    %v2044 = vtanh.pop %v2025
    %v2045 = vmul.f32 %v2041, %v1930
    %v2046 = vmul.f32 %v2039, %v2044
    %v2047 = vadd.f32 %v2045, %v2046
    %v2048 = vtanh.pop %v2047
    %v2049 = vmul.f32 %v2043, %v2048
    %v2050 = vsel %vm1933, 1, 0
    %2051 = vset.pattern.permute.xlu0 0
    %2052 = vperm.xlu0 %2051, %v2050
    %v2053 = vpop.permute.xlu0 %2052
    %vm2054 = vcmp.eq.s32.totalorder %v2053, 1
    %v2055 = vsel %vm2054, %v2049, %v1929
    %v2056 = vsel %vm2054, %v2047, %v1930
    %s2057 = scalar_lea.vmem %s1, 56
    %v2058 = vld [vmem:[%s2057] sm:$0xff]
    %vm2059 = vcmp.gt.f32.partialorder %v2058, 0.0
    %s2060 = scalar_lea.vmem [#allocation2], 224
    %v2061 = vld [vmem:[%s2060] sm:$0xff]
    %v2062 = vld [vmem:[%s2060 + $0x8] sm:$0xff]
    %v2063 = vld [vmem:[%s2060 + $0x10] sm:$0xff]
    %v2064 = vld [vmem:[%s2060 + $0x18] sm:$0xff]
    %v2065 = vpack.c.bf16 %v2055, %v2055
    %2066 = vmatprep.subr.bf16.mxu0 %v1121
    %2067 = vmatpush1.bf16.msra.mxu0 %v1120
    %2068 = vmatprep.subr.bf16.mxu0 %v1125
    %2069 = vmatpush1.bf16.msra.mxu0 %v1124
    %2070 = vmatprep.subr.bf16.mxu0 %v1129
    %2071 = vmatpush1.bf16.msra.mxu0 %v1128
    %2072 = vmatprep.subr.bf16.mxu0 %v1133
    %2073 = vmatpush1.bf16.msra.mxu0 %v1132
    %2074 = vmatprep.subr.bf16.mxu0 %v1137
    %2075 = vmatpush1.bf16.msra.mxu0 %v1136
    %2076 = vmatprep.subr.bf16.mxu0 %v1141
    %2077 = vmatpush1.bf16.msra.mxu0 %v1140
    %2078 = vmatprep.subr.bf16.mxu0 %v1145
    %2079 = vmatpush1.bf16.msra.mxu0 %v1144
    %2080 = vmatprep.subr.bf16.mxu0 %v1149
    %2081 = vmatpush1.bf16.msra.mxu0 %v1148
    %2082 = vmatprep.subr.bf16.mxu0 0
    %2083 = vmatpush1.bf16.msra.mxu0 0
    %2084 = vmatprep.subr.bf16.mxu0 0
    %2085 = vmatpush1.bf16.msra.mxu0 0
    %2086 = vmatprep.subr.bf16.mxu0 0
    %2087 = vmatpush1.bf16.msra.mxu0 0
    %2088 = vmatprep.subr.bf16.mxu0 0
    %2089 = vmatpush1.bf16.msra.mxu0 0
    %2090 = vmatprep.subr.bf16.mxu0 0
    %2091 = vmatpush1.bf16.msra.mxu0 0
    %2092 = vmatprep.subr.bf16.mxu0 0
    %2093 = vmatpush1.bf16.msra.mxu0 0
    %2094 = vmatprep.subr.bf16.mxu0 0
    %2095 = vmatpush1.bf16.msra.mxu0 0
    %2096 = vmatprep.subr.bf16.mxu0 0
    %2097 = vmatpush1.bf16.msra.mxu0 0
    %2098 = vmatprep.mubr.bf16.mxu0 0
    %2099 = vmatmul.mubr.bf16.gmra.mrb[0].mxu0 %v2065
    %v2100 = vpop.f32.mrb[0].mxu0
    %v2101 = vadd.f32 0.0, %v2100
    %v2102 = vpop.f32.mrb[0].mxu0
    %v2103 = vadd.f32 0.0, %v2102
    %v2104 = vpop.f32.mrb[0].mxu0
    %v2105 = vpop.f32.mrb[0].mxu0
    %2106 = vdwg.mxu0
    %2107 = vmatprep.subr.bf16.mxu0 %v1123
    %2108 = vmatpush1.bf16.msra.mxu0 %v1122
    %2109 = vmatprep.subr.bf16.mxu0 %v1127
    %2110 = vmatpush1.bf16.msra.mxu0 %v1126
    %2111 = vmatprep.subr.bf16.mxu0 %v1131
    %2112 = vmatpush1.bf16.msra.mxu0 %v1130
    %2113 = vmatprep.subr.bf16.mxu0 %v1135
    %2114 = vmatpush1.bf16.msra.mxu0 %v1134
    %2115 = vmatprep.subr.bf16.mxu0 %v1139
    %2116 = vmatpush1.bf16.msra.mxu0 %v1138
    %2117 = vmatprep.subr.bf16.mxu0 %v1143
    %2118 = vmatpush1.bf16.msra.mxu0 %v1142
    %2119 = vmatprep.subr.bf16.mxu0 %v1147
    %2120 = vmatpush1.bf16.msra.mxu0 %v1146
    %2121 = vmatprep.subr.bf16.mxu0 %v1151
    %2122 = vmatpush1.bf16.msra.mxu0 %v1150
    %2123 = vmatprep.subr.bf16.mxu0 0
    %2124 = vmatpush1.bf16.msra.mxu0 0
    %2125 = vmatprep.subr.bf16.mxu0 0
    %2126 = vmatpush1.bf16.msra.mxu0 0
    %2127 = vmatprep.subr.bf16.mxu0 0
    %2128 = vmatpush1.bf16.msra.mxu0 0
    %2129 = vmatprep.subr.bf16.mxu0 0
    %2130 = vmatpush1.bf16.msra.mxu0 0
    %2131 = vmatprep.subr.bf16.mxu0 0
    %2132 = vmatpush1.bf16.msra.mxu0 0
    %2133 = vmatprep.subr.bf16.mxu0 0
    %2134 = vmatpush1.bf16.msra.mxu0 0
    %2135 = vmatprep.subr.bf16.mxu0 0
    %2136 = vmatpush1.bf16.msra.mxu0 0
    %2137 = vmatprep.subr.bf16.mxu0 0
    %2138 = vmatpush1.bf16.msra.mxu0 0
    %2139 = vmatprep.mubr.bf16.mxu0 0
    %2140 = vmatmul.mubr.bf16.gmra.mrb[0].mxu0 %v2065
    %v2141 = vpop.f32.mrb[0].mxu0
    %v2142 = vadd.f32 0.0, %v2141
    %v2143 = vpop.f32.mrb[0].mxu0
    %v2144 = vadd.f32 0.0, %v2143
    %v2145 = vpop.f32.mrb[0].mxu0
    %v2146 = vpop.f32.mrb[0].mxu0
    %2147 = vdwg.mxu0
    %v2148 = vadd.f32 %v2061, %v2101
    %v2149 = vadd.f32 %v2062, %v2103
    %v2150 = vadd.f32 %v2063, %v2142
    %v2151 = vadd.f32 %v2064, %v2144
    %v2152 = vxor.u32 %v2148, 2147483648
    %v2153 = vxor.u32 %v2149, 2147483648
    %v2154 = vxor.u32 %v2150, 2147483648
    %v2155 = vmul.f32 %v2152, 1.442695
    %v2156 = vpow.pop %v2155
    %v2157 = vmul.f32 %v2153, 1.442695
    %v2158 = vpow.pop %v2157
    %v2159 = vmul.f32 %v2154, 1.442695
    %v2160 = vpow.pop %v2159
    %v2161 = vadd.f32 %v2156, 1.0
    %v2162 = vadd.f32 %v2158, 1.0
    %v2163 = vadd.f32 %v2160, 1.0
    %v2164 = vrcp.pop %v2161
    %v2165 = vmul.f32 1.0, %v2164
    %v2166 = vrcp.pop %v2162
    %v2167 = vmul.f32 1.0, %v2166
    %v2168 = vrcp.pop %v2163
    %v2169 = vmul.f32 1.0, %v2168
    %v2170 = vtanh.pop %v2151
    %v2171 = vmul.f32 %v2167, %v2056
    %v2172 = vmul.f32 %v2165, %v2170
    %v2173 = vadd.f32 %v2171, %v2172
    %v2174 = vtanh.pop %v2173
    %v2175 = vmul.f32 %v2169, %v2174
    %v2176 = vsel %vm2059, 1, 0
    %2177 = vset.pattern.permute.xlu0 0
    %2178 = vperm.xlu0 %2177, %v2176
    %v2179 = vpop.permute.xlu0 %2178
    %vm2180 = vcmp.eq.s32.totalorder %v2179, 1
    %v2181 = vsel %vm2180, %v2175, %v2055
    %v2182 = vld [vmem:[#allocation11] sm:$0xff]
    %v2183 = vld [vmem:[#allocation11 + $0x8] sm:$0xff]
    %v2184 = vld [vmem:[#allocation11 + $0x10] sm:$0xff]
    %v2185 = vld [vmem:[#allocation11 + $0x18] sm:$0xff]
    %v2186 = vld [vmem:[#allocation11 + $0x20] sm:$0xff]
    %v2187 = vld [vmem:[#allocation11 + $0x28] sm:$0xff]
    %v2188 = vld [vmem:[#allocation11 + $0x30] sm:$0xff]
    %v2189 = vld [vmem:[#allocation11 + $0x38] sm:$0xff]
    %v2190 = vld [vmem:[#allocation11 + $0x40] sm:$0xff]
    %v2191 = vld [vmem:[#allocation11 + $0x48] sm:$0xff]
    %v2192 = vld [vmem:[#allocation11 + $0x50] sm:$0xff]
    %v2193 = vld [vmem:[#allocation11 + $0x58] sm:$0xff]
    %v2194 = vld [vmem:[#allocation11 + $0x60] sm:$0xff]
    %v2195 = vld [vmem:[#allocation11 + $0x68] sm:$0xff]
    %v2196 = vld [vmem:[#allocation11 + $0x70] sm:$0xff]
    %v2197 = vld [vmem:[#allocation11 + $0x78] sm:$0xff]
    %v2198 = vld [vmem:[#allocation11 + $0x80] sm:$0xff]
    %v2199 = vld [vmem:[#allocation11 + $0x88] sm:$0xff]
    %v2200 = vld [vmem:[#allocation11 + $0x90] sm:$0xff]
    %v2201 = vld [vmem:[#allocation11 + $0x98] sm:$0xff]
    %v2202 = vld [vmem:[#allocation11 + $0xa0] sm:$0xff]
    %v2203 = vld [vmem:[#allocation11 + $0xa8] sm:$0xff]
    %v2204 = vld [vmem:[#allocation11 + $0xb0] sm:$0xff]
    %v2205 = vld [vmem:[#allocation11 + $0xb8] sm:$0xff]
    %v2206 = vld [vmem:[#allocation11 + $0xc0] sm:$0xff]
    %v2207 = vld [vmem:[#allocation11 + $0xc8] sm:$0xff]
    %v2208 = vld [vmem:[#allocation11 + $0xd0] sm:$0xff]
    %v2209 = vld [vmem:[#allocation11 + $0xd8] sm:$0xff]
    %v2210 = vld [vmem:[#allocation11 + $0xe0] sm:$0xff]
    %v2211 = vld [vmem:[#allocation11 + $0xe8] sm:$0xff]
    %v2212 = vld [vmem:[#allocation11 + $0xf0] sm:$0xff]
    %v2213 = vld [vmem:[#allocation11 + $0xf8] sm:$0xff]
    %v2214 = vld [vmem:[%s8] sm:$0x3]
    %v2216 = vlaneseq
    %v2217 = vshrl.u32 %v2216, 7
    %v2218 = vsub.s32 0, %v2217
    %v2219 = vrot.slane %v2214, %v2218
    %v2220 = vlaneseq
    %v2221 = vshrl.u32 %v2220, 7
    %v2222 = vsub.s32 1, %v2221
    %v2223 = vrot.slane %v2214, %v2222
    %2226 = vmatprep.subr.mxu0 %v2183
    %2227 = vmatpush1.msra.mxu0 %v2182
    %2228 = vmatprep.subr.mxu0 %v2185
    %2229 = vmatpush1.msra.mxu0 %v2184
    %2230 = vmatprep.subr.mxu0 %v2187
    %2231 = vmatpush1.msra.mxu0 %v2186
    %2232 = vmatprep.subr.mxu0 %v2189
    %2233 = vmatpush1.msra.mxu0 %v2188
    %2234 = vmatprep.subr.mxu0 %v2191
    %2235 = vmatpush1.msra.mxu0 %v2190
    %2236 = vmatprep.subr.mxu0 %v2193
    %2237 = vmatpush1.msra.mxu0 %v2192
    %2238 = vmatprep.subr.mxu0 %v2195
    %2239 = vmatpush1.msra.mxu0 %v2194
    %2240 = vmatprep.subr.mxu0 %v2197
    %2241 = vmatpush1.msra.mxu0 %v2196
    %2242 = vmatprep.subr.mxu0 %v2199
    %2243 = vmatpush1.msra.mxu0 %v2198
    %2244 = vmatprep.subr.mxu0 %v2201
    %2245 = vmatpush1.msra.mxu0 %v2200
    %2246 = vmatprep.subr.mxu0 %v2203
    %2247 = vmatpush1.msra.mxu0 %v2202
    %2248 = vmatprep.subr.mxu0 %v2205
    %2249 = vmatpush1.msra.mxu0 %v2204
    %2250 = vmatprep.subr.mxu0 %v2207
    %2251 = vmatpush1.msra.mxu0 %v2206
    %2252 = vmatprep.subr.mxu0 %v2209
    %2253 = vmatpush1.msra.mxu0 %v2208
    %2254 = vmatprep.subr.mxu0 %v2211
    %2255 = vmatpush1.msra.mxu0 %v2210
    %2256 = vmatprep.subr.mxu0 %v2213
    %2257 = vmatpush1.msra.mxu0 %v2212
    %2258 = vmatprep.subr.mxu0 0.0
    %2259 = vmatpush1.msra.mxu0 0.0
    %2260 = vmatprep.subr.mxu0 0.0
    %2261 = vmatpush1.msra.mxu0 0.0
    %2262 = vmatprep.subr.mxu0 0.0
    %2263 = vmatpush1.msra.mxu0 0.0
    %2264 = vmatprep.subr.mxu0 0.0
    %2265 = vmatpush1.msra.mxu0 0.0
    %2266 = vmatprep.subr.mxu0 0.0
    %2267 = vmatpush1.msra.mxu0 0.0
    %2268 = vmatprep.subr.mxu0 0.0
    %2269 = vmatpush1.msra.mxu0 0.0
    %2270 = vmatprep.subr.mxu0 0.0
    %2271 = vmatpush1.msra.mxu0 0.0
    %2272 = vmatprep.subr.mxu0 0.0
    %2273 = vmatpush1.msra.mxu0 0.0
    %2274 = vmatprep.subr.mxu0 0.0
    %2275 = vmatpush1.msra.mxu0 0.0
    %2276 = vmatprep.subr.mxu0 0.0
    %2277 = vmatpush1.msra.mxu0 0.0
    %2278 = vmatprep.subr.mxu0 0.0
    %2279 = vmatpush1.msra.mxu0 0.0
    %2280 = vmatprep.subr.mxu0 0.0
    %2281 = vmatpush1.msra.mxu0 0.0
    %2282 = vmatprep.subr.mxu0 0.0
    %2283 = vmatpush1.msra.mxu0 0.0
    %2284 = vmatprep.subr.mxu0 0.0
    %2285 = vmatpush1.msra.mxu0 0.0
    %2286 = vmatprep.subr.mxu0 0.0
    %2287 = vmatpush1.msra.mxu0 0.0
    %2288 = vmatprep.subr.mxu0 0.0
    %2289 = vmatpush1.msra.mxu0 0.0
    %2290 = vmatprep.mubr.f32.mxu0 0.0
    %2291 = vmatmul.mubr.f32.gmra.mrb[0].mxu0 %v2181
    %v2292 = vpop.f32.mrb[0].mxu0
    %v2293 = vadd.f32 %v2219, %v2292
    %v2294 = vpop.f32.mrb[0].mxu0
    %v2295 = vadd.f32 %v2223, %v2294
    %2296 = vdwg.mxu0
    %v2297 = vmul.f32 %v2295, 0.5
    %v2298 = vmul.f32 %v2297, 1.442695
    %v2299 = vpow.pop %v2298
    %v2300 = vld [vmem:[%s2] sm:$0xff]
    %v2301 = vmul.f32 %v2299, %v2300
    %v2302 = vadd.f32 %v2293, %v2301
    %2303 = vst [vmem:[#allocation17] sm:$0xff] %v2293
    %2304 = vst [vmem:[#allocation19] sm:$0xff] %v2295
    %2305 = vst [vmem:[#allocation20] sm:$0xff] %v2302
    %v2306 = vld [vmem:[#allocation13] sm:$0xff]
    %v2307 = vld [vmem:[#allocation13 + $0x8] sm:$0xff]
    %v2308 = vld [vmem:[#allocation13 + $0x10] sm:$0xff]
    %v2309 = vld [vmem:[#allocation13 + $0x18] sm:$0xff]
    %v2310 = vld [vmem:[#allocation13 + $0x20] sm:$0xff]
    %v2311 = vld [vmem:[#allocation13 + $0x28] sm:$0xff]
    %v2312 = vld [vmem:[#allocation13 + $0x30] sm:$0xff]
    %v2313 = vld [vmem:[#allocation13 + $0x38] sm:$0xff]
    %v2314 = vld [vmem:[#allocation13 + $0x40] sm:$0xff]
    %v2315 = vld [vmem:[#allocation13 + $0x48] sm:$0xff]
    %v2316 = vld [vmem:[#allocation13 + $0x50] sm:$0xff]
    %v2317 = vld [vmem:[#allocation13 + $0x58] sm:$0xff]
    %v2318 = vld [vmem:[#allocation13 + $0x60] sm:$0xff]
    %v2319 = vld [vmem:[#allocation13 + $0x68] sm:$0xff]
    %v2320 = vld [vmem:[#allocation13 + $0x70] sm:$0xff]
    %v2321 = vld [vmem:[#allocation13 + $0x78] sm:$0xff]
    %v2322 = vld [vmem:[%s10] sm:$0x1]
    %v2324 = vlaneseq
    %v2325 = vshrl.u32 %v2324, 7
    %v2326 = vsub.s32 0, %v2325
    %v2327 = vrot.slane %v2322, %v2326
    %2329 = vmatprep.subr.mxu0 0.0
    %2330 = vmatpush1.msra.mxu0 %v2306
    %2331 = vmatprep.subr.mxu0 0.0
    %2332 = vmatpush1.msra.mxu0 %v2307
    %2333 = vmatprep.subr.mxu0 0.0
    %2334 = vmatpush1.msra.mxu0 %v2308
    %2335 = vmatprep.subr.mxu0 0.0
    %2336 = vmatpush1.msra.mxu0 %v2309
    %2337 = vmatprep.subr.mxu0 0.0
    %2338 = vmatpush1.msra.mxu0 %v2310
    %2339 = vmatprep.subr.mxu0 0.0
    %2340 = vmatpush1.msra.mxu0 %v2311
    %2341 = vmatprep.subr.mxu0 0.0
    %2342 = vmatpush1.msra.mxu0 %v2312
    %2343 = vmatprep.subr.mxu0 0.0
    %2344 = vmatpush1.msra.mxu0 %v2313
    %2345 = vmatprep.subr.mxu0 0.0
    %2346 = vmatpush1.msra.mxu0 %v2314
    %2347 = vmatprep.subr.mxu0 0.0
    %2348 = vmatpush1.msra.mxu0 %v2315
    %2349 = vmatprep.subr.mxu0 0.0
    %2350 = vmatpush1.msra.mxu0 %v2316
    %2351 = vmatprep.subr.mxu0 0.0
    %2352 = vmatpush1.msra.mxu0 %v2317
    %2353 = vmatprep.subr.mxu0 0.0
    %2354 = vmatpush1.msra.mxu0 %v2318
    %2355 = vmatprep.subr.mxu0 0.0
    %2356 = vmatpush1.msra.mxu0 %v2319
    %2357 = vmatprep.subr.mxu0 0.0
    %2358 = vmatpush1.msra.mxu0 %v2320
    %2359 = vmatprep.subr.mxu0 0.0
    %2360 = vmatpush1.msra.mxu0 %v2321
    %2361 = vmatprep.subr.mxu0 0.0
    %2362 = vmatpush1.msra.mxu0 0.0
    %2363 = vmatprep.subr.mxu0 0.0
    %2364 = vmatpush1.msra.mxu0 0.0
    %2365 = vmatprep.subr.mxu0 0.0
    %2366 = vmatpush1.msra.mxu0 0.0
    %2367 = vmatprep.subr.mxu0 0.0
    %2368 = vmatpush1.msra.mxu0 0.0
    %2369 = vmatprep.subr.mxu0 0.0
    %2370 = vmatpush1.msra.mxu0 0.0
    %2371 = vmatprep.subr.mxu0 0.0
    %2372 = vmatpush1.msra.mxu0 0.0
    %2373 = vmatprep.subr.mxu0 0.0
    %2374 = vmatpush1.msra.mxu0 0.0
    %2375 = vmatprep.subr.mxu0 0.0
    %2376 = vmatpush1.msra.mxu0 0.0
    %2377 = vmatprep.subr.mxu0 0.0
    %2378 = vmatpush1.msra.mxu0 0.0
    %2379 = vmatprep.subr.mxu0 0.0
    %2380 = vmatpush1.msra.mxu0 0.0
    %2381 = vmatprep.subr.mxu0 0.0
    %2382 = vmatpush1.msra.mxu0 0.0
    %2383 = vmatprep.subr.mxu0 0.0
    %2384 = vmatpush1.msra.mxu0 0.0
    %2385 = vmatprep.subr.mxu0 0.0
    %2386 = vmatpush1.msra.mxu0 0.0
    %2387 = vmatprep.subr.mxu0 0.0
    %2388 = vmatpush1.msra.mxu0 0.0
    %2389 = vmatprep.subr.mxu0 0.0
    %2390 = vmatpush1.msra.mxu0 0.0
    %2391 = vmatprep.subr.mxu0 0.0
    %2392 = vmatpush1.msra.mxu0 0.0
    %2393 = vmatprep.mubr.f32.mxu0 0.0
    %2394 = vmatmul.mubr.f32.gmra.mrb[0].mxu0 %v2302
    %v2395 = vpop.f32.mrb[0].mxu0
    %v2396 = vadd.f32 %v2327, %v2395
    %v2397 = vpop.f32.mrb[0].mxu0
    %2398 = vdwg.mxu0
    %v2399 = vld [vmem:[#allocation14] sm:$0xff]
    %v2400 = vld [vmem:[#allocation14 + $0x8] sm:$0xff]
    %v2401 = vld [vmem:[#allocation14 + $0x10] sm:$0xff]
    %v2402 = vld [vmem:[#allocation14 + $0x18] sm:$0xff]
    %v2403 = vld [vmem:[#allocation14 + $0x20] sm:$0xff]
    %v2404 = vld [vmem:[#allocation14 + $0x28] sm:$0xff]
    %v2405 = vld [vmem:[#allocation14 + $0x30] sm:$0xff]
    %v2406 = vld [vmem:[#allocation14 + $0x38] sm:$0xff]
    %v2407 = vld [vmem:[#allocation14 + $0x40] sm:$0xff]
    %v2408 = vld [vmem:[#allocation14 + $0x48] sm:$0xff]
    %v2409 = vld [vmem:[#allocation14 + $0x50] sm:$0xff]
    %v2410 = vld [vmem:[#allocation14 + $0x58] sm:$0xff]
    %v2411 = vld [vmem:[#allocation14 + $0x60] sm:$0xff]
    %v2412 = vld [vmem:[#allocation14 + $0x68] sm:$0xff]
    %v2413 = vld [vmem:[#allocation14 + $0x70] sm:$0xff]
    %v2414 = vld [vmem:[#allocation14 + $0x78] sm:$0xff]
    %v2415 = vld [vmem:[%s12] sm:$0x1]
    %v2417 = vlaneseq
    %v2418 = vshrl.u32 %v2417, 7
    %v2419 = vsub.s32 0, %v2418
    %v2420 = vrot.slane %v2415, %v2419
    %2422 = vmatprep.subr.mxu0 0.0
    %2423 = vmatpush1.msra.mxu0 %v2399
    %2424 = vmatprep.subr.mxu0 0.0
    %2425 = vmatpush1.msra.mxu0 %v2400
    %2426 = vmatprep.subr.mxu0 0.0
    %2427 = vmatpush1.msra.mxu0 %v2401
    %2428 = vmatprep.subr.mxu0 0.0
    %2429 = vmatpush1.msra.mxu0 %v2402
    %2430 = vmatprep.subr.mxu0 0.0
    %2431 = vmatpush1.msra.mxu0 %v2403
    %2432 = vmatprep.subr.mxu0 0.0
    %2433 = vmatpush1.msra.mxu0 %v2404
    %2434 = vmatprep.subr.mxu0 0.0
    %2435 = vmatpush1.msra.mxu0 %v2405
    %2436 = vmatprep.subr.mxu0 0.0
    %2437 = vmatpush1.msra.mxu0 %v2406
    %2438 = vmatprep.subr.mxu0 0.0
    %2439 = vmatpush1.msra.mxu0 %v2407
    %2440 = vmatprep.subr.mxu0 0.0
    %2441 = vmatpush1.msra.mxu0 %v2408
    %2442 = vmatprep.subr.mxu0 0.0
    %2443 = vmatpush1.msra.mxu0 %v2409
    %2444 = vmatprep.subr.mxu0 0.0
    %2445 = vmatpush1.msra.mxu0 %v2410
    %2446 = vmatprep.subr.mxu0 0.0
    %2447 = vmatpush1.msra.mxu0 %v2411
    %2448 = vmatprep.subr.mxu0 0.0
    %2449 = vmatpush1.msra.mxu0 %v2412
    %2450 = vmatprep.subr.mxu0 0.0
    %2451 = vmatpush1.msra.mxu0 %v2413
    %2452 = vmatprep.subr.mxu0 0.0
    %2453 = vmatpush1.msra.mxu0 %v2414
    %2454 = vmatprep.subr.mxu0 0.0
    %2455 = vmatpush1.msra.mxu0 0.0
    %2456 = vmatprep.subr.mxu0 0.0
    %2457 = vmatpush1.msra.mxu0 0.0
    %2458 = vmatprep.subr.mxu0 0.0
    %2459 = vmatpush1.msra.mxu0 0.0
    %2460 = vmatprep.subr.mxu0 0.0
    %2461 = vmatpush1.msra.mxu0 0.0
    %2462 = vmatprep.subr.mxu0 0.0
    %2463 = vmatpush1.msra.mxu0 0.0
    %2464 = vmatprep.subr.mxu0 0.0
    %2465 = vmatpush1.msra.mxu0 0.0
    %2466 = vmatprep.subr.mxu0 0.0
    %2467 = vmatpush1.msra.mxu0 0.0
    %2468 = vmatprep.subr.mxu0 0.0
    %2469 = vmatpush1.msra.mxu0 0.0
    %2470 = vmatprep.subr.mxu0 0.0
    %2471 = vmatpush1.msra.mxu0 0.0
    %2472 = vmatprep.subr.mxu0 0.0
    %2473 = vmatpush1.msra.mxu0 0.0
    %2474 = vmatprep.subr.mxu0 0.0
    %2475 = vmatpush1.msra.mxu0 0.0
    %2476 = vmatprep.subr.mxu0 0.0
    %2477 = vmatpush1.msra.mxu0 0.0
    %2478 = vmatprep.subr.mxu0 0.0
    %2479 = vmatpush1.msra.mxu0 0.0
    %2480 = vmatprep.subr.mxu0 0.0
    %2481 = vmatpush1.msra.mxu0 0.0
    %2482 = vmatprep.subr.mxu0 0.0
    %2483 = vmatpush1.msra.mxu0 0.0
    %2484 = vmatprep.subr.mxu0 0.0
    %2485 = vmatpush1.msra.mxu0 0.0
    %2486 = vmatprep.mubr.f32.mxu0 0.0
    %2487 = vmatmul.mubr.f32.gmra.mrb[0].mxu0 %v2302
    %v2488 = vpop.f32.mrb[0].mxu0
    %v2489 = vadd.f32 %v2420, %v2488
    %v2490 = vpop.f32.mrb[0].mxu0
    %2491 = vdwg.mxu0
    %v2492 = vld [vmem:[%s1] sm:$0xff]
    %vm2493 = vcmp.gt.f32.partialorder %v2492, 0.0
    %v2494 = vld [vmem:[#allocation3] sm:$0xff]
    %v2495 = vld [vmem:[#allocation3 + $0x8] sm:$0xff]
    %v2496 = vld [vmem:[#allocation3 + $0x10] sm:$0xff]
    %v2497 = vld [vmem:[#allocation3 + $0x18] sm:$0xff]
    %v2498 = vpack.c.bf16 %v2396, %v2396
    %v2531 = vunpack.c.l.b16 %v986
    %v2532 = vunpack.c.h.b16 %v986
    %v2533 = vunpack.c.l.b16 %v987
    %v2534 = vunpack.c.h.b16 %v987
    %v2535 = vunpack.c.l.b16 %v988
    %v2536 = vunpack.c.h.b16 %v988
    %v2537 = vunpack.c.l.b16 %v989
    %v2538 = vunpack.c.h.b16 %v989
    %v2539 = vunpack.c.l.b16 %v990
    %v2540 = vunpack.c.h.b16 %v990
    %v2541 = vunpack.c.l.b16 %v991
    %v2542 = vunpack.c.h.b16 %v991
    %v2543 = vunpack.c.l.b16 %v992
    %v2544 = vunpack.c.h.b16 %v992
    %v2545 = vunpack.c.l.b16 %v993
    %v2546 = vunpack.c.h.b16 %v993
    %v2547 = vunpack.c.l.b16 %v994
    %v2548 = vunpack.c.h.b16 %v994
    %v2549 = vunpack.c.l.b16 %v995
    %v2550 = vunpack.c.h.b16 %v995
    %v2551 = vunpack.c.l.b16 %v996
    %v2552 = vunpack.c.h.b16 %v996
    %v2553 = vunpack.c.l.b16 %v997
    %v2554 = vunpack.c.h.b16 %v997
    %v2555 = vunpack.c.l.b16 %v998
    %v2556 = vunpack.c.h.b16 %v998
    %v2557 = vunpack.c.l.b16 %v999
    %v2558 = vunpack.c.h.b16 %v999
    %v2559 = vunpack.c.l.b16 %v1000
    %v2560 = vunpack.c.h.b16 %v1000
    %v2561 = vunpack.c.l.b16 %v1001
    %v2562 = vunpack.c.h.b16 %v1001
    %v2563 = vunpack.c.l.b16 %v1002
    %v2564 = vunpack.c.h.b16 %v1002
    %v2565 = vunpack.c.l.b16 %v1003
    %v2566 = vunpack.c.h.b16 %v1003
    %v2567 = vunpack.c.l.b16 %v1004
    %v2568 = vunpack.c.h.b16 %v1004
    %v2569 = vunpack.c.l.b16 %v1005
    %v2570 = vunpack.c.h.b16 %v1005
    %v2571 = vunpack.c.l.b16 %v1006
    %v2572 = vunpack.c.h.b16 %v1006
    %v2573 = vunpack.c.l.b16 %v1007
    %v2574 = vunpack.c.h.b16 %v1007
    %v2575 = vunpack.c.l.b16 %v1008
    %v2576 = vunpack.c.h.b16 %v1008
    %v2577 = vunpack.c.l.b16 %v1009
    %v2578 = vunpack.c.h.b16 %v1009
    %v2579 = vunpack.c.l.b16 %v1010
    %v2580 = vunpack.c.h.b16 %v1010
    %v2581 = vunpack.c.l.b16 %v1011
    %v2582 = vunpack.c.h.b16 %v1011
    %v2583 = vunpack.c.l.b16 %v1012
    %v2584 = vunpack.c.h.b16 %v1012
    %v2585 = vunpack.c.l.b16 %v1013
    %v2586 = vunpack.c.h.b16 %v1013
    %v2587 = vunpack.c.l.b16 %v1014
    %v2588 = vunpack.c.h.b16 %v1014
    %v2589 = vunpack.c.l.b16 %v1015
    %v2590 = vunpack.c.h.b16 %v1015
    %v2591 = vunpack.c.l.b16 %v1016
    %v2592 = vunpack.c.h.b16 %v1016
    %v2593 = vunpack.c.l.b16 %v1017
    %v2594 = vunpack.c.h.b16 %v1017
    %v2595 = vpack.c.b16 %v2535, %v2531
    %v2596 = vpack.c.b16 %v2536, %v2532
    %v2597 = vpack.c.b16 %v2537, %v2533
    %v2598 = vpack.c.b16 %v2538, %v2534
    %v2599 = vpack.c.b16 %v2543, %v2539
    %v2600 = vpack.c.b16 %v2544, %v2540
    %v2601 = vpack.c.b16 %v2545, %v2541
    %v2602 = vpack.c.b16 %v2546, %v2542
    %v2603 = vpack.c.b16 %v2551, %v2547
    %v2604 = vpack.c.b16 %v2552, %v2548
    %v2605 = vpack.c.b16 %v2553, %v2549
    %v2606 = vpack.c.b16 %v2554, %v2550
    %v2607 = vpack.c.b16 %v2559, %v2555
    %v2608 = vpack.c.b16 %v2560, %v2556
    %v2609 = vpack.c.b16 %v2561, %v2557
    %v2610 = vpack.c.b16 %v2562, %v2558
    %v2611 = vpack.c.b16 %v2567, %v2563
    %v2612 = vpack.c.b16 %v2568, %v2564
    %v2613 = vpack.c.b16 %v2569, %v2565
    %v2614 = vpack.c.b16 %v2570, %v2566
    %v2615 = vpack.c.b16 %v2575, %v2571
    %v2616 = vpack.c.b16 %v2576, %v2572
    %v2617 = vpack.c.b16 %v2577, %v2573
    %v2618 = vpack.c.b16 %v2578, %v2574
    %v2619 = vpack.c.b16 %v2583, %v2579
    %v2620 = vpack.c.b16 %v2584, %v2580
    %v2621 = vpack.c.b16 %v2585, %v2581
    %v2622 = vpack.c.b16 %v2586, %v2582
    %v2623 = vpack.c.b16 %v2591, %v2587
    %v2624 = vpack.c.b16 %v2592, %v2588
    %v2625 = vpack.c.b16 %v2593, %v2589
    %v2626 = vpack.c.b16 %v2594, %v2590
    %2659 = vmatprep.subr.bf16.mxu0 %v2596
    %2660 = vmatpush1.bf16.msra.mxu0 %v2595
    %2661 = vmatprep.subr.bf16.mxu0 %v2600
    %2662 = vmatpush1.bf16.msra.mxu0 %v2599
    %2663 = vmatprep.subr.bf16.mxu0 %v2604
    %2664 = vmatpush1.bf16.msra.mxu0 %v2603
    %2665 = vmatprep.subr.bf16.mxu0 %v2608
    %2666 = vmatpush1.bf16.msra.mxu0 %v2607
    %2667 = vmatprep.subr.bf16.mxu0 %v2612
    %2668 = vmatpush1.bf16.msra.mxu0 %v2611
    %2669 = vmatprep.subr.bf16.mxu0 %v2616
    %2670 = vmatpush1.bf16.msra.mxu0 %v2615
    %2671 = vmatprep.subr.bf16.mxu0 %v2620
    %2672 = vmatpush1.bf16.msra.mxu0 %v2619
    %2673 = vmatprep.subr.bf16.mxu0 %v2624
    %2674 = vmatpush1.bf16.msra.mxu0 %v2623
    %2675 = vmatprep.subr.bf16.mxu0 0
    %2676 = vmatpush1.bf16.msra.mxu0 0
    %2677 = vmatprep.subr.bf16.mxu0 0
    %2678 = vmatpush1.bf16.msra.mxu0 0
    %2679 = vmatprep.subr.bf16.mxu0 0
    %2680 = vmatpush1.bf16.msra.mxu0 0
    %2681 = vmatprep.subr.bf16.mxu0 0
    %2682 = vmatpush1.bf16.msra.mxu0 0
    %2683 = vmatprep.subr.bf16.mxu0 0
    %2684 = vmatpush1.bf16.msra.mxu0 0
    %2685 = vmatprep.subr.bf16.mxu0 0
    %2686 = vmatpush1.bf16.msra.mxu0 0
    %2687 = vmatprep.subr.bf16.mxu0 0
    %2688 = vmatpush1.bf16.msra.mxu0 0
    %2689 = vmatprep.subr.bf16.mxu0 0
    %2690 = vmatpush1.bf16.msra.mxu0 0
    %2691 = vmatprep.mubr.bf16.mxu0 0
    %2692 = vmatmul.mubr.bf16.gmra.mrb[0].mxu0 %v2498
    %v2693 = vpop.f32.mrb[0].mxu0
    %v2694 = vadd.f32 0.0, %v2693
    %v2695 = vpop.f32.mrb[0].mxu0
    %v2696 = vadd.f32 0.0, %v2695
    %v2697 = vpop.f32.mrb[0].mxu0
    %v2698 = vpop.f32.mrb[0].mxu0
    %2699 = vdwg.mxu0
    %2700 = vmatprep.subr.bf16.mxu0 %v2598
    %2701 = vmatpush1.bf16.msra.mxu0 %v2597
    %2702 = vmatprep.subr.bf16.mxu0 %v2602
    %2703 = vmatpush1.bf16.msra.mxu0 %v2601
    %2704 = vmatprep.subr.bf16.mxu0 %v2606
    %2705 = vmatpush1.bf16.msra.mxu0 %v2605
    %2706 = vmatprep.subr.bf16.mxu0 %v2610
    %2707 = vmatpush1.bf16.msra.mxu0 %v2609
    %2708 = vmatprep.subr.bf16.mxu0 %v2614
    %2709 = vmatpush1.bf16.msra.mxu0 %v2613
    %2710 = vmatprep.subr.bf16.mxu0 %v2618
    %2711 = vmatpush1.bf16.msra.mxu0 %v2617
    %2712 = vmatprep.subr.bf16.mxu0 %v2622
    %2713 = vmatpush1.bf16.msra.mxu0 %v2621
    %2714 = vmatprep.subr.bf16.mxu0 %v2626
    %2715 = vmatpush1.bf16.msra.mxu0 %v2625
    %2716 = vmatprep.subr.bf16.mxu0 0
    %2717 = vmatpush1.bf16.msra.mxu0 0
    %2718 = vmatprep.subr.bf16.mxu0 0
    %2719 = vmatpush1.bf16.msra.mxu0 0
    %2720 = vmatprep.subr.bf16.mxu0 0
    %2721 = vmatpush1.bf16.msra.mxu0 0
    %2722 = vmatprep.subr.bf16.mxu0 0
    %2723 = vmatpush1.bf16.msra.mxu0 0
    %2724 = vmatprep.subr.bf16.mxu0 0
    %2725 = vmatpush1.bf16.msra.mxu0 0
    %2726 = vmatprep.subr.bf16.mxu0 0
    %2727 = vmatpush1.bf16.msra.mxu0 0
    %2728 = vmatprep.subr.bf16.mxu0 0
    %2729 = vmatpush1.bf16.msra.mxu0 0
    %2730 = vmatprep.subr.bf16.mxu0 0
    %2731 = vmatpush1.bf16.msra.mxu0 0
    %2732 = vmatprep.mubr.bf16.mxu0 0
    %2733 = vmatmul.mubr.bf16.gmra.mrb[0].mxu0 %v2498
    %v2734 = vpop.f32.mrb[0].mxu0
    %v2735 = vadd.f32 0.0, %v2734
    %v2736 = vpop.f32.mrb[0].mxu0
    %v2737 = vadd.f32 0.0, %v2736
    %v2738 = vpop.f32.mrb[0].mxu0
    %v2739 = vpop.f32.mrb[0].mxu0
    %2740 = vdwg.mxu0
    %v2741 = vadd.f32 %v2494, %v2694
    %v2742 = vadd.f32 %v2495, %v2696
    %v2743 = vadd.f32 %v2496, %v2735
    %v2744 = vadd.f32 %v2497, %v2737
    %v2745 = vxor.u32 %v2741, 2147483648
    %v2746 = vxor.u32 %v2742, 2147483648
    %v2747 = vxor.u32 %v2743, 2147483648
    %v2748 = vmul.f32 %v2745, 1.442695
    %v2749 = vpow.pop %v2748
    %v2750 = vmul.f32 %v2746, 1.442695
    %v2751 = vpow.pop %v2750
    %v2752 = vmul.f32 %v2747, 1.442695
    %v2753 = vpow.pop %v2752
    %v2754 = vadd.f32 %v2749, 1.0
    %v2755 = vadd.f32 %v2751, 1.0
    %v2756 = vadd.f32 %v2753, 1.0
    %v2757 = vrcp.pop %v2754
    %v2758 = vmul.f32 1.0, %v2757
    %v2759 = vrcp.pop %v2755
    %v2760 = vmul.f32 1.0, %v2759
    %v2761 = vrcp.pop %v2756
    %v2762 = vmul.f32 1.0, %v2761
    %v2763 = vtanh.pop %v2744
    %v2764 = vmul.f32 %v2760, %v2489
    %v2765 = vmul.f32 %v2758, %v2763
    %v2766 = vadd.f32 %v2764, %v2765
    %v2767 = vtanh.pop %v2766
    %v2768 = vmul.f32 %v2762, %v2767
    %v2769 = vsel %vm2493, 1, 0
    %2770 = vset.pattern.permute.xlu0 0
    %2771 = vperm.xlu0 %2770, %v2769
    %v2772 = vpop.permute.xlu0 %2771
    %vm2773 = vcmp.eq.s32.totalorder %v2772, 1
    %v2774 = vsel %vm2773, %v2768, 0.0
    %2775 = vst [vmem:[#allocation4] sm:$0xff] %v2774
    %v2776 = vsel %vm2773, %v2768, %v2396
    %v2777 = vsel %vm2773, %v2766, %v2489
    %v2778 = vld [vmem:[%s1301] sm:$0xff]
    %vm2779 = vcmp.gt.f32.partialorder %v2778, 0.0
    %s2780 = scalar_lea.vmem [#allocation3], 32
    %v2781 = vld [vmem:[%s2780] sm:$0xff]
    %v2782 = vld [vmem:[%s2780 + $0x8] sm:$0xff]
    %v2783 = vld [vmem:[%s2780 + $0x10] sm:$0xff]
    %v2784 = vld [vmem:[%s2780 + $0x18] sm:$0xff]
    %v2785 = vpack.c.bf16 %v2776, %v2776
    %2786 = vmatprep.subr.bf16.mxu0 %v2596
    %2787 = vmatpush1.bf16.msra.mxu0 %v2595
    %2788 = vmatprep.subr.bf16.mxu0 %v2600
    %2789 = vmatpush1.bf16.msra.mxu0 %v2599
    %2790 = vmatprep.subr.bf16.mxu0 %v2604
    %2791 = vmatpush1.bf16.msra.mxu0 %v2603
    %2792 = vmatprep.subr.bf16.mxu0 %v2608
    %2793 = vmatpush1.bf16.msra.mxu0 %v2607
    %2794 = vmatprep.subr.bf16.mxu0 %v2612
    %2795 = vmatpush1.bf16.msra.mxu0 %v2611
    %2796 = vmatprep.subr.bf16.mxu0 %v2616
    %2797 = vmatpush1.bf16.msra.mxu0 %v2615
    %2798 = vmatprep.subr.bf16.mxu0 %v2620
    %2799 = vmatpush1.bf16.msra.mxu0 %v2619
    %2800 = vmatprep.subr.bf16.mxu0 %v2624
    %2801 = vmatpush1.bf16.msra.mxu0 %v2623
    %2802 = vmatprep.subr.bf16.mxu0 0
    %2803 = vmatpush1.bf16.msra.mxu0 0
    %2804 = vmatprep.subr.bf16.mxu0 0
    %2805 = vmatpush1.bf16.msra.mxu0 0
    %2806 = vmatprep.subr.bf16.mxu0 0
    %2807 = vmatpush1.bf16.msra.mxu0 0
    %2808 = vmatprep.subr.bf16.mxu0 0
    %2809 = vmatpush1.bf16.msra.mxu0 0
    %2810 = vmatprep.subr.bf16.mxu0 0
    %2811 = vmatpush1.bf16.msra.mxu0 0
    %2812 = vmatprep.subr.bf16.mxu0 0
    %2813 = vmatpush1.bf16.msra.mxu0 0
    %2814 = vmatprep.subr.bf16.mxu0 0
    %2815 = vmatpush1.bf16.msra.mxu0 0
    %2816 = vmatprep.subr.bf16.mxu0 0
    %2817 = vmatpush1.bf16.msra.mxu0 0
    %2818 = vmatprep.mubr.bf16.mxu0 0
    %2819 = vmatmul.mubr.bf16.gmra.mrb[0].mxu0 %v2785
    %v2820 = vpop.f32.mrb[0].mxu0
    %v2821 = vadd.f32 0.0, %v2820
    %v2822 = vpop.f32.mrb[0].mxu0
    %v2823 = vadd.f32 0.0, %v2822
    %v2824 = vpop.f32.mrb[0].mxu0
    %v2825 = vpop.f32.mrb[0].mxu0
    %2826 = vdwg.mxu0
    %2827 = vmatprep.subr.bf16.mxu0 %v2598
    %2828 = vmatpush1.bf16.msra.mxu0 %v2597
    %2829 = vmatprep.subr.bf16.mxu0 %v2602
    %2830 = vmatpush1.bf16.msra.mxu0 %v2601
    %2831 = vmatprep.subr.bf16.mxu0 %v2606
    %2832 = vmatpush1.bf16.msra.mxu0 %v2605
    %2833 = vmatprep.subr.bf16.mxu0 %v2610
    %2834 = vmatpush1.bf16.msra.mxu0 %v2609
    %2835 = vmatprep.subr.bf16.mxu0 %v2614
    %2836 = vmatpush1.bf16.msra.mxu0 %v2613
    %2837 = vmatprep.subr.bf16.mxu0 %v2618
    %2838 = vmatpush1.bf16.msra.mxu0 %v2617
    %2839 = vmatprep.subr.bf16.mxu0 %v2622
    %2840 = vmatpush1.bf16.msra.mxu0 %v2621
    %2841 = vmatprep.subr.bf16.mxu0 %v2626
    %2842 = vmatpush1.bf16.msra.mxu0 %v2625
    %2843 = vmatprep.subr.bf16.mxu0 0
    %2844 = vmatpush1.bf16.msra.mxu0 0
    %2845 = vmatprep.subr.bf16.mxu0 0
    %2846 = vmatpush1.bf16.msra.mxu0 0
    %2847 = vmatprep.subr.bf16.mxu0 0
    %2848 = vmatpush1.bf16.msra.mxu0 0
    %2849 = vmatprep.subr.bf16.mxu0 0
    %2850 = vmatpush1.bf16.msra.mxu0 0
    %2851 = vmatprep.subr.bf16.mxu0 0
    %2852 = vmatpush1.bf16.msra.mxu0 0
    %2853 = vmatprep.subr.bf16.mxu0 0
    %2854 = vmatpush1.bf16.msra.mxu0 0
    %2855 = vmatprep.subr.bf16.mxu0 0
    %2856 = vmatpush1.bf16.msra.mxu0 0
    %2857 = vmatprep.subr.bf16.mxu0 0
    %2858 = vmatpush1.bf16.msra.mxu0 0
    %2859 = vmatprep.mubr.bf16.mxu0 0
    %2860 = vmatmul.mubr.bf16.gmra.mrb[0].mxu0 %v2785
    %v2861 = vpop.f32.mrb[0].mxu0
    %v2862 = vadd.f32 0.0, %v2861
    %v2863 = vpop.f32.mrb[0].mxu0
    %v2864 = vadd.f32 0.0, %v2863
    %v2865 = vpop.f32.mrb[0].mxu0
    %v2866 = vpop.f32.mrb[0].mxu0
    %2867 = vdwg.mxu0
    %v2868 = vadd.f32 %v2781, %v2821
    %v2869 = vadd.f32 %v2782, %v2823
    %v2870 = vadd.f32 %v2783, %v2862
    %v2871 = vadd.f32 %v2784, %v2864
    %v2872 = vxor.u32 %v2868, 2147483648
    %v2873 = vxor.u32 %v2869, 2147483648
    %v2874 = vxor.u32 %v2870, 2147483648
    %v2875 = vmul.f32 %v2872, 1.442695
    %v2876 = vpow.pop %v2875
    %v2877 = vmul.f32 %v2873, 1.442695
    %v2878 = vpow.pop %v2877
    %v2879 = vmul.f32 %v2874, 1.442695
    %v2880 = vpow.pop %v2879
    %v2881 = vadd.f32 %v2876, 1.0
    %v2882 = vadd.f32 %v2878, 1.0
    %v2883 = vadd.f32 %v2880, 1.0
    %v2884 = vrcp.pop %v2881
    %v2885 = vmul.f32 1.0, %v2884
    %v2886 = vrcp.pop %v2882
    %v2887 = vmul.f32 1.0, %v2886
    %v2888 = vrcp.pop %v2883
    %v2889 = vmul.f32 1.0, %v2888
    %v2890 = vtanh.pop %v2871
    %v2891 = vmul.f32 %v2887, %v2777
    %v2892 = vmul.f32 %v2885, %v2890
    %v2893 = vadd.f32 %v2891, %v2892
    %v2894 = vtanh.pop %v2893
    %v2895 = vmul.f32 %v2889, %v2894
    %v2896 = vsel %vm2779, 1, 0
    %2897 = vset.pattern.permute.xlu0 0
    %2898 = vperm.xlu0 %2897, %v2896
    %v2899 = vpop.permute.xlu0 %2898
    %vm2900 = vcmp.eq.s32.totalorder %v2899, 1
    %v2901 = vsel %vm2900, %v2895, 0.0
    %s2902 = scalar_lea.vmem [#allocation4], 8
    %2903 = vst [vmem:[%s2902] sm:$0xff] %v2901
    %v2904 = vsel %vm2900, %v2895, %v2776
    %v2905 = vsel %vm2900, %v2893, %v2777
    %v2906 = vld [vmem:[%s1427] sm:$0xff]
    %vm2907 = vcmp.gt.f32.partialorder %v2906, 0.0
    %s2908 = scalar_lea.vmem [#allocation3], 64
    %v2909 = vld [vmem:[%s2908] sm:$0xff]
    %v2910 = vld [vmem:[%s2908 + $0x8] sm:$0xff]
    %v2911 = vld [vmem:[%s2908 + $0x10] sm:$0xff]
    %v2912 = vld [vmem:[%s2908 + $0x18] sm:$0xff]
    %v2913 = vpack.c.bf16 %v2904, %v2904
    %2914 = vmatprep.subr.bf16.mxu0 %v2596
    %2915 = vmatpush1.bf16.msra.mxu0 %v2595
    %2916 = vmatprep.subr.bf16.mxu0 %v2600
    %2917 = vmatpush1.bf16.msra.mxu0 %v2599
    %2918 = vmatprep.subr.bf16.mxu0 %v2604
    %2919 = vmatpush1.bf16.msra.mxu0 %v2603
    %2920 = vmatprep.subr.bf16.mxu0 %v2608
    %2921 = vmatpush1.bf16.msra.mxu0 %v2607
    %2922 = vmatprep.subr.bf16.mxu0 %v2612
    %2923 = vmatpush1.bf16.msra.mxu0 %v2611
    %2924 = vmatprep.subr.bf16.mxu0 %v2616
    %2925 = vmatpush1.bf16.msra.mxu0 %v2615
    %2926 = vmatprep.subr.bf16.mxu0 %v2620
    %2927 = vmatpush1.bf16.msra.mxu0 %v2619
    %2928 = vmatprep.subr.bf16.mxu0 %v2624
    %2929 = vmatpush1.bf16.msra.mxu0 %v2623
    %2930 = vmatprep.subr.bf16.mxu0 0
    %2931 = vmatpush1.bf16.msra.mxu0 0
    %2932 = vmatprep.subr.bf16.mxu0 0
    %2933 = vmatpush1.bf16.msra.mxu0 0
    %2934 = vmatprep.subr.bf16.mxu0 0
    %2935 = vmatpush1.bf16.msra.mxu0 0
    %2936 = vmatprep.subr.bf16.mxu0 0
    %2937 = vmatpush1.bf16.msra.mxu0 0
    %2938 = vmatprep.subr.bf16.mxu0 0
    %2939 = vmatpush1.bf16.msra.mxu0 0
    %2940 = vmatprep.subr.bf16.mxu0 0
    %2941 = vmatpush1.bf16.msra.mxu0 0
    %2942 = vmatprep.subr.bf16.mxu0 0
    %2943 = vmatpush1.bf16.msra.mxu0 0
    %2944 = vmatprep.subr.bf16.mxu0 0
    %2945 = vmatpush1.bf16.msra.mxu0 0
    %2946 = vmatprep.mubr.bf16.mxu0 0
    %2947 = vmatmul.mubr.bf16.gmra.mrb[0].mxu0 %v2913
    %v2948 = vpop.f32.mrb[0].mxu0
    %v2949 = vadd.f32 0.0, %v2948
    %v2950 = vpop.f32.mrb[0].mxu0
    %v2951 = vadd.f32 0.0, %v2950
    %v2952 = vpop.f32.mrb[0].mxu0
    %v2953 = vpop.f32.mrb[0].mxu0
    %2954 = vdwg.mxu0
    %2955 = vmatprep.subr.bf16.mxu0 %v2598
    %2956 = vmatpush1.bf16.msra.mxu0 %v2597
    %2957 = vmatprep.subr.bf16.mxu0 %v2602
    %2958 = vmatpush1.bf16.msra.mxu0 %v2601
    %2959 = vmatprep.subr.bf16.mxu0 %v2606
    %2960 = vmatpush1.bf16.msra.mxu0 %v2605
    %2961 = vmatprep.subr.bf16.mxu0 %v2610
    %2962 = vmatpush1.bf16.msra.mxu0 %v2609
    %2963 = vmatprep.subr.bf16.mxu0 %v2614
    %2964 = vmatpush1.bf16.msra.mxu0 %v2613
    %2965 = vmatprep.subr.bf16.mxu0 %v2618
    %2966 = vmatpush1.bf16.msra.mxu0 %v2617
    %2967 = vmatprep.subr.bf16.mxu0 %v2622
    %2968 = vmatpush1.bf16.msra.mxu0 %v2621
    %2969 = vmatprep.subr.bf16.mxu0 %v2626
    %2970 = vmatpush1.bf16.msra.mxu0 %v2625
    %2971 = vmatprep.subr.bf16.mxu0 0
    %2972 = vmatpush1.bf16.msra.mxu0 0
    %2973 = vmatprep.subr.bf16.mxu0 0
    %2974 = vmatpush1.bf16.msra.mxu0 0
    %2975 = vmatprep.subr.bf16.mxu0 0
    %2976 = vmatpush1.bf16.msra.mxu0 0
    %2977 = vmatprep.subr.bf16.mxu0 0
    %2978 = vmatpush1.bf16.msra.mxu0 0
    %2979 = vmatprep.subr.bf16.mxu0 0
    %2980 = vmatpush1.bf16.msra.mxu0 0
    %2981 = vmatprep.subr.bf16.mxu0 0
    %2982 = vmatpush1.bf16.msra.mxu0 0
    %2983 = vmatprep.subr.bf16.mxu0 0
    %2984 = vmatpush1.bf16.msra.mxu0 0
    %2985 = vmatprep.subr.bf16.mxu0 0
    %2986 = vmatpush1.bf16.msra.mxu0 0
    %2987 = vmatprep.mubr.bf16.mxu0 0
    %2988 = vmatmul.mubr.bf16.gmra.mrb[0].mxu0 %v2913
    %v2989 = vpop.f32.mrb[0].mxu0
    %v2990 = vadd.f32 0.0, %v2989
    %v2991 = vpop.f32.mrb[0].mxu0
    %v2992 = vadd.f32 0.0, %v2991
    %v2993 = vpop.f32.mrb[0].mxu0
    %v2994 = vpop.f32.mrb[0].mxu0
    %2995 = vdwg.mxu0
    %v2996 = vadd.f32 %v2909, %v2949
    %v2997 = vadd.f32 %v2910, %v2951
    %v2998 = vadd.f32 %v2911, %v2990
    %v2999 = vadd.f32 %v2912, %v2992
    %v3000 = vxor.u32 %v2996, 2147483648
    %v3001 = vxor.u32 %v2997, 2147483648
    %v3002 = vxor.u32 %v2998, 2147483648
    %v3003 = vmul.f32 %v3000, 1.442695
    %v3004 = vpow.pop %v3003
    %v3005 = vmul.f32 %v3001, 1.442695
    %v3006 = vpow.pop %v3005
    %v3007 = vmul.f32 %v3002, 1.442695
    %v3008 = vpow.pop %v3007
    %v3009 = vadd.f32 %v3004, 1.0
    %v3010 = vadd.f32 %v3006, 1.0
    %v3011 = vadd.f32 %v3008, 1.0
    %v3012 = vrcp.pop %v3009
    %v3013 = vmul.f32 1.0, %v3012
    %v3014 = vrcp.pop %v3010
    %v3015 = vmul.f32 1.0, %v3014
    %v3016 = vrcp.pop %v3011
    %v3017 = vmul.f32 1.0, %v3016
    %v3018 = vtanh.pop %v2999
    %v3019 = vmul.f32 %v3015, %v2905
    %v3020 = vmul.f32 %v3013, %v3018
    %v3021 = vadd.f32 %v3019, %v3020
    %v3022 = vtanh.pop %v3021
    %v3023 = vmul.f32 %v3017, %v3022
    %v3024 = vsel %vm2907, 1, 0
    %3025 = vset.pattern.permute.xlu0 0
    %3026 = vperm.xlu0 %3025, %v3024
    %v3027 = vpop.permute.xlu0 %3026
    %vm3028 = vcmp.eq.s32.totalorder %v3027, 1
    %v3029 = vsel %vm3028, %v3023, 0.0
    %s3030 = scalar_lea.vmem [#allocation4], 16
    %3031 = vst [vmem:[%s3030] sm:$0xff] %v3029
    %v3032 = vsel %vm3028, %v3023, %v2904
    %v3033 = vsel %vm3028, %v3021, %v2905
    %v3034 = vld [vmem:[%s1553] sm:$0xff]
    %vm3035 = vcmp.gt.f32.partialorder %v3034, 0.0
    %s3036 = scalar_lea.vmem [#allocation3], 96
    %v3037 = vld [vmem:[%s3036] sm:$0xff]
    %v3038 = vld [vmem:[%s3036 + $0x8] sm:$0xff]
    %v3039 = vld [vmem:[%s3036 + $0x10] sm:$0xff]
    %v3040 = vld [vmem:[%s3036 + $0x18] sm:$0xff]
    %v3041 = vpack.c.bf16 %v3032, %v3032
    %3042 = vmatprep.subr.bf16.mxu0 %v2596
    %3043 = vmatpush1.bf16.msra.mxu0 %v2595
    %3044 = vmatprep.subr.bf16.mxu0 %v2600
    %3045 = vmatpush1.bf16.msra.mxu0 %v2599
    %3046 = vmatprep.subr.bf16.mxu0 %v2604
    %3047 = vmatpush1.bf16.msra.mxu0 %v2603
    %3048 = vmatprep.subr.bf16.mxu0 %v2608
    %3049 = vmatpush1.bf16.msra.mxu0 %v2607
    %3050 = vmatprep.subr.bf16.mxu0 %v2612
    %3051 = vmatpush1.bf16.msra.mxu0 %v2611
    %3052 = vmatprep.subr.bf16.mxu0 %v2616
    %3053 = vmatpush1.bf16.msra.mxu0 %v2615
    %3054 = vmatprep.subr.bf16.mxu0 %v2620
    %3055 = vmatpush1.bf16.msra.mxu0 %v2619
    %3056 = vmatprep.subr.bf16.mxu0 %v2624
    %3057 = vmatpush1.bf16.msra.mxu0 %v2623
    %3058 = vmatprep.subr.bf16.mxu0 0
    %3059 = vmatpush1.bf16.msra.mxu0 0
    %3060 = vmatprep.subr.bf16.mxu0 0
    %3061 = vmatpush1.bf16.msra.mxu0 0
    %3062 = vmatprep.subr.bf16.mxu0 0
    %3063 = vmatpush1.bf16.msra.mxu0 0
    %3064 = vmatprep.subr.bf16.mxu0 0
    %3065 = vmatpush1.bf16.msra.mxu0 0
    %3066 = vmatprep.subr.bf16.mxu0 0
    %3067 = vmatpush1.bf16.msra.mxu0 0
    %3068 = vmatprep.subr.bf16.mxu0 0
    %3069 = vmatpush1.bf16.msra.mxu0 0
    %3070 = vmatprep.subr.bf16.mxu0 0
    %3071 = vmatpush1.bf16.msra.mxu0 0
    %3072 = vmatprep.subr.bf16.mxu0 0
    %3073 = vmatpush1.bf16.msra.mxu0 0
    %3074 = vmatprep.mubr.bf16.mxu0 0
    %3075 = vmatmul.mubr.bf16.gmra.mrb[0].mxu0 %v3041
    %v3076 = vpop.f32.mrb[0].mxu0
    %v3077 = vadd.f32 0.0, %v3076
    %v3078 = vpop.f32.mrb[0].mxu0
    %v3079 = vadd.f32 0.0, %v3078
    %v3080 = vpop.f32.mrb[0].mxu0
    %v3081 = vpop.f32.mrb[0].mxu0
    %3082 = vdwg.mxu0
    %3083 = vmatprep.subr.bf16.mxu0 %v2598
    %3084 = vmatpush1.bf16.msra.mxu0 %v2597
    %3085 = vmatprep.subr.bf16.mxu0 %v2602
    %3086 = vmatpush1.bf16.msra.mxu0 %v2601
    %3087 = vmatprep.subr.bf16.mxu0 %v2606
    %3088 = vmatpush1.bf16.msra.mxu0 %v2605
    %3089 = vmatprep.subr.bf16.mxu0 %v2610
    %3090 = vmatpush1.bf16.msra.mxu0 %v2609
    %3091 = vmatprep.subr.bf16.mxu0 %v2614
    %3092 = vmatpush1.bf16.msra.mxu0 %v2613
    %3093 = vmatprep.subr.bf16.mxu0 %v2618
    %3094 = vmatpush1.bf16.msra.mxu0 %v2617
    %3095 = vmatprep.subr.bf16.mxu0 %v2622
    %3096 = vmatpush1.bf16.msra.mxu0 %v2621
    %3097 = vmatprep.subr.bf16.mxu0 %v2626
    %3098 = vmatpush1.bf16.msra.mxu0 %v2625
    %3099 = vmatprep.subr.bf16.mxu0 0
    %3100 = vmatpush1.bf16.msra.mxu0 0
    %3101 = vmatprep.subr.bf16.mxu0 0
    %3102 = vmatpush1.bf16.msra.mxu0 0
    %3103 = vmatprep.subr.bf16.mxu0 0
    %3104 = vmatpush1.bf16.msra.mxu0 0
    %3105 = vmatprep.subr.bf16.mxu0 0
    %3106 = vmatpush1.bf16.msra.mxu0 0
    %3107 = vmatprep.subr.bf16.mxu0 0
    %3108 = vmatpush1.bf16.msra.mxu0 0
    %3109 = vmatprep.subr.bf16.mxu0 0
    %3110 = vmatpush1.bf16.msra.mxu0 0
    %3111 = vmatprep.subr.bf16.mxu0 0
    %3112 = vmatpush1.bf16.msra.mxu0 0
    %3113 = vmatprep.subr.bf16.mxu0 0
    %3114 = vmatpush1.bf16.msra.mxu0 0
    %3115 = vmatprep.mubr.bf16.mxu0 0
    %3116 = vmatmul.mubr.bf16.gmra.mrb[0].mxu0 %v3041
    %v3117 = vpop.f32.mrb[0].mxu0
    %v3118 = vadd.f32 0.0, %v3117
    %v3119 = vpop.f32.mrb[0].mxu0
    %v3120 = vadd.f32 0.0, %v3119
    %v3121 = vpop.f32.mrb[0].mxu0
    %v3122 = vpop.f32.mrb[0].mxu0
    %3123 = vdwg.mxu0
    %v3124 = vadd.f32 %v3037, %v3077
    %v3125 = vadd.f32 %v3038, %v3079
    %v3126 = vadd.f32 %v3039, %v3118
    %v3127 = vadd.f32 %v3040, %v3120
    %v3128 = vxor.u32 %v3124, 2147483648
    %v3129 = vxor.u32 %v3125, 2147483648
    %v3130 = vxor.u32 %v3126, 2147483648
    %v3131 = vmul.f32 %v3128, 1.442695
    %v3132 = vpow.pop %v3131
    %v3133 = vmul.f32 %v3129, 1.442695
    %v3134 = vpow.pop %v3133
    %v3135 = vmul.f32 %v3130, 1.442695
    %v3136 = vpow.pop %v3135
    %v3137 = vadd.f32 %v3132, 1.0
    %v3138 = vadd.f32 %v3134, 1.0
    %v3139 = vadd.f32 %v3136, 1.0
    %v3140 = vrcp.pop %v3137
    %v3141 = vmul.f32 1.0, %v3140
    %v3142 = vrcp.pop %v3138
    %v3143 = vmul.f32 1.0, %v3142
    %v3144 = vrcp.pop %v3139
    %v3145 = vmul.f32 1.0, %v3144
    %v3146 = vtanh.pop %v3127
    %v3147 = vmul.f32 %v3143, %v3033
    %v3148 = vmul.f32 %v3141, %v3146
    %v3149 = vadd.f32 %v3147, %v3148
    %v3150 = vtanh.pop %v3149
    %v3151 = vmul.f32 %v3145, %v3150
    %v3152 = vsel %vm3035, 1, 0
    %3153 = vset.pattern.permute.xlu0 0
    %3154 = vperm.xlu0 %3153, %v3152
    %v3155 = vpop.permute.xlu0 %3154
    %vm3156 = vcmp.eq.s32.totalorder %v3155, 1
    %v3157 = vsel %vm3156, %v3151, 0.0
    %s3158 = scalar_lea.vmem [#allocation4], 24
    %3159 = vst [vmem:[%s3158] sm:$0xff] %v3157
    %v3160 = vsel %vm3156, %v3151, %v3032
    %v3161 = vsel %vm3156, %v3149, %v3033
    %v3162 = vld [vmem:[%s1679] sm:$0xff]
    %vm3163 = vcmp.gt.f32.partialorder %v3162, 0.0
    %s3164 = scalar_lea.vmem [#allocation3], 128
    %v3165 = vld [vmem:[%s3164] sm:$0xff]
    %v3166 = vld [vmem:[%s3164 + $0x8] sm:$0xff]
    %v3167 = vld [vmem:[%s3164 + $0x10] sm:$0xff]
    %v3168 = vld [vmem:[%s3164 + $0x18] sm:$0xff]
    %v3169 = vpack.c.bf16 %v3160, %v3160
    %3170 = vmatprep.subr.bf16.mxu0 %v2596
    %3171 = vmatpush1.bf16.msra.mxu0 %v2595
    %3172 = vmatprep.subr.bf16.mxu0 %v2600
    %3173 = vmatpush1.bf16.msra.mxu0 %v2599
    %3174 = vmatprep.subr.bf16.mxu0 %v2604
    %3175 = vmatpush1.bf16.msra.mxu0 %v2603
    %3176 = vmatprep.subr.bf16.mxu0 %v2608
    %3177 = vmatpush1.bf16.msra.mxu0 %v2607
    %3178 = vmatprep.subr.bf16.mxu0 %v2612
    %3179 = vmatpush1.bf16.msra.mxu0 %v2611
    %3180 = vmatprep.subr.bf16.mxu0 %v2616
    %3181 = vmatpush1.bf16.msra.mxu0 %v2615
    %3182 = vmatprep.subr.bf16.mxu0 %v2620
    %3183 = vmatpush1.bf16.msra.mxu0 %v2619
    %3184 = vmatprep.subr.bf16.mxu0 %v2624
    %3185 = vmatpush1.bf16.msra.mxu0 %v2623
    %3186 = vmatprep.subr.bf16.mxu0 0
    %3187 = vmatpush1.bf16.msra.mxu0 0
    %3188 = vmatprep.subr.bf16.mxu0 0
    %3189 = vmatpush1.bf16.msra.mxu0 0
    %3190 = vmatprep.subr.bf16.mxu0 0
    %3191 = vmatpush1.bf16.msra.mxu0 0
    %3192 = vmatprep.subr.bf16.mxu0 0
    %3193 = vmatpush1.bf16.msra.mxu0 0
    %3194 = vmatprep.subr.bf16.mxu0 0
    %3195 = vmatpush1.bf16.msra.mxu0 0
    %3196 = vmatprep.subr.bf16.mxu0 0
    %3197 = vmatpush1.bf16.msra.mxu0 0
    %3198 = vmatprep.subr.bf16.mxu0 0
    %3199 = vmatpush1.bf16.msra.mxu0 0
    %3200 = vmatprep.subr.bf16.mxu0 0
    %3201 = vmatpush1.bf16.msra.mxu0 0
    %3202 = vmatprep.mubr.bf16.mxu0 0
    %3203 = vmatmul.mubr.bf16.gmra.mrb[0].mxu0 %v3169
    %v3204 = vpop.f32.mrb[0].mxu0
    %v3205 = vadd.f32 0.0, %v3204
    %v3206 = vpop.f32.mrb[0].mxu0
    %v3207 = vadd.f32 0.0, %v3206
    %v3208 = vpop.f32.mrb[0].mxu0
    %v3209 = vpop.f32.mrb[0].mxu0
    %3210 = vdwg.mxu0
    %3211 = vmatprep.subr.bf16.mxu0 %v2598
    %3212 = vmatpush1.bf16.msra.mxu0 %v2597
    %3213 = vmatprep.subr.bf16.mxu0 %v2602
    %3214 = vmatpush1.bf16.msra.mxu0 %v2601
    %3215 = vmatprep.subr.bf16.mxu0 %v2606
    %3216 = vmatpush1.bf16.msra.mxu0 %v2605
    %3217 = vmatprep.subr.bf16.mxu0 %v2610
    %3218 = vmatpush1.bf16.msra.mxu0 %v2609
    %3219 = vmatprep.subr.bf16.mxu0 %v2614
    %3220 = vmatpush1.bf16.msra.mxu0 %v2613
    %3221 = vmatprep.subr.bf16.mxu0 %v2618
    %3222 = vmatpush1.bf16.msra.mxu0 %v2617
    %3223 = vmatprep.subr.bf16.mxu0 %v2622
    %3224 = vmatpush1.bf16.msra.mxu0 %v2621
    %3225 = vmatprep.subr.bf16.mxu0 %v2626
    %3226 = vmatpush1.bf16.msra.mxu0 %v2625
    %3227 = vmatprep.subr.bf16.mxu0 0
    %3228 = vmatpush1.bf16.msra.mxu0 0
    %3229 = vmatprep.subr.bf16.mxu0 0
    %3230 = vmatpush1.bf16.msra.mxu0 0
    %3231 = vmatprep.subr.bf16.mxu0 0
    %3232 = vmatpush1.bf16.msra.mxu0 0
    %3233 = vmatprep.subr.bf16.mxu0 0
    %3234 = vmatpush1.bf16.msra.mxu0 0
    %3235 = vmatprep.subr.bf16.mxu0 0
    %3236 = vmatpush1.bf16.msra.mxu0 0
    %3237 = vmatprep.subr.bf16.mxu0 0
    %3238 = vmatpush1.bf16.msra.mxu0 0
    %3239 = vmatprep.subr.bf16.mxu0 0
    %3240 = vmatpush1.bf16.msra.mxu0 0
    %3241 = vmatprep.subr.bf16.mxu0 0
    %3242 = vmatpush1.bf16.msra.mxu0 0
    %3243 = vmatprep.mubr.bf16.mxu0 0
    %3244 = vmatmul.mubr.bf16.gmra.mrb[0].mxu0 %v3169
    %v3245 = vpop.f32.mrb[0].mxu0
    %v3246 = vadd.f32 0.0, %v3245
    %v3247 = vpop.f32.mrb[0].mxu0
    %v3248 = vadd.f32 0.0, %v3247
    %v3249 = vpop.f32.mrb[0].mxu0
    %v3250 = vpop.f32.mrb[0].mxu0
    %3251 = vdwg.mxu0
    %v3252 = vadd.f32 %v3165, %v3205
    %v3253 = vadd.f32 %v3166, %v3207
    %v3254 = vadd.f32 %v3167, %v3246
    %v3255 = vadd.f32 %v3168, %v3248
    %v3256 = vxor.u32 %v3252, 2147483648
    %v3257 = vxor.u32 %v3253, 2147483648
    %v3258 = vxor.u32 %v3254, 2147483648
    %v3259 = vmul.f32 %v3256, 1.442695
    %v3260 = vpow.pop %v3259
    %v3261 = vmul.f32 %v3257, 1.442695
    %v3262 = vpow.pop %v3261
    %v3263 = vmul.f32 %v3258, 1.442695
    %v3264 = vpow.pop %v3263
    %v3265 = vadd.f32 %v3260, 1.0
    %v3266 = vadd.f32 %v3262, 1.0
    %v3267 = vadd.f32 %v3264, 1.0
    %v3268 = vrcp.pop %v3265
    %v3269 = vmul.f32 1.0, %v3268
    %v3270 = vrcp.pop %v3266
    %v3271 = vmul.f32 1.0, %v3270
    %v3272 = vrcp.pop %v3267
    %v3273 = vmul.f32 1.0, %v3272
    %v3274 = vtanh.pop %v3255
    %v3275 = vmul.f32 %v3271, %v3161
    %v3276 = vmul.f32 %v3269, %v3274
    %v3277 = vadd.f32 %v3275, %v3276
    %v3278 = vtanh.pop %v3277
    %v3279 = vmul.f32 %v3273, %v3278
    %v3280 = vsel %vm3163, 1, 0
    %3281 = vset.pattern.permute.xlu0 0
    %3282 = vperm.xlu0 %3281, %v3280
    %v3283 = vpop.permute.xlu0 %3282
    %vm3284 = vcmp.eq.s32.totalorder %v3283, 1
    %v3285 = vsel %vm3284, %v3279, 0.0
    %s3286 = scalar_lea.vmem [#allocation4], 32
    %3287 = vst [vmem:[%s3286] sm:$0xff] %v3285
    %v3288 = vsel %vm3284, %v3279, %v3160
    %v3289 = vsel %vm3284, %v3277, %v3161
    %v3290 = vld [vmem:[%s1805] sm:$0xff]
    %vm3291 = vcmp.gt.f32.partialorder %v3290, 0.0
    %s3292 = scalar_lea.vmem [#allocation3], 160
    %v3293 = vld [vmem:[%s3292] sm:$0xff]
    %v3294 = vld [vmem:[%s3292 + $0x8] sm:$0xff]
    %v3295 = vld [vmem:[%s3292 + $0x10] sm:$0xff]
    %v3296 = vld [vmem:[%s3292 + $0x18] sm:$0xff]
    %v3297 = vpack.c.bf16 %v3288, %v3288
    %3298 = vmatprep.subr.bf16.mxu0 %v2596
    %3299 = vmatpush1.bf16.msra.mxu0 %v2595
    %3300 = vmatprep.subr.bf16.mxu0 %v2600
    %3301 = vmatpush1.bf16.msra.mxu0 %v2599
    %3302 = vmatprep.subr.bf16.mxu0 %v2604
    %3303 = vmatpush1.bf16.msra.mxu0 %v2603
    %3304 = vmatprep.subr.bf16.mxu0 %v2608
    %3305 = vmatpush1.bf16.msra.mxu0 %v2607
    %3306 = vmatprep.subr.bf16.mxu0 %v2612
    %3307 = vmatpush1.bf16.msra.mxu0 %v2611
    %3308 = vmatprep.subr.bf16.mxu0 %v2616
    %3309 = vmatpush1.bf16.msra.mxu0 %v2615
    %3310 = vmatprep.subr.bf16.mxu0 %v2620
    %3311 = vmatpush1.bf16.msra.mxu0 %v2619
    %3312 = vmatprep.subr.bf16.mxu0 %v2624
    %3313 = vmatpush1.bf16.msra.mxu0 %v2623
    %3314 = vmatprep.subr.bf16.mxu0 0
    %3315 = vmatpush1.bf16.msra.mxu0 0
    %3316 = vmatprep.subr.bf16.mxu0 0
    %3317 = vmatpush1.bf16.msra.mxu0 0
    %3318 = vmatprep.subr.bf16.mxu0 0
    %3319 = vmatpush1.bf16.msra.mxu0 0
    %3320 = vmatprep.subr.bf16.mxu0 0
    %3321 = vmatpush1.bf16.msra.mxu0 0
    %3322 = vmatprep.subr.bf16.mxu0 0
    %3323 = vmatpush1.bf16.msra.mxu0 0
    %3324 = vmatprep.subr.bf16.mxu0 0
    %3325 = vmatpush1.bf16.msra.mxu0 0
    %3326 = vmatprep.subr.bf16.mxu0 0
    %3327 = vmatpush1.bf16.msra.mxu0 0
    %3328 = vmatprep.subr.bf16.mxu0 0
    %3329 = vmatpush1.bf16.msra.mxu0 0
    %3330 = vmatprep.mubr.bf16.mxu0 0
    %3331 = vmatmul.mubr.bf16.gmra.mrb[0].mxu0 %v3297
    %v3332 = vpop.f32.mrb[0].mxu0
    %v3333 = vadd.f32 0.0, %v3332
    %v3334 = vpop.f32.mrb[0].mxu0
    %v3335 = vadd.f32 0.0, %v3334
    %v3336 = vpop.f32.mrb[0].mxu0
    %v3337 = vpop.f32.mrb[0].mxu0
    %3338 = vdwg.mxu0
    %3339 = vmatprep.subr.bf16.mxu0 %v2598
    %3340 = vmatpush1.bf16.msra.mxu0 %v2597
    %3341 = vmatprep.subr.bf16.mxu0 %v2602
    %3342 = vmatpush1.bf16.msra.mxu0 %v2601
    %3343 = vmatprep.subr.bf16.mxu0 %v2606
    %3344 = vmatpush1.bf16.msra.mxu0 %v2605
    %3345 = vmatprep.subr.bf16.mxu0 %v2610
    %3346 = vmatpush1.bf16.msra.mxu0 %v2609
    %3347 = vmatprep.subr.bf16.mxu0 %v2614
    %3348 = vmatpush1.bf16.msra.mxu0 %v2613
    %3349 = vmatprep.subr.bf16.mxu0 %v2618
    %3350 = vmatpush1.bf16.msra.mxu0 %v2617
    %3351 = vmatprep.subr.bf16.mxu0 %v2622
    %3352 = vmatpush1.bf16.msra.mxu0 %v2621
    %3353 = vmatprep.subr.bf16.mxu0 %v2626
    %3354 = vmatpush1.bf16.msra.mxu0 %v2625
    %3355 = vmatprep.subr.bf16.mxu0 0
    %3356 = vmatpush1.bf16.msra.mxu0 0
    %3357 = vmatprep.subr.bf16.mxu0 0
    %3358 = vmatpush1.bf16.msra.mxu0 0
    %3359 = vmatprep.subr.bf16.mxu0 0
    %3360 = vmatpush1.bf16.msra.mxu0 0
    %3361 = vmatprep.subr.bf16.mxu0 0
    %3362 = vmatpush1.bf16.msra.mxu0 0
    %3363 = vmatprep.subr.bf16.mxu0 0
    %3364 = vmatpush1.bf16.msra.mxu0 0
    %3365 = vmatprep.subr.bf16.mxu0 0
    %3366 = vmatpush1.bf16.msra.mxu0 0
    %3367 = vmatprep.subr.bf16.mxu0 0
    %3368 = vmatpush1.bf16.msra.mxu0 0
    %3369 = vmatprep.subr.bf16.mxu0 0
    %3370 = vmatpush1.bf16.msra.mxu0 0
    %3371 = vmatprep.mubr.bf16.mxu0 0
    %3372 = vmatmul.mubr.bf16.gmra.mrb[0].mxu0 %v3297
    %v3373 = vpop.f32.mrb[0].mxu0
    %v3374 = vadd.f32 0.0, %v3373
    %v3375 = vpop.f32.mrb[0].mxu0
    %v3376 = vadd.f32 0.0, %v3375
    %v3377 = vpop.f32.mrb[0].mxu0
    %v3378 = vpop.f32.mrb[0].mxu0
    %3379 = vdwg.mxu0
    %v3380 = vadd.f32 %v3293, %v3333
    %v3381 = vadd.f32 %v3294, %v3335
    %v3382 = vadd.f32 %v3295, %v3374
    %v3383 = vadd.f32 %v3296, %v3376
    %v3384 = vxor.u32 %v3380, 2147483648
    %v3385 = vxor.u32 %v3381, 2147483648
    %v3386 = vxor.u32 %v3382, 2147483648
    %v3387 = vmul.f32 %v3384, 1.442695
    %v3388 = vpow.pop %v3387
    %v3389 = vmul.f32 %v3385, 1.442695
    %v3390 = vpow.pop %v3389
    %v3391 = vmul.f32 %v3386, 1.442695
    %v3392 = vpow.pop %v3391
    %v3393 = vadd.f32 %v3388, 1.0
    %v3394 = vadd.f32 %v3390, 1.0
    %v3395 = vadd.f32 %v3392, 1.0
    %v3396 = vrcp.pop %v3393
    %v3397 = vmul.f32 1.0, %v3396
    %v3398 = vrcp.pop %v3394
    %v3399 = vmul.f32 1.0, %v3398
    %v3400 = vrcp.pop %v3395
    %v3401 = vmul.f32 1.0, %v3400
    %v3402 = vtanh.pop %v3383
    %v3403 = vmul.f32 %v3399, %v3289
    %v3404 = vmul.f32 %v3397, %v3402
    %v3405 = vadd.f32 %v3403, %v3404
    %v3406 = vtanh.pop %v3405
    %v3407 = vmul.f32 %v3401, %v3406
    %v3408 = vsel %vm3291, 1, 0
    %3409 = vset.pattern.permute.xlu0 0
    %3410 = vperm.xlu0 %3409, %v3408
    %v3411 = vpop.permute.xlu0 %3410
    %vm3412 = vcmp.eq.s32.totalorder %v3411, 1
    %v3413 = vsel %vm3412, %v3407, 0.0
    %s3414 = scalar_lea.vmem [#allocation4], 40
    %3415 = vst [vmem:[%s3414] sm:$0xff] %v3413
    %v3416 = vsel %vm3412, %v3407, %v3288
    %v3417 = vsel %vm3412, %v3405, %v3289
    %v3418 = vld [vmem:[%s1931] sm:$0xff]
    %vm3419 = vcmp.gt.f32.partialorder %v3418, 0.0
    %s3420 = scalar_lea.vmem [#allocation3], 192
    %v3421 = vld [vmem:[%s3420] sm:$0xff]
    %v3422 = vld [vmem:[%s3420 + $0x8] sm:$0xff]
    %v3423 = vld [vmem:[%s3420 + $0x10] sm:$0xff]
    %v3424 = vld [vmem:[%s3420 + $0x18] sm:$0xff]
    %v3425 = vpack.c.bf16 %v3416, %v3416
    %3426 = vmatprep.subr.bf16.mxu0 %v2596
    %3427 = vmatpush1.bf16.msra.mxu0 %v2595
    %3428 = vmatprep.subr.bf16.mxu0 %v2600
    %3429 = vmatpush1.bf16.msra.mxu0 %v2599
    %3430 = vmatprep.subr.bf16.mxu0 %v2604
    %3431 = vmatpush1.bf16.msra.mxu0 %v2603
    %3432 = vmatprep.subr.bf16.mxu0 %v2608
    %3433 = vmatpush1.bf16.msra.mxu0 %v2607
    %3434 = vmatprep.subr.bf16.mxu0 %v2612
    %3435 = vmatpush1.bf16.msra.mxu0 %v2611
    %3436 = vmatprep.subr.bf16.mxu0 %v2616
    %3437 = vmatpush1.bf16.msra.mxu0 %v2615
    %3438 = vmatprep.subr.bf16.mxu0 %v2620
    %3439 = vmatpush1.bf16.msra.mxu0 %v2619
    %3440 = vmatprep.subr.bf16.mxu0 %v2624
    %3441 = vmatpush1.bf16.msra.mxu0 %v2623
    %3442 = vmatprep.subr.bf16.mxu0 0
    %3443 = vmatpush1.bf16.msra.mxu0 0
    %3444 = vmatprep.subr.bf16.mxu0 0
    %3445 = vmatpush1.bf16.msra.mxu0 0
    %3446 = vmatprep.subr.bf16.mxu0 0
    %3447 = vmatpush1.bf16.msra.mxu0 0
    %3448 = vmatprep.subr.bf16.mxu0 0
    %3449 = vmatpush1.bf16.msra.mxu0 0
    %3450 = vmatprep.subr.bf16.mxu0 0
    %3451 = vmatpush1.bf16.msra.mxu0 0
    %3452 = vmatprep.subr.bf16.mxu0 0
    %3453 = vmatpush1.bf16.msra.mxu0 0
    %3454 = vmatprep.subr.bf16.mxu0 0
    %3455 = vmatpush1.bf16.msra.mxu0 0
    %3456 = vmatprep.subr.bf16.mxu0 0
    %3457 = vmatpush1.bf16.msra.mxu0 0
    %3458 = vmatprep.mubr.bf16.mxu0 0
    %3459 = vmatmul.mubr.bf16.gmra.mrb[0].mxu0 %v3425
    %v3460 = vpop.f32.mrb[0].mxu0
    %v3461 = vadd.f32 0.0, %v3460
    %v3462 = vpop.f32.mrb[0].mxu0
    %v3463 = vadd.f32 0.0, %v3462
    %v3464 = vpop.f32.mrb[0].mxu0
    %v3465 = vpop.f32.mrb[0].mxu0
    %3466 = vdwg.mxu0
    %3467 = vmatprep.subr.bf16.mxu0 %v2598
    %3468 = vmatpush1.bf16.msra.mxu0 %v2597
    %3469 = vmatprep.subr.bf16.mxu0 %v2602
    %3470 = vmatpush1.bf16.msra.mxu0 %v2601
    %3471 = vmatprep.subr.bf16.mxu0 %v2606
    %3472 = vmatpush1.bf16.msra.mxu0 %v2605
    %3473 = vmatprep.subr.bf16.mxu0 %v2610
    %3474 = vmatpush1.bf16.msra.mxu0 %v2609
    %3475 = vmatprep.subr.bf16.mxu0 %v2614
    %3476 = vmatpush1.bf16.msra.mxu0 %v2613
    %3477 = vmatprep.subr.bf16.mxu0 %v2618
    %3478 = vmatpush1.bf16.msra.mxu0 %v2617
    %3479 = vmatprep.subr.bf16.mxu0 %v2622
    %3480 = vmatpush1.bf16.msra.mxu0 %v2621
    %3481 = vmatprep.subr.bf16.mxu0 %v2626
    %3482 = vmatpush1.bf16.msra.mxu0 %v2625
    %3483 = vmatprep.subr.bf16.mxu0 0
    %3484 = vmatpush1.bf16.msra.mxu0 0
    %3485 = vmatprep.subr.bf16.mxu0 0
    %3486 = vmatpush1.bf16.msra.mxu0 0
    %3487 = vmatprep.subr.bf16.mxu0 0
    %3488 = vmatpush1.bf16.msra.mxu0 0
    %3489 = vmatprep.subr.bf16.mxu0 0
    %3490 = vmatpush1.bf16.msra.mxu0 0
    %3491 = vmatprep.subr.bf16.mxu0 0
    %3492 = vmatpush1.bf16.msra.mxu0 0
    %3493 = vmatprep.subr.bf16.mxu0 0
    %3494 = vmatpush1.bf16.msra.mxu0 0
    %3495 = vmatprep.subr.bf16.mxu0 0
    %3496 = vmatpush1.bf16.msra.mxu0 0
    %3497 = vmatprep.subr.bf16.mxu0 0
    %3498 = vmatpush1.bf16.msra.mxu0 0
    %3499 = vmatprep.mubr.bf16.mxu0 0
    %3500 = vmatmul.mubr.bf16.gmra.mrb[0].mxu0 %v3425
    %v3501 = vpop.f32.mrb[0].mxu0
    %v3502 = vadd.f32 0.0, %v3501
    %v3503 = vpop.f32.mrb[0].mxu0
    %v3504 = vadd.f32 0.0, %v3503
    %v3505 = vpop.f32.mrb[0].mxu0
    %v3506 = vpop.f32.mrb[0].mxu0
    %3507 = vdwg.mxu0
    %v3508 = vadd.f32 %v3421, %v3461
    %v3509 = vadd.f32 %v3422, %v3463
    %v3510 = vadd.f32 %v3423, %v3502
    %v3511 = vadd.f32 %v3424, %v3504
    %v3512 = vxor.u32 %v3508, 2147483648
    %v3513 = vxor.u32 %v3509, 2147483648
    %v3514 = vxor.u32 %v3510, 2147483648
    %v3515 = vmul.f32 %v3512, 1.442695
    %v3516 = vpow.pop %v3515
    %v3517 = vmul.f32 %v3513, 1.442695
    %v3518 = vpow.pop %v3517
    %v3519 = vmul.f32 %v3514, 1.442695
    %v3520 = vpow.pop %v3519
    %v3521 = vadd.f32 %v3516, 1.0
    %v3522 = vadd.f32 %v3518, 1.0
    %v3523 = vadd.f32 %v3520, 1.0
    %v3524 = vrcp.pop %v3521
    %v3525 = vmul.f32 1.0, %v3524
    %v3526 = vrcp.pop %v3522
    %v3527 = vmul.f32 1.0, %v3526
    %v3528 = vrcp.pop %v3523
    %v3529 = vmul.f32 1.0, %v3528
    %v3530 = vtanh.pop %v3511
    %v3531 = vmul.f32 %v3527, %v3417
    %v3532 = vmul.f32 %v3525, %v3530
    %v3533 = vadd.f32 %v3531, %v3532
    %v3534 = vtanh.pop %v3533
    %v3535 = vmul.f32 %v3529, %v3534
    %v3536 = vsel %vm3419, 1, 0
    %3537 = vset.pattern.permute.xlu0 0
    %3538 = vperm.xlu0 %3537, %v3536
    %v3539 = vpop.permute.xlu0 %3538
    %vm3540 = vcmp.eq.s32.totalorder %v3539, 1
    %v3541 = vsel %vm3540, %v3535, 0.0
    %s3542 = scalar_lea.vmem [#allocation4], 48
    %3543 = vst [vmem:[%s3542] sm:$0xff] %v3541
    %v3544 = vsel %vm3540, %v3535, %v3416
    %v3545 = vsel %vm3540, %v3533, %v3417
    %v3546 = vld [vmem:[%s2057] sm:$0xff]
    %vm3547 = vcmp.gt.f32.partialorder %v3546, 0.0
    %s3548 = scalar_lea.vmem [#allocation3], 224
    %v3549 = vld [vmem:[%s3548] sm:$0xff]
    %v3550 = vld [vmem:[%s3548 + $0x8] sm:$0xff]
    %v3551 = vld [vmem:[%s3548 + $0x10] sm:$0xff]
    %v3552 = vld [vmem:[%s3548 + $0x18] sm:$0xff]
    %v3553 = vpack.c.bf16 %v3544, %v3544
    %3554 = vmatprep.subr.bf16.mxu0 %v2596
    %3555 = vmatpush1.bf16.msra.mxu0 %v2595
    %3556 = vmatprep.subr.bf16.mxu0 %v2600
    %3557 = vmatpush1.bf16.msra.mxu0 %v2599
    %3558 = vmatprep.subr.bf16.mxu0 %v2604
    %3559 = vmatpush1.bf16.msra.mxu0 %v2603
    %3560 = vmatprep.subr.bf16.mxu0 %v2608
    %3561 = vmatpush1.bf16.msra.mxu0 %v2607
    %3562 = vmatprep.subr.bf16.mxu0 %v2612
    %3563 = vmatpush1.bf16.msra.mxu0 %v2611
    %3564 = vmatprep.subr.bf16.mxu0 %v2616
    %3565 = vmatpush1.bf16.msra.mxu0 %v2615
    %3566 = vmatprep.subr.bf16.mxu0 %v2620
    %3567 = vmatpush1.bf16.msra.mxu0 %v2619
    %3568 = vmatprep.subr.bf16.mxu0 %v2624
    %3569 = vmatpush1.bf16.msra.mxu0 %v2623
    %3570 = vmatprep.subr.bf16.mxu0 0
    %3571 = vmatpush1.bf16.msra.mxu0 0
    %3572 = vmatprep.subr.bf16.mxu0 0
    %3573 = vmatpush1.bf16.msra.mxu0 0
    %3574 = vmatprep.subr.bf16.mxu0 0
    %3575 = vmatpush1.bf16.msra.mxu0 0
    %3576 = vmatprep.subr.bf16.mxu0 0
    %3577 = vmatpush1.bf16.msra.mxu0 0
    %3578 = vmatprep.subr.bf16.mxu0 0
    %3579 = vmatpush1.bf16.msra.mxu0 0
    %3580 = vmatprep.subr.bf16.mxu0 0
    %3581 = vmatpush1.bf16.msra.mxu0 0
    %3582 = vmatprep.subr.bf16.mxu0 0
    %3583 = vmatpush1.bf16.msra.mxu0 0
    %3584 = vmatprep.subr.bf16.mxu0 0
    %3585 = vmatpush1.bf16.msra.mxu0 0
    %3586 = vmatprep.mubr.bf16.mxu0 0
    %3587 = vmatmul.mubr.bf16.gmra.mrb[0].mxu0 %v3553
    %v3588 = vpop.f32.mrb[0].mxu0
    %v3589 = vadd.f32 0.0, %v3588
    %v3590 = vpop.f32.mrb[0].mxu0
    %v3591 = vadd.f32 0.0, %v3590
    %v3592 = vpop.f32.mrb[0].mxu0
    %v3593 = vpop.f32.mrb[0].mxu0
    %3594 = vdwg.mxu0
    %3595 = vmatprep.subr.bf16.mxu0 %v2598
    %3596 = vmatpush1.bf16.msra.mxu0 %v2597
    %3597 = vmatprep.subr.bf16.mxu0 %v2602
    %3598 = vmatpush1.bf16.msra.mxu0 %v2601
    %3599 = vmatprep.subr.bf16.mxu0 %v2606
    %3600 = vmatpush1.bf16.msra.mxu0 %v2605
    %3601 = vmatprep.subr.bf16.mxu0 %v2610
    %3602 = vmatpush1.bf16.msra.mxu0 %v2609
    %3603 = vmatprep.subr.bf16.mxu0 %v2614
    %3604 = vmatpush1.bf16.msra.mxu0 %v2613
    %3605 = vmatprep.subr.bf16.mxu0 %v2618
    %3606 = vmatpush1.bf16.msra.mxu0 %v2617
    %3607 = vmatprep.subr.bf16.mxu0 %v2622
    %3608 = vmatpush1.bf16.msra.mxu0 %v2621
    %3609 = vmatprep.subr.bf16.mxu0 %v2626
    %3610 = vmatpush1.bf16.msra.mxu0 %v2625
    %3611 = vmatprep.subr.bf16.mxu0 0
    %3612 = vmatpush1.bf16.msra.mxu0 0
    %3613 = vmatprep.subr.bf16.mxu0 0
    %3614 = vmatpush1.bf16.msra.mxu0 0
    %3615 = vmatprep.subr.bf16.mxu0 0
    %3616 = vmatpush1.bf16.msra.mxu0 0
    %3617 = vmatprep.subr.bf16.mxu0 0
    %3618 = vmatpush1.bf16.msra.mxu0 0
    %3619 = vmatprep.subr.bf16.mxu0 0
    %3620 = vmatpush1.bf16.msra.mxu0 0
    %3621 = vmatprep.subr.bf16.mxu0 0
    %3622 = vmatpush1.bf16.msra.mxu0 0
    %3623 = vmatprep.subr.bf16.mxu0 0
    %3624 = vmatpush1.bf16.msra.mxu0 0
    %3625 = vmatprep.subr.bf16.mxu0 0
    %3626 = vmatpush1.bf16.msra.mxu0 0
    %3627 = vmatprep.mubr.bf16.mxu0 0
    %3628 = vmatmul.mubr.bf16.gmra.mrb[0].mxu0 %v3553
    %v3629 = vpop.f32.mrb[0].mxu0
    %v3630 = vadd.f32 0.0, %v3629
    %v3631 = vpop.f32.mrb[0].mxu0
    %v3632 = vadd.f32 0.0, %v3631
    %v3633 = vpop.f32.mrb[0].mxu0
    %v3634 = vpop.f32.mrb[0].mxu0
    %3635 = vdwg.mxu0
    %v3636 = vadd.f32 %v3549, %v3589
    %v3637 = vadd.f32 %v3550, %v3591
    %v3638 = vadd.f32 %v3551, %v3630
    %v3639 = vadd.f32 %v3552, %v3632
    %v3640 = vxor.u32 %v3636, 2147483648
    %v3641 = vxor.u32 %v3637, 2147483648
    %v3642 = vxor.u32 %v3638, 2147483648
    %v3643 = vmul.f32 %v3640, 1.442695
    %v3644 = vpow.pop %v3643
    %v3645 = vmul.f32 %v3641, 1.442695
    %v3646 = vpow.pop %v3645
    %v3647 = vmul.f32 %v3642, 1.442695
    %v3648 = vpow.pop %v3647
    %v3649 = vadd.f32 %v3644, 1.0
    %v3650 = vadd.f32 %v3646, 1.0
    %v3651 = vadd.f32 %v3648, 1.0
    %v3652 = vrcp.pop %v3649
    %v3653 = vmul.f32 1.0, %v3652
    %v3654 = vrcp.pop %v3650
    %v3655 = vmul.f32 1.0, %v3654
    %v3656 = vrcp.pop %v3651
    %v3657 = vmul.f32 1.0, %v3656
    %v3658 = vtanh.pop %v3639
    %v3659 = vmul.f32 %v3655, %v3545
    %v3660 = vmul.f32 %v3653, %v3658
    %v3661 = vadd.f32 %v3659, %v3660
    %v3662 = vtanh.pop %v3661
    %v3663 = vmul.f32 %v3657, %v3662
    %v3664 = vsel %vm3547, 1, 0
    %3665 = vset.pattern.permute.xlu0 0
    %3666 = vperm.xlu0 %3665, %v3664
    %v3667 = vpop.permute.xlu0 %3666
    %vm3668 = vcmp.eq.s32.totalorder %v3667, 1
    %v3669 = vsel %vm3668, %v3663, 0.0
    %s3670 = scalar_lea.vmem [#allocation4], 56
    %3671 = vst [vmem:[%s3670] sm:$0xff] %v3669
    %v3672 = vld [vmem:[#allocation4] sm:$0xff]
    %v3673 = vld [vmem:[#allocation4 + $0x8] sm:$0xff]
    %v3674 = vld [vmem:[#allocation4 + $0x10] sm:$0xff]
    %v3675 = vld [vmem:[#allocation4 + $0x18] sm:$0xff]
    %v3676 = vld [vmem:[#allocation4 + $0x20] sm:$0xff]
    %v3677 = vld [vmem:[#allocation4 + $0x28] sm:$0xff]
    %v3678 = vld [vmem:[#allocation4 + $0x30] sm:$0xff]
    %v3679 = vld [vmem:[#allocation4 + $0x38] sm:$0xff]
    %v3680 = vpack.c.bf16 %v3673, %v3672
    %v3681 = vpack.c.bf16 %v3675, %v3674
    %v3682 = vpack.c.bf16 %v3677, %v3676
    %v3683 = vpack.c.bf16 %v3679, %v3678
    %v3684 = vld [vmem:[%s13] sm:$0xf]
    %v3685 = vld [vmem:[%s13 + $0x4] sm:$0xf]
    %v3686 = vld [vmem:[%s13 + $0x8] sm:$0xf]
    %v3687 = vld [vmem:[%s13 + $0xc] sm:$0xf]
    %v3688 = vld [vmem:[%s13 + $0x10] sm:$0xf]
    %v3689 = vld [vmem:[%s13 + $0x14] sm:$0xf]
    %v3690 = vld [vmem:[%s13 + $0x18] sm:$0xf]
    %v3691 = vld [vmem:[%s13 + $0x1c] sm:$0xf]
    %v3692 = vld [vmem:[%s13 + $0x20] sm:$0xf]
    %v3693 = vld [vmem:[%s13 + $0x24] sm:$0xf]
    %v3694 = vld [vmem:[%s13 + $0x28] sm:$0xf]
    %v3695 = vld [vmem:[%s13 + $0x2c] sm:$0xf]
    %v3696 = vld [vmem:[%s13 + $0x30] sm:$0xf]
    %v3697 = vld [vmem:[%s13 + $0x34] sm:$0xf]
    %v3698 = vld [vmem:[%s13 + $0x38] sm:$0xf]
    %v3699 = vld [vmem:[%s13 + $0x3c] sm:$0xf]
    %v3700 = vld [vmem:[%s14] sm:$0x1]
    %v3702 = vlaneseq
    %v3703 = vshrl.u32 %v3702, 7
    %v3704 = vsub.s32 0, %v3703
    %v3705 = vrot.slane %v3700, %v3704
    %v3723 = vunpack.c.l.b16 %v3684
    %v3724 = vunpack.c.l.b16 %v3685
    %v3725 = vunpack.c.l.b16 %v3686
    %v3726 = vunpack.c.l.b16 %v3687
    %v3727 = vunpack.c.l.b16 %v3688
    %v3728 = vunpack.c.l.b16 %v3689
    %v3729 = vunpack.c.l.b16 %v3690
    %v3730 = vunpack.c.l.b16 %v3691
    %v3731 = vunpack.c.l.b16 %v3692
    %v3732 = vunpack.c.l.b16 %v3693
    %v3733 = vunpack.c.l.b16 %v3694
    %v3734 = vunpack.c.l.b16 %v3695
    %v3735 = vunpack.c.l.b16 %v3696
    %v3736 = vunpack.c.l.b16 %v3697
    %v3737 = vunpack.c.l.b16 %v3698
    %v3738 = vunpack.c.l.b16 %v3699
    %v3739 = vpack.c.b16 %v3724, %v3723
    %v3740 = vpack.c.b16 %v3726, %v3725
    %v3741 = vpack.c.b16 %v3728, %v3727
    %v3742 = vpack.c.b16 %v3730, %v3729
    %v3743 = vpack.c.b16 %v3732, %v3731
    %v3744 = vpack.c.b16 %v3734, %v3733
    %v3745 = vpack.c.b16 %v3736, %v3735
    %v3746 = vpack.c.b16 %v3738, %v3737
    %3755 = vmatprep.subr.bf16.mxu0 0
    %3756 = vmatpush1.bf16.msra.mxu0 %v3739
    %3757 = vmatprep.subr.bf16.mxu0 0
    %3758 = vmatpush1.bf16.msra.mxu0 %v3740
    %3759 = vmatprep.subr.bf16.mxu0 0
    %3760 = vmatpush1.bf16.msra.mxu0 %v3741
    %3761 = vmatprep.subr.bf16.mxu0 0
    %3762 = vmatpush1.bf16.msra.mxu0 %v3742
    %3763 = vmatprep.subr.bf16.mxu0 0
    %3764 = vmatpush1.bf16.msra.mxu0 %v3743
    %3765 = vmatprep.subr.bf16.mxu0 0
    %3766 = vmatpush1.bf16.msra.mxu0 %v3744
    %3767 = vmatprep.subr.bf16.mxu0 0
    %3768 = vmatpush1.bf16.msra.mxu0 %v3745
    %3769 = vmatprep.subr.bf16.mxu0 0
    %3770 = vmatpush1.bf16.msra.mxu0 %v3746
    %3771 = vmatprep.subr.bf16.mxu0 0
    %3772 = vmatpush1.bf16.msra.mxu0 0
    %3773 = vmatprep.subr.bf16.mxu0 0
    %3774 = vmatpush1.bf16.msra.mxu0 0
    %3775 = vmatprep.subr.bf16.mxu0 0
    %3776 = vmatpush1.bf16.msra.mxu0 0
    %3777 = vmatprep.subr.bf16.mxu0 0
    %3778 = vmatpush1.bf16.msra.mxu0 0
    %3779 = vmatprep.subr.bf16.mxu0 0
    %3780 = vmatpush1.bf16.msra.mxu0 0
    %3781 = vmatprep.subr.bf16.mxu0 0
    %3782 = vmatpush1.bf16.msra.mxu0 0
    %3783 = vmatprep.subr.bf16.mxu0 0
    %3784 = vmatpush1.bf16.msra.mxu0 0
    %3785 = vmatprep.subr.bf16.mxu0 0
    %3786 = vmatpush1.bf16.msra.mxu0 0
    %3787 = vmatprep.mubr.bf16.mxu0 0
    %3788 = vmatmul.mubr.bf16.gmra.mrb[0].mxu0 %v3680
    %v3789 = vpop.f32.mrb[0].mxu0
    %v3790 = vadd.f32 %v3705, %v3789
    %v3791 = vpop.f32.mrb[0].mxu0
    %v3792 = vpop.f32.mrb[0].mxu0
    %v3793 = vadd.f32 %v3705, %v3792
    %v3794 = vpop.f32.mrb[0].mxu0
    %3795 = vmatprep.mubr.bf16.mxu0 0
    %3796 = vmatmul.mubr.bf16.gmra.mrb[0].mxu0 %v3681
    %v3797 = vpop.f32.mrb[0].mxu0
    %v3798 = vadd.f32 %v3705, %v3797
    %v3799 = vpop.f32.mrb[0].mxu0
    %v3800 = vpop.f32.mrb[0].mxu0
    %v3801 = vadd.f32 %v3705, %v3800
    %v3802 = vpop.f32.mrb[0].mxu0
    %3803 = vmatprep.mubr.bf16.mxu0 0
    %3804 = vmatmul.mubr.bf16.gmra.mrb[0].mxu0 %v3682
    %v3805 = vpop.f32.mrb[0].mxu0
    %v3806 = vadd.f32 %v3705, %v3805
    %v3807 = vpop.f32.mrb[0].mxu0
    %v3808 = vpop.f32.mrb[0].mxu0
    %v3809 = vadd.f32 %v3705, %v3808
    %v3810 = vpop.f32.mrb[0].mxu0
    %3811 = vmatprep.mubr.bf16.mxu0 0
    %3812 = vmatmul.mubr.bf16.gmra.mrb[0].mxu0 %v3683
    %v3813 = vpop.f32.mrb[0].mxu0
    %v3814 = vadd.f32 %v3705, %v3813
    %v3815 = vpop.f32.mrb[0].mxu0
    %v3816 = vpop.f32.mrb[0].mxu0
    %v3817 = vadd.f32 %v3705, %v3816
    %v3818 = vpop.f32.mrb[0].mxu0
    %3819 = vdwg.mxu0
    %3820 = vst [vmem:[#allocation16] sm:$0xff] %v3790
    %3821 = vst [vmem:[#allocation16 + $0x8] sm:$0xff] %v3793
    %3822 = vst [vmem:[#allocation16 + $0x10] sm:$0xff] %v3798
    %3823 = vst [vmem:[#allocation16 + $0x18] sm:$0xff] %v3801
    %3824 = vst [vmem:[#allocation16 + $0x20] sm:$0xff] %v3806
    %3825 = vst [vmem:[#allocation16 + $0x28] sm:$0xff] %v3809
    %3826 = vst [vmem:[#allocation16 + $0x30] sm:$0xff] %v3814
    %3827 = vst [vmem:[#allocation16 + $0x38] sm:$0xff] %v3817
    // Predicated region
    $region86: #{tpu_custom_call.1} parent=1 // pred_check
      _
    $region87: #{tpu_custom_call.1} parent=1 // pred_check_branch
      %3829 = sbr.rel (0) target = $region89
    $region88: #{tpu_custom_call.1} parent=1 // pred_region
      %s3831 = ssub.s32 1024, 1024
      %3832 = vsyncadd [#allocation7], %s3831
      %s3833 = sshll.u32 [#allocation16], 4
      %s3834 = int_to_ptr.vmem [resolvable:$true] %s3833
      %3839 = dma.vmem_to_hbm [thread:$0]  %s3834, 1024, %s15, [#allocation7], 128, 128, 8
    $region89: #{tpu_custom_call.1} parent=1 // pred_fallthru
      _
    // Predicated region
    $region90: #{tpu_custom_call.1} parent=1 // pred_check
      _
    $region91: #{tpu_custom_call.1} parent=1 // pred_check_branch
      %3841 = sbr.rel (0) target = $region93
    $region92: #{tpu_custom_call.1} parent=1 // pred_region
      %s3843 = ssub.s32 128, 128
      %3844 = vsyncadd [#allocation18], %s3843
      %s3846 = sshll.u32 [#allocation17], 4
      %s3847 = int_to_ptr.vmem [resolvable:$true] %s3846
      %3849 = dma.vmem_to_hbm [thread:$0]  %s3847, 128, %s16, [#allocation18]
    $region93: #{tpu_custom_call.1} parent=1 // pred_fallthru
      _
    // Predicated region
    $region94: #{tpu_custom_call.1} parent=1 // pred_check
      _
    $region95: #{tpu_custom_call.1} parent=1 // pred_check_branch
      %3851 = sbr.rel (0) target = $region97
    $region96: #{tpu_custom_call.1} parent=1 // pred_region
      %s3853 = ssub.s32 128, 128
      %3854 = vsyncadd [#allocation18], %s3853
      %s3856 = sshll.u32 [#allocation19], 4
      %s3857 = int_to_ptr.vmem [resolvable:$true] %s3856
      %3859 = dma.vmem_to_hbm [thread:$0]  %s3857, 128, %s17, [#allocation18]
    $region97: #{tpu_custom_call.1} parent=1 // pred_fallthru
      _
    // Predicated region
    $region98: #{tpu_custom_call.1} parent=1 // pred_check
      _
    $region99: #{tpu_custom_call.1} parent=1 // pred_check_branch
      %3861 = sbr.rel (0) target = $region101
    $region100: #{tpu_custom_call.1} parent=1 // pred_region
      %s3863 = ssub.s32 128, 128
      %3864 = vsyncadd [#allocation21], %s3863
      %s3866 = sshll.u32 [#allocation20], 4
      %s3867 = int_to_ptr.vmem [resolvable:$true] %s3866
      %3869 = dma.vmem_to_hbm [thread:$0]  %s3867, 128, %s18, [#allocation21]
    $region101: #{tpu_custom_call.1} parent=1 // pred_fallthru
      _
    // Predicated region
    $region102: #{tpu_custom_call.1} parent=1 // pred_check
      _
    $region103: #{tpu_custom_call.1} parent=1 // pred_check_branch
      %3871 = sbr.rel (0) target = $region105
    $region104: #{tpu_custom_call.1} parent=1 // pred_region
      %3872 = dma.done [#allocation7], 1024
    $region105: #{tpu_custom_call.1} parent=1 // pred_fallthru
      _
    // Predicated region
    $region106: #{tpu_custom_call.1} parent=1 // pred_check
      _
    $region107: #{tpu_custom_call.1} parent=1 // pred_check_branch
      %3874 = sbr.rel (0) target = $region109
    $region108: #{tpu_custom_call.1} parent=1 // pred_region
      %3875 = dma.done [#allocation18], 128
    $region109: #{tpu_custom_call.1} parent=1 // pred_fallthru
      _
    // Predicated region
    $region110: #{tpu_custom_call.1} parent=1 // pred_check
      _
    $region111: #{tpu_custom_call.1} parent=1 // pred_check_branch
      %3877 = sbr.rel (0) target = $region113
    $region112: #{tpu_custom_call.1} parent=1 // pred_region
      %3878 = dma.done [#allocation18], 128
    $region113: #{tpu_custom_call.1} parent=1 // pred_fallthru
      _
    // Predicated region
    $region114: #{tpu_custom_call.1} parent=1 // pred_check
      _
    $region115: #{tpu_custom_call.1} parent=1 // pred_check_branch
      %3880 = sbr.rel (0) target = $region117
    $region116: #{tpu_custom_call.1} parent=1 // pred_region
      %3881 = dma.done [#allocation21], 128
    $region117: #{tpu_custom_call.1} parent=1 // pred_fallthru
      _
    %3882 = vsyncpa [#allocation6], 1
    %3883 = vsyncpa [#allocation9], 1
    %3884 = vsyncpa [#allocation12], 1
    %3885 = vsyncpa [#allocation15], 1
    %3886 = vsyncpa [#allocation7], 1
    %3887 = vsyncpa [#allocation18], 1
    %3888 = vsyncpa [#allocation21], 1

</llo_original>
